<compile_context>
chip_gen: v7x
topology: tpu7x:2x2x1
jax: 0.10.0
libtpu: 0.0.40
codegen_flags: <defaults>
</compile_context>

<pallas_src>
import functools

import jax
import jax.numpy as jnp
from jax.experimental import pallas as pl
from jax.experimental.pallas import tpu as pltpu

# ---- model hyper-params (small, consistent with the module) ----------------
BLOCK_SIZE = 16     # block_size
HEADS_NUM = 8       # heads_num
LAYERS_NUM = 2      # layers_num
EMBD_SIZE = 32      # embd_size  -> head_size = 4
VOCAB_SIZE = 64     # synthetic vocab (dataset-derived in the original)
BATCH = 2
HEAD_SIZE = EMBD_SIZE // HEADS_NUM
LN_EPS = 1e-5
VOCAB_PAD = 128     # lane-dense padded vocab (multiple of 128)
NEG_INF = -1e30     # large finite negative (safer than -inf with block mask)


def _layer_norm(x, gamma, beta):
    mean = jnp.mean(x, axis=-1, keepdims=True)
    var = jnp.mean((x - mean) ** 2, axis=-1, keepdims=True)
    return (x - mean) * jax.lax.rsqrt(var + LN_EPS) * gamma + beta


def gpt_kernel(
    B, T,                                   # static (bound via functools.partial)
    idx_ref, pos_ref, tok_ref,
    ln1g_ref, ln1b_ref, wqkv_ref, wo_ref, bo_ref,
    ln2g_ref, ln2b_ref, w1_ref, b1_ref, w2_ref, b2_ref,
    lnfg_ref, lnfb_ref, lmw_ref, lmb_ref,
    out_ref,
    o_scr,                                  # VMEM scratch (N, E) f32: head concat
):
    N = idx_ref.shape[0]                    # B * T (flattened batch)
    Vp, E = tok_ref.shape
    H, d = HEADS_NUM, HEAD_SIZE
    scale = float(E) ** -0.5                # matches `C ** (-0.5)`, C = embd_size

    # --- embeddings: one-hot (N, Vp) @ tok (Vp, E) + pre-tiled positional ---
    ids = idx_ref[...]                                             # (N, 1) int32
    one_hot = (ids == jax.lax.broadcasted_iota(jnp.int32, (N, Vp), 1)
               ).astype(jnp.bfloat16)                              # exact 0/1
    tok = jnp.dot(one_hot, tok_ref[...], preferred_element_type=jnp.float32)
    x = tok + pos_ref[...]                                         # (N, E) f32

    # --- block-diagonal causal additive bias, built in-kernel ---------------
    r = jax.lax.broadcasted_iota(jnp.int32, (N, N), 0)
    c = jax.lax.broadcasted_iota(jnp.int32, (N, N), 1)
    causal = r >= c
    same = None
    for b in range(B):                      # static unroll, no integer division
        lo, hi = b * T, (b + 1) * T
        in_blk = (r >= lo) & (r < hi) & (c >= lo) & (c < hi)
        same = in_blk if same is None else (same | in_blk)
    attn_bias = jnp.where(causal & same, 0.0, NEG_INF).astype(jnp.float32)

    for l in range(LAYERS_NUM):
        # ---- multi-head self-attention -------------------------------------
        xn = _layer_norm(x, ln1g_ref[l], ln1b_ref[l]).astype(jnp.bfloat16)
        # One fused 96-lane-wide QKV projection (raw [Wq|Wk|Wv] layout).
        qkv = jnp.dot(xn, wqkv_ref[l],
                      preferred_element_type=jnp.float32)          # (N, 3E)
        q = (qkv[:, :E] * scale).astype(jnp.bfloat16)              # scale folded
        k = qkv[:, E:2 * E].astype(jnp.bfloat16)
        v = qkv[:, 2 * E:].astype(jnp.bfloat16)

        for h in range(H):
            sl = slice(h * d, (h + 1) * d)
            # scores: q_h @ k_h^T via contraction on the last dim of both.
            s = jax.lax.dot_general(q[:, sl], k[:, sl],
                                    (((1,), (1,)), ((), ())),
                                    preferred_element_type=jnp.float32)  # (N, N)
            s = s + attn_bias
            s = s - jnp.max(s, axis=-1, keepdims=True)
            p = jnp.exp(s)
            p = p * pl.reciprocal(jnp.sum(p, axis=-1, keepdims=True), approx=True)
            o_h = jnp.dot(p.astype(jnp.bfloat16), v[:, sl],
                          preferred_element_type=jnp.float32)      # (N, d)
            # head-concat: masked store at this head's lane offset.
            o_scr[:, sl] = o_h

        # Single contraction-E output projection (replaces 8 d=4 matmuls+sum).
        o = o_scr[...].astype(jnp.bfloat16)                        # (N, E)
        sa = jnp.dot(o, wo_ref[l], preferred_element_type=jnp.float32) + bo_ref[l]
        x = x + sa

        # ---- feed-forward ----------------------------------------------------
        xn2 = _layer_norm(x, ln2g_ref[l], ln2b_ref[l]).astype(jnp.bfloat16)
        h1 = jnp.maximum(
            jnp.dot(xn2, w1_ref[l], preferred_element_type=jnp.float32)
            + b1_ref[l], 0.0)                                      # (N, 4E)
        ff = jnp.dot(h1.astype(jnp.bfloat16), w2_ref[l],
                     preferred_element_type=jnp.float32) + b2_ref[l]
        x = x + ff

    # ---- final layer norm + LM head (lane-dense 128-wide logits) -----------
    xf = _layer_norm(x, lnfg_ref[...], lnfb_ref[...]).astype(jnp.bfloat16)
    logits = jnp.dot(xf, lmw_ref[...], preferred_element_type=jnp.float32)
    out_ref[...] = logits + lmb_ref[...]


def init_params(key):
    L, E, V, Tb = LAYERS_NUM, EMBD_SIZE, VOCAB_SIZE, BLOCK_SIZE
    ks = jax.random.split(key, 8)
    w = lambda k, shape: (0.02 * jax.random.normal(k, shape)).astype(jnp.bfloat16)
    return dict(
        tok_table=w(ks[0], (V, E)),
        pos_table=w(ks[1], (Tb, E)),
        ln1g=jnp.ones((L, 1, E), jnp.float32),
        ln1b=jnp.zeros((L, 1, E), jnp.float32),
        wqkv=w(ks[2], (L, E, 3 * E)),          # fused [ Wq | Wk | Wv ] columns
        wo=w(ks[3], (L, E, E)),
        bo=jnp.zeros((L, 1, E), jnp.float32),
        ln2g=jnp.ones((L, 1, E), jnp.float32),
        ln2b=jnp.zeros((L, 1, E), jnp.float32),
        w1=w(ks[4], (L, E, 4 * E)),
        b1=jnp.zeros((L, 1, 4 * E), jnp.float32),
        w2=w(ks[5], (L, 4 * E, E)),
        b2=jnp.zeros((L, 1, E), jnp.float32),
        lnfg=jnp.ones((1, E), jnp.float32),
        lnfb=jnp.zeros((1, E), jnp.float32),
        lmw=w(ks[6], (E, V)),
        lmb=jnp.zeros((1, V), jnp.float32),
    )


def prepare_params(params):
    """One-time kernel-layout prep (vocab padding etc.) — not per forward call."""
    V, Vp, E = VOCAB_SIZE, VOCAB_PAD, EMBD_SIZE
    prepped = dict(params)
    # Lane-dense (128-wide) zero-padded vocab for embedding table / LM head.
    prepped["tok_pad"] = (jnp.zeros((Vp, E), jnp.bfloat16)
                          .at[:V].set(params["tok_table"]))
    prepped["lmw_pad"] = (jnp.zeros((E, Vp), jnp.bfloat16)
                          .at[:, :V].set(params["lmw"]))
    prepped["lmb_pad"] = (jnp.zeros((1, Vp), jnp.float32)
                          .at[:, :V].set(params["lmb"]))
    prepped["pos_f32"] = params["pos_table"].astype(jnp.float32)
    return prepped


@jax.jit
def gpt_forward(idx, prepped):
    """idx: [B, T] int32 token ids -> logits [B, T, V] float32."""
    B, T = idx.shape
    assert 1 <= T <= BLOCK_SIZE
    N = B * T
    V, Vp, E = VOCAB_SIZE, VOCAB_PAD, EMBD_SIZE

    idx2 = idx.reshape(N, 1).astype(jnp.int32)
    pos_tiled = jnp.tile(prepped["pos_f32"][:T], (B, 1))          # (N, E) f32

    # Whole problem fits comfortably in VMEM -> single invocation, no grid.
    logits_pad = pl.pallas_call(
        functools.partial(gpt_kernel, B, T),
        out_shape=jax.ShapeDtypeStruct((N, Vp), jnp.float32),
        scratch_shapes=[pltpu.VMEM((N, E), jnp.float32)],
    )(idx2, pos_tiled, prepped["tok_pad"],
      prepped["ln1g"], prepped["ln1b"], prepped["wqkv"], prepped["wo"],
      prepped["bo"], prepped["ln2g"], prepped["ln2b"], prepped["w1"],
      prepped["b1"], prepped["w2"], prepped["b2"],
      prepped["lnfg"], prepped["lnfb"], prepped["lmw_pad"], prepped["lmb_pad"])
    return logits_pad.reshape(B, T, Vp)[:, :, :V]


# ---- pure-JAX f32 reference (same math / same bf16-stored weights) ---------
def gpt_reference(idx, params):
    B, T = idx.shape
    E, H, d = EMBD_SIZE, HEADS_NUM, HEAD_SIZE
    f32 = lambda a: a.astype(jnp.float32)
    x = f32(params["tok_table"])[idx] + f32(params["pos_table"])[:T][None]
    row = jnp.arange(T)[:, None]
    col = jnp.arange(T)[None, :]
    causal = row >= col
    scale = float(E) ** -0.5
    wqkv = f32(params["wqkv"])
    for l in range(LAYERS_NUM):
        xn = _layer_norm(x, params["ln1g"][l], params["ln1b"][l])
        qkv = xn @ wqkv[l]
        q, k, v = qkv[..., :E], qkv[..., E:2 * E], qkv[..., 2 * E:]
        outs = []
        for h in range(H):
            sl = slice(h * d, (h + 1) * d)
            wei = jnp.einsum("btd,bsd->bts", q[..., sl], k[..., sl]) * scale
            wei = jnp.where(causal[None], wei, -jnp.inf)
            p = jax.nn.softmax(wei, axis=-1)
            outs.append(jnp.einsum("bts,bsd->btd", p, v[..., sl]))
        sa = jnp.concatenate(outs, axis=-1) @ f32(params["wo"][l]) + params["bo"][l]
        x = x + sa
        xn2 = _layer_norm(x, params["ln2g"][l], params["ln2b"][l])
        ff = jnp.maximum(xn2 @ f32(params["w1"][l]) + params["b1"][l], 0.0)
        ff = ff @ f32(params["w2"][l]) + params["b2"][l]
        x = x + ff
    xf = _layer_norm(x, params["lnfg"], params["lnfb"])
    return xf @ f32(params["lmw"]) + params["lmb"]


if __name__ == "__main__":
    key = jax.random.PRNGKey(0)
    pkey, ikey = jax.random.split(key)
    params = init_params(pkey)
    prepped = prepare_params(params)           # one-time layout prep
    idx = jax.random.randint(ikey, (BATCH, BLOCK_SIZE), 0, VOCAB_SIZE,
                             dtype=jnp.int32)

    logits = jax.block_until_ready(gpt_forward(idx, prepped))
    ref = gpt_reference(idx, params)

    assert logits.shape == (BATCH, BLOCK_SIZE, VOCAB_SIZE)
    max_err = float(jnp.max(jnp.abs(logits - ref)))
    # bf16 MXU operands + approx reciprocal -> relaxed tolerance vs f32 reference.
    assert jnp.allclose(logits, ref, atol=1e-2, rtol=1e-2), max_err
    print("KERNEL_OK")
</pallas_src>

<mosaic_0001>
module attributes {stable_mosaic.version = 11 : i64} {
  func.func @gpt_kernel(%arg0: memref<32x1xi32, #tpu.memory_space<vmem>>, %arg1: memref<32x32xf32, #tpu.memory_space<vmem>>, %arg2: memref<128x32xbf16, #tpu.memory_space<vmem>>, %arg3: memref<2x1x32xf32, #tpu.memory_space<vmem>>, %arg4: memref<2x1x32xf32, #tpu.memory_space<vmem>>, %arg5: memref<2x32x96xbf16, #tpu.memory_space<vmem>>, %arg6: memref<2x32x32xbf16, #tpu.memory_space<vmem>>, %arg7: memref<2x1x32xf32, #tpu.memory_space<vmem>>, %arg8: memref<2x1x32xf32, #tpu.memory_space<vmem>>, %arg9: memref<2x1x32xf32, #tpu.memory_space<vmem>>, %arg10: memref<2x32x128xbf16, #tpu.memory_space<vmem>>, %arg11: memref<2x1x128xf32, #tpu.memory_space<vmem>>, %arg12: memref<2x128x32xbf16, #tpu.memory_space<vmem>>, %arg13: memref<2x1x32xf32, #tpu.memory_space<vmem>>, %arg14: memref<1x32xf32, #tpu.memory_space<vmem>>, %arg15: memref<1x32xf32, #tpu.memory_space<vmem>>, %arg16: memref<32x128xbf16, #tpu.memory_space<vmem>>, %arg17: memref<1x128xf32, #tpu.memory_space<vmem>>, %arg18: memref<32x128xf32, #tpu.memory_space<vmem>>, %arg19: memref<32x32xf32, #tpu.memory_space<vmem>>) attributes {dimension_semantics = [], scalar_prefetch = 0 : i64, scratch_operands = 1 : i64, tpu.core_type = #tpu.core_type<tc>} {
    %c0 = arith.constant 0 : index
    %c0_0 = arith.constant 0 : index
    %0 = vector.load %arg0[%c0, %c0_0] : memref<32x1xi32, #tpu.memory_space<vmem>>, vector<32x1xi32>
    %1 = tpu.iota {dimensions = array<i32: 1>} : vector<32x128xi32>
    %2 = vector.broadcast %0 : vector<32x1xi32> to vector<32x128xi32>
    %3 = arith.cmpi eq, %2, %1 : vector<32x128xi32>
    %4 = arith.extui %3 : vector<32x128xi1> to vector<32x128xi32>
    %5 = arith.sitofp %4 : vector<32x128xi32> to vector<32x128xf32>
    %6 = arith.truncf %5 : vector<32x128xf32> to vector<32x128xbf16>
    %c0_1 = arith.constant 0 : index
    %c0_2 = arith.constant 0 : index
    %7 = vector.load %arg2[%c0_1, %c0_2] : memref<128x32xbf16, #tpu.memory_space<vmem>>, vector<128x32xbf16>
    %cst = arith.constant dense<0.000000e+00> : vector<32x32xf32>
    %8 = tpu.matmul %6, %7, %cst {dimension_numbers = #tpu.dot_dimension_numbers<[1], [0], [0], [1], [0, 0, 1, 1], [], []>} : vector<32x128xbf16>, vector<128x32xbf16>, vector<32x32xf32> -> vector<32x32xf32>
    %c0_3 = arith.constant 0 : index
    %c0_4 = arith.constant 0 : index
    %9 = vector.load %arg1[%c0_3, %c0_4] : memref<32x32xf32, #tpu.memory_space<vmem>>, vector<32x32xf32>
    %10 = arith.addf %8, %9 : vector<32x32xf32>
    %11 = tpu.iota {dimensions = array<i32: 0>} : vector<32x32xi32>
    %12 = tpu.iota {dimensions = array<i32: 1>} : vector<32x32xi32>
    %13 = arith.cmpi sge, %11, %12 : vector<32x32xi32>
    %c0_i32 = arith.constant 0 : i32
    %14 = vector.broadcast %c0_i32 : i32 to vector<32x32xi32>
    %15 = arith.cmpi sge, %11, %14 : vector<32x32xi32>
    %c16_i32 = arith.constant 16 : i32
    %16 = vector.broadcast %c16_i32 : i32 to vector<32x32xi32>
    %17 = arith.cmpi slt, %11, %16 : vector<32x32xi32>
    %18 = arith.andi %15, %17 : vector<32x32xi1>
    %c0_i32_5 = arith.constant 0 : i32
    %19 = vector.broadcast %c0_i32_5 : i32 to vector<32x32xi32>
    %20 = arith.cmpi sge, %12, %19 : vector<32x32xi32>
    %21 = arith.andi %18, %20 : vector<32x32xi1>
    %c16_i32_6 = arith.constant 16 : i32
    %22 = vector.broadcast %c16_i32_6 : i32 to vector<32x32xi32>
    %23 = arith.cmpi slt, %12, %22 : vector<32x32xi32>
    %24 = arith.andi %21, %23 : vector<32x32xi1>
    %c16_i32_7 = arith.constant 16 : i32
    %25 = vector.broadcast %c16_i32_7 : i32 to vector<32x32xi32>
    %26 = arith.cmpi sge, %11, %25 : vector<32x32xi32>
    %c32_i32 = arith.constant 32 : i32
    %27 = vector.broadcast %c32_i32 : i32 to vector<32x32xi32>
    %28 = arith.cmpi slt, %11, %27 : vector<32x32xi32>
    %29 = arith.andi %26, %28 : vector<32x32xi1>
    %c16_i32_8 = arith.constant 16 : i32
    %30 = vector.broadcast %c16_i32_8 : i32 to vector<32x32xi32>
    %31 = arith.cmpi sge, %12, %30 : vector<32x32xi32>
    %32 = arith.andi %29, %31 : vector<32x32xi1>
    %c32_i32_9 = arith.constant 32 : i32
    %33 = vector.broadcast %c32_i32_9 : i32 to vector<32x32xi32>
    %34 = arith.cmpi slt, %12, %33 : vector<32x32xi32>
    %35 = arith.andi %32, %34 : vector<32x32xi1>
    %36 = arith.ori %24, %35 : vector<32x32xi1>
    %37 = arith.andi %13, %36 : vector<32x32xi1>
    %cst_10 = arith.constant 0.000000e+00 : f32
    %cst_11 = arith.constant -1.000000e+30 : f32
    %38 = vector.broadcast %cst_10 : f32 to vector<32x32xf32>
    %39 = vector.broadcast %cst_11 : f32 to vector<32x32xf32>
    %40 = arith.select %37, %38, %39 : vector<32x32xi1>, vector<32x32xf32>
    %c0_12 = arith.constant 0 : index
    %c0_13 = arith.constant 0 : index
    %c0_14 = arith.constant 0 : index
    %41 = vector.load %arg3[%c0_12, %c0_13, %c0_14] : memref<2x1x32xf32, #tpu.memory_space<vmem>>, vector<1x1x32xf32>
    %42 = vector.shape_cast %41 : vector<1x1x32xf32> to vector<1x32xf32>
    %c0_15 = arith.constant 0 : index
    %c0_16 = arith.constant 0 : index
    %c0_17 = arith.constant 0 : index
    %43 = vector.load %arg4[%c0_15, %c0_16, %c0_17] : memref<2x1x32xf32, #tpu.memory_space<vmem>>, vector<1x1x32xf32>
    %44 = vector.shape_cast %43 : vector<1x1x32xf32> to vector<1x32xf32>
    %cst_18 = arith.constant dense<0.000000e+00> : vector<32xf32>
    %45 = vector.multi_reduction <add>, %10, %cst_18 [1] : vector<32x32xf32> to vector<32xf32>
    %46 = vector.shape_cast %45 : vector<32xf32> to vector<32x1xf32>
    %cst_19 = arith.constant 3.200000e+01 : f32
    %47 = vector.broadcast %cst_19 : f32 to vector<32x1xf32>
    %48 = arith.divf %46, %47 : vector<32x1xf32>
    %49 = vector.broadcast %48 : vector<32x1xf32> to vector<32x32xf32>
    %50 = arith.subf %10, %49 : vector<32x32xf32>
    %51 = arith.mulf %50, %50 : vector<32x32xf32>
    %cst_20 = arith.constant dense<0.000000e+00> : vector<32xf32>
    %52 = vector.multi_reduction <add>, %51, %cst_20 [1] : vector<32x32xf32> to vector<32xf32>
    %53 = vector.shape_cast %52 : vector<32xf32> to vector<32x1xf32>
    %cst_21 = arith.constant 3.200000e+01 : f32
    %54 = vector.broadcast %cst_21 : f32 to vector<32x1xf32>
    %55 = arith.divf %53, %54 : vector<32x1xf32>
    %56 = vector.broadcast %48 : vector<32x1xf32> to vector<32x32xf32>
    %57 = arith.subf %10, %56 : vector<32x32xf32>
    %cst_22 = arith.constant 9.99999974E-6 : f32
    %58 = vector.broadcast %cst_22 : f32 to vector<32x1xf32>
    %59 = arith.addf %55, %58 : vector<32x1xf32>
    %60 = math.rsqrt %59 : vector<32x1xf32>
    %61 = vector.broadcast %60 : vector<32x1xf32> to vector<32x32xf32>
    %62 = arith.mulf %57, %61 : vector<32x32xf32>
    %63 = vector.broadcast %42 : vector<1x32xf32> to vector<32x32xf32>
    %64 = arith.mulf %62, %63 : vector<32x32xf32>
    %65 = vector.broadcast %44 : vector<1x32xf32> to vector<32x32xf32>
    %66 = arith.addf %64, %65 : vector<32x32xf32>
    %67 = arith.truncf %66 : vector<32x32xf32> to vector<32x32xbf16>
    %c0_23 = arith.constant 0 : index
    %c0_24 = arith.constant 0 : index
    %c0_25 = arith.constant 0 : index
    %68 = vector.load %arg5[%c0_23, %c0_24, %c0_25] : memref<2x32x96xbf16, #tpu.memory_space<vmem>>, vector<1x32x96xbf16>
    %69 = vector.shape_cast %68 : vector<1x32x96xbf16> to vector<32x96xbf16>
    %cst_26 = arith.constant dense<0.000000e+00> : vector<32x96xf32>
    %70 = tpu.matmul %67, %69, %cst_26 {dimension_numbers = #tpu.dot_dimension_numbers<[1], [0], [0], [1], [0, 0, 1, 1], [], []>} : vector<32x32xbf16>, vector<32x96xbf16>, vector<32x96xf32> -> vector<32x96xf32>
    %71 = vector.extract_strided_slice %70 {offsets = [0, 0], sizes = [32, 32], strides = [1, 1]} : vector<32x96xf32> to vector<32x32xf32>
    %cst_27 = arith.constant 0.176776692 : f32
    %72 = vector.broadcast %cst_27 : f32 to vector<32x32xf32>
    %73 = arith.mulf %71, %72 : vector<32x32xf32>
    %74 = arith.truncf %73 : vector<32x32xf32> to vector<32x32xbf16>
    %75 = vector.extract_strided_slice %70 {offsets = [0, 32], sizes = [32, 32], strides = [1, 1]} : vector<32x96xf32> to vector<32x32xf32>
    %76 = arith.truncf %75 : vector<32x32xf32> to vector<32x32xbf16>
    %77 = vector.extract_strided_slice %70 {offsets = [0, 64], sizes = [32, 32], strides = [1, 1]} : vector<32x96xf32> to vector<32x32xf32>
    %78 = arith.truncf %77 : vector<32x32xf32> to vector<32x32xbf16>
    %79 = vector.extract_strided_slice %74 {offsets = [0, 0], sizes = [32, 4], strides = [1, 1]} : vector<32x32xbf16> to vector<32x4xbf16>
    %80 = vector.extract_strided_slice %76 {offsets = [0, 0], sizes = [32, 4], strides = [1, 1]} : vector<32x32xbf16> to vector<32x4xbf16>
    %cst_28 = arith.constant dense<0.000000e+00> : vector<32x32xf32>
    %81 = tpu.matmul %79, %80, %cst_28 {dimension_numbers = #tpu.dot_dimension_numbers<[1], [1], [0], [0], [0, 0, 1, 0], [], []>} : vector<32x4xbf16>, vector<32x4xbf16>, vector<32x32xf32> -> vector<32x32xf32>
    %82 = arith.addf %81, %40 : vector<32x32xf32>
    %cst_29 = arith.constant dense<0xFF800000> : vector<32xf32>
    %83 = vector.multi_reduction <maximumf>, %82, %cst_29 [1] : vector<32x32xf32> to vector<32xf32>
    %84 = vector.shape_cast %83 : vector<32xf32> to vector<32x1xf32>
    %85 = vector.broadcast %84 : vector<32x1xf32> to vector<32x32xf32>
    %86 = arith.subf %82, %85 : vector<32x32xf32>
    %87 = math.exp %86 : vector<32x32xf32>
    %cst_30 = arith.constant dense<0.000000e+00> : vector<32xf32>
    %88 = vector.multi_reduction <add>, %87, %cst_30 [1] : vector<32x32xf32> to vector<32xf32>
    %89 = vector.shape_cast %88 : vector<32xf32> to vector<32x1xf32>
    %90 = tpu.reciprocal %89 {approx = true} : vector<32x1xf32> -> vector<32x1xf32>
    %91 = vector.broadcast %90 : vector<32x1xf32> to vector<32x32xf32>
    %92 = arith.mulf %87, %91 : vector<32x32xf32>
    %93 = arith.truncf %92 : vector<32x32xf32> to vector<32x32xbf16>
    %94 = vector.extract_strided_slice %78 {offsets = [0, 0], sizes = [32, 4], strides = [1, 1]} : vector<32x32xbf16> to vector<32x4xbf16>
    %cst_31 = arith.constant dense<0.000000e+00> : vector<32x4xf32>
    %95 = tpu.matmul %93, %94, %cst_31 {dimension_numbers = #tpu.dot_dimension_numbers<[1], [0], [0], [1], [0, 0, 1, 1], [], []>} : vector<32x32xbf16>, vector<32x4xbf16>, vector<32x4xf32> -> vector<32x4xf32>
    %c0_32 = arith.constant 0 : index
    %c0_33 = arith.constant 0 : index
    %96 = vector.load %arg19[%c0_32, %c0_33] : memref<32x32xf32, #tpu.memory_space<vmem>>, vector<32x4xf32>
    tpu.vector_store %arg19[%c0_32, %c0_33], %95 {strides = array<i32>} : memref<32x32xf32, #tpu.memory_space<vmem>>, vector<32x4xf32>,
    %97 = vector.extract_strided_slice %74 {offsets = [0, 4], sizes = [32, 4], strides = [1, 1]} : vector<32x32xbf16> to vector<32x4xbf16>
    %98 = vector.extract_strided_slice %76 {offsets = [0, 4], sizes = [32, 4], strides = [1, 1]} : vector<32x32xbf16> to vector<32x4xbf16>
    %cst_34 = arith.constant dense<0.000000e+00> : vector<32x32xf32>
    %99 = tpu.matmul %97, %98, %cst_34 {dimension_numbers = #tpu.dot_dimension_numbers<[1], [1], [0], [0], [0, 0, 1, 0], [], []>} : vector<32x4xbf16>, vector<32x4xbf16>, vector<32x32xf32> -> vector<32x32xf32>
    %100 = arith.addf %99, %40 : vector<32x32xf32>
    %cst_35 = arith.constant dense<0xFF800000> : vector<32xf32>
    %101 = vector.multi_reduction <maximumf>, %100, %cst_35 [1] : vector<32x32xf32> to vector<32xf32>
    %102 = vector.shape_cast %101 : vector<32xf32> to vector<32x1xf32>
    %103 = vector.broadcast %102 : vector<32x1xf32> to vector<32x32xf32>
    %104 = arith.subf %100, %103 : vector<32x32xf32>
    %105 = math.exp %104 : vector<32x32xf32>
    %cst_36 = arith.constant dense<0.000000e+00> : vector<32xf32>
    %106 = vector.multi_reduction <add>, %105, %cst_36 [1] : vector<32x32xf32> to vector<32xf32>
    %107 = vector.shape_cast %106 : vector<32xf32> to vector<32x1xf32>
    %108 = tpu.reciprocal %107 {approx = true} : vector<32x1xf32> -> vector<32x1xf32>
    %109 = vector.broadcast %108 : vector<32x1xf32> to vector<32x32xf32>
    %110 = arith.mulf %105, %109 : vector<32x32xf32>
    %111 = arith.truncf %110 : vector<32x32xf32> to vector<32x32xbf16>
    %112 = vector.extract_strided_slice %78 {offsets = [0, 4], sizes = [32, 4], strides = [1, 1]} : vector<32x32xbf16> to vector<32x4xbf16>
    %cst_37 = arith.constant dense<0.000000e+00> : vector<32x4xf32>
    %113 = tpu.matmul %111, %112, %cst_37 {dimension_numbers = #tpu.dot_dimension_numbers<[1], [0], [0], [1], [0, 0, 1, 1], [], []>} : vector<32x32xbf16>, vector<32x4xbf16>, vector<32x4xf32> -> vector<32x4xf32>
    %c0_38 = arith.constant 0 : index
    %c4 = arith.constant 4 : index
    %114 = vector.load %arg19[%c0_38, %c4] : memref<32x32xf32, #tpu.memory_space<vmem>>, vector<32x4xf32>
    tpu.vector_store %arg19[%c0_38, %c4], %113 {strides = array<i32>} : memref<32x32xf32, #tpu.memory_space<vmem>>, vector<32x4xf32>,
    %115 = vector.extract_strided_slice %74 {offsets = [0, 8], sizes = [32, 4], strides = [1, 1]} : vector<32x32xbf16> to vector<32x4xbf16>
    %116 = vector.extract_strided_slice %76 {offsets = [0, 8], sizes = [32, 4], strides = [1, 1]} : vector<32x32xbf16> to vector<32x4xbf16>
    %cst_39 = arith.constant dense<0.000000e+00> : vector<32x32xf32>
    %117 = tpu.matmul %115, %116, %cst_39 {dimension_numbers = #tpu.dot_dimension_numbers<[1], [1], [0], [0], [0, 0, 1, 0], [], []>} : vector<32x4xbf16>, vector<32x4xbf16>, vector<32x32xf32> -> vector<32x32xf32>
    %118 = arith.addf %117, %40 : vector<32x32xf32>
    %cst_40 = arith.constant dense<0xFF800000> : vector<32xf32>
    %119 = vector.multi_reduction <maximumf>, %118, %cst_40 [1] : vector<32x32xf32> to vector<32xf32>
    %120 = vector.shape_cast %119 : vector<32xf32> to vector<32x1xf32>
    %121 = vector.broadcast %120 : vector<32x1xf32> to vector<32x32xf32>
    %122 = arith.subf %118, %121 : vector<32x32xf32>
    %123 = math.exp %122 : vector<32x32xf32>
    %cst_41 = arith.constant dense<0.000000e+00> : vector<32xf32>
    %124 = vector.multi_reduction <add>, %123, %cst_41 [1] : vector<32x32xf32> to vector<32xf32>
    %125 = vector.shape_cast %124 : vector<32xf32> to vector<32x1xf32>
    %126 = tpu.reciprocal %125 {approx = true} : vector<32x1xf32> -> vector<32x1xf32>
    %127 = vector.broadcast %126 : vector<32x1xf32> to vector<32x32xf32>
    %128 = arith.mulf %123, %127 : vector<32x32xf32>
    %129 = arith.truncf %128 : vector<32x32xf32> to vector<32x32xbf16>
    %130 = vector.extract_strided_slice %78 {offsets = [0, 8], sizes = [32, 4], strides = [1, 1]} : vector<32x32xbf16> to vector<32x4xbf16>
    %cst_42 = arith.constant dense<0.000000e+00> : vector<32x4xf32>
    %131 = tpu.matmul %129, %130, %cst_42 {dimension_numbers = #tpu.dot_dimension_numbers<[1], [0], [0], [1], [0, 0, 1, 1], [], []>} : vector<32x32xbf16>, vector<32x4xbf16>, vector<32x4xf32> -> vector<32x4xf32>
    %c0_43 = arith.constant 0 : index
    %c8 = arith.constant 8 : index
    %132 = vector.load %arg19[%c0_43, %c8] : memref<32x32xf32, #tpu.memory_space<vmem>>, vector<32x4xf32>
    tpu.vector_store %arg19[%c0_43, %c8], %131 {strides = array<i32>} : memref<32x32xf32, #tpu.memory_space<vmem>>, vector<32x4xf32>,
    %133 = vector.extract_strided_slice %74 {offsets = [0, 12], sizes = [32, 4], strides = [1, 1]} : vector<32x32xbf16> to vector<32x4xbf16>
    %134 = vector.extract_strided_slice %76 {offsets = [0, 12], sizes = [32, 4], strides = [1, 1]} : vector<32x32xbf16> to vector<32x4xbf16>
    %cst_44 = arith.constant dense<0.000000e+00> : vector<32x32xf32>
    %135 = tpu.matmul %133, %134, %cst_44 {dimension_numbers = #tpu.dot_dimension_numbers<[1], [1], [0], [0], [0, 0, 1, 0], [], []>} : vector<32x4xbf16>, vector<32x4xbf16>, vector<32x32xf32> -> vector<32x32xf32>
    %136 = arith.addf %135, %40 : vector<32x32xf32>
    %cst_45 = arith.constant dense<0xFF800000> : vector<32xf32>
    %137 = vector.multi_reduction <maximumf>, %136, %cst_45 [1] : vector<32x32xf32> to vector<32xf32>
    %138 = vector.shape_cast %137 : vector<32xf32> to vector<32x1xf32>
    %139 = vector.broadcast %138 : vector<32x1xf32> to vector<32x32xf32>
    %140 = arith.subf %136, %139 : vector<32x32xf32>
    %141 = math.exp %140 : vector<32x32xf32>
    %cst_46 = arith.constant dense<0.000000e+00> : vector<32xf32>
    %142 = vector.multi_reduction <add>, %141, %cst_46 [1] : vector<32x32xf32> to vector<32xf32>
    %143 = vector.shape_cast %142 : vector<32xf32> to vector<32x1xf32>
    %144 = tpu.reciprocal %143 {approx = true} : vector<32x1xf32> -> vector<32x1xf32>
    %145 = vector.broadcast %144 : vector<32x1xf32> to vector<32x32xf32>
    %146 = arith.mulf %141, %145 : vector<32x32xf32>
    %147 = arith.truncf %146 : vector<32x32xf32> to vector<32x32xbf16>
    %148 = vector.extract_strided_slice %78 {offsets = [0, 12], sizes = [32, 4], strides = [1, 1]} : vector<32x32xbf16> to vector<32x4xbf16>
    %cst_47 = arith.constant dense<0.000000e+00> : vector<32x4xf32>
    %149 = tpu.matmul %147, %148, %cst_47 {dimension_numbers = #tpu.dot_dimension_numbers<[1], [0], [0], [1], [0, 0, 1, 1], [], []>} : vector<32x32xbf16>, vector<32x4xbf16>, vector<32x4xf32> -> vector<32x4xf32>
    %c0_48 = arith.constant 0 : index
    %c12 = arith.constant 12 : index
    %150 = vector.load %arg19[%c0_48, %c12] : memref<32x32xf32, #tpu.memory_space<vmem>>, vector<32x4xf32>
    tpu.vector_store %arg19[%c0_48, %c12], %149 {strides = array<i32>} : memref<32x32xf32, #tpu.memory_space<vmem>>, vector<32x4xf32>,
    %151 = vector.extract_strided_slice %74 {offsets = [0, 16], sizes = [32, 4], strides = [1, 1]} : vector<32x32xbf16> to vector<32x4xbf16>
    %152 = vector.extract_strided_slice %76 {offsets = [0, 16], sizes = [32, 4], strides = [1, 1]} : vector<32x32xbf16> to vector<32x4xbf16>
    %cst_49 = arith.constant dense<0.000000e+00> : vector<32x32xf32>
    %153 = tpu.matmul %151, %152, %cst_49 {dimension_numbers = #tpu.dot_dimension_numbers<[1], [1], [0], [0], [0, 0, 1, 0], [], []>} : vector<32x4xbf16>, vector<32x4xbf16>, vector<32x32xf32> -> vector<32x32xf32>
    %154 = arith.addf %153, %40 : vector<32x32xf32>
    %cst_50 = arith.constant dense<0xFF800000> : vector<32xf32>
    %155 = vector.multi_reduction <maximumf>, %154, %cst_50 [1] : vector<32x32xf32> to vector<32xf32>
    %156 = vector.shape_cast %155 : vector<32xf32> to vector<32x1xf32>
    %157 = vector.broadcast %156 : vector<32x1xf32> to vector<32x32xf32>
    %158 = arith.subf %154, %157 : vector<32x32xf32>
    %159 = math.exp %158 : vector<32x32xf32>
    %cst_51 = arith.constant dense<0.000000e+00> : vector<32xf32>
    %160 = vector.multi_reduction <add>, %159, %cst_51 [1] : vector<32x32xf32> to vector<32xf32>
    %161 = vector.shape_cast %160 : vector<32xf32> to vector<32x1xf32>
    %162 = tpu.reciprocal %161 {approx = true} : vector<32x1xf32> -> vector<32x1xf32>
    %163 = vector.broadcast %162 : vector<32x1xf32> to vector<32x32xf32>
    %164 = arith.mulf %159, %163 : vector<32x32xf32>
    %165 = arith.truncf %164 : vector<32x32xf32> to vector<32x32xbf16>
    %166 = vector.extract_strided_slice %78 {offsets = [0, 16], sizes = [32, 4], strides = [1, 1]} : vector<32x32xbf16> to vector<32x4xbf16>
    %cst_52 = arith.constant dense<0.000000e+00> : vector<32x4xf32>
    %167 = tpu.matmul %165, %166, %cst_52 {dimension_numbers = #tpu.dot_dimension_numbers<[1], [0], [0], [1], [0, 0, 1, 1], [], []>} : vector<32x32xbf16>, vector<32x4xbf16>, vector<32x4xf32> -> vector<32x4xf32>
    %c0_53 = arith.constant 0 : index
    %c16 = arith.constant 16 : index
    %168 = vector.load %arg19[%c0_53, %c16] : memref<32x32xf32, #tpu.memory_space<vmem>>, vector<32x4xf32>
    tpu.vector_store %arg19[%c0_53, %c16], %167 {strides = array<i32>} : memref<32x32xf32, #tpu.memory_space<vmem>>, vector<32x4xf32>,
    %169 = vector.extract_strided_slice %74 {offsets = [0, 20], sizes = [32, 4], strides = [1, 1]} : vector<32x32xbf16> to vector<32x4xbf16>
    %170 = vector.extract_strided_slice %76 {offsets = [0, 20], sizes = [32, 4], strides = [1, 1]} : vector<32x32xbf16> to vector<32x4xbf16>
    %cst_54 = arith.constant dense<0.000000e+00> : vector<32x32xf32>
    %171 = tpu.matmul %169, %170, %cst_54 {dimension_numbers = #tpu.dot_dimension_numbers<[1], [1], [0], [0], [0, 0, 1, 0], [], []>} : vector<32x4xbf16>, vector<32x4xbf16>, vector<32x32xf32> -> vector<32x32xf32>
    %172 = arith.addf %171, %40 : vector<32x32xf32>
    %cst_55 = arith.constant dense<0xFF800000> : vector<32xf32>
    %173 = vector.multi_reduction <maximumf>, %172, %cst_55 [1] : vector<32x32xf32> to vector<32xf32>
    %174 = vector.shape_cast %173 : vector<32xf32> to vector<32x1xf32>
    %175 = vector.broadcast %174 : vector<32x1xf32> to vector<32x32xf32>
    %176 = arith.subf %172, %175 : vector<32x32xf32>
    %177 = math.exp %176 : vector<32x32xf32>
    %cst_56 = arith.constant dense<0.000000e+00> : vector<32xf32>
    %178 = vector.multi_reduction <add>, %177, %cst_56 [1] : vector<32x32xf32> to vector<32xf32>
    %179 = vector.shape_cast %178 : vector<32xf32> to vector<32x1xf32>
    %180 = tpu.reciprocal %179 {approx = true} : vector<32x1xf32> -> vector<32x1xf32>
    %181 = vector.broadcast %180 : vector<32x1xf32> to vector<32x32xf32>
    %182 = arith.mulf %177, %181 : vector<32x32xf32>
    %183 = arith.truncf %182 : vector<32x32xf32> to vector<32x32xbf16>
    %184 = vector.extract_strided_slice %78 {offsets = [0, 20], sizes = [32, 4], strides = [1, 1]} : vector<32x32xbf16> to vector<32x4xbf16>
    %cst_57 = arith.constant dense<0.000000e+00> : vector<32x4xf32>
    %185 = tpu.matmul %183, %184, %cst_57 {dimension_numbers = #tpu.dot_dimension_numbers<[1], [0], [0], [1], [0, 0, 1, 1], [], []>} : vector<32x32xbf16>, vector<32x4xbf16>, vector<32x4xf32> -> vector<32x4xf32>
    %c0_58 = arith.constant 0 : index
    %c20 = arith.constant 20 : index
    %186 = vector.load %arg19[%c0_58, %c20] : memref<32x32xf32, #tpu.memory_space<vmem>>, vector<32x4xf32>
    tpu.vector_store %arg19[%c0_58, %c20], %185 {strides = array<i32>} : memref<32x32xf32, #tpu.memory_space<vmem>>, vector<32x4xf32>,
    %187 = vector.extract_strided_slice %74 {offsets = [0, 24], sizes = [32, 4], strides = [1, 1]} : vector<32x32xbf16> to vector<32x4xbf16>
    %188 = vector.extract_strided_slice %76 {offsets = [0, 24], sizes = [32, 4], strides = [1, 1]} : vector<32x32xbf16> to vector<32x4xbf16>
    %cst_59 = arith.constant dense<0.000000e+00> : vector<32x32xf32>
    %189 = tpu.matmul %187, %188, %cst_59 {dimension_numbers = #tpu.dot_dimension_numbers<[1], [1], [0], [0], [0, 0, 1, 0], [], []>} : vector<32x4xbf16>, vector<32x4xbf16>, vector<32x32xf32> -> vector<32x32xf32>
    %190 = arith.addf %189, %40 : vector<32x32xf32>
    %cst_60 = arith.constant dense<0xFF800000> : vector<32xf32>
    %191 = vector.multi_reduction <maximumf>, %190, %cst_60 [1] : vector<32x32xf32> to vector<32xf32>
    %192 = vector.shape_cast %191 : vector<32xf32> to vector<32x1xf32>
    %193 = vector.broadcast %192 : vector<32x1xf32> to vector<32x32xf32>
    %194 = arith.subf %190, %193 : vector<32x32xf32>
    %195 = math.exp %194 : vector<32x32xf32>
    %cst_61 = arith.constant dense<0.000000e+00> : vector<32xf32>
    %196 = vector.multi_reduction <add>, %195, %cst_61 [1] : vector<32x32xf32> to vector<32xf32>
    %197 = vector.shape_cast %196 : vector<32xf32> to vector<32x1xf32>
    %198 = tpu.reciprocal %197 {approx = true} : vector<32x1xf32> -> vector<32x1xf32>
    %199 = vector.broadcast %198 : vector<32x1xf32> to vector<32x32xf32>
    %200 = arith.mulf %195, %199 : vector<32x32xf32>
    %201 = arith.truncf %200 : vector<32x32xf32> to vector<32x32xbf16>
    %202 = vector.extract_strided_slice %78 {offsets = [0, 24], sizes = [32, 4], strides = [1, 1]} : vector<32x32xbf16> to vector<32x4xbf16>
    %cst_62 = arith.constant dense<0.000000e+00> : vector<32x4xf32>
    %203 = tpu.matmul %201, %202, %cst_62 {dimension_numbers = #tpu.dot_dimension_numbers<[1], [0], [0], [1], [0, 0, 1, 1], [], []>} : vector<32x32xbf16>, vector<32x4xbf16>, vector<32x4xf32> -> vector<32x4xf32>
    %c0_63 = arith.constant 0 : index
    %c24 = arith.constant 24 : index
    %204 = vector.load %arg19[%c0_63, %c24] : memref<32x32xf32, #tpu.memory_space<vmem>>, vector<32x4xf32>
    tpu.vector_store %arg19[%c0_63, %c24], %203 {strides = array<i32>} : memref<32x32xf32, #tpu.memory_space<vmem>>, vector<32x4xf32>,
    %205 = vector.extract_strided_slice %74 {offsets = [0, 28], sizes = [32, 4], strides = [1, 1]} : vector<32x32xbf16> to vector<32x4xbf16>
    %206 = vector.extract_strided_slice %76 {offsets = [0, 28], sizes = [32, 4], strides = [1, 1]} : vector<32x32xbf16> to vector<32x4xbf16>
    %cst_64 = arith.constant dense<0.000000e+00> : vector<32x32xf32>
    %207 = tpu.matmul %205, %206, %cst_64 {dimension_numbers = #tpu.dot_dimension_numbers<[1], [1], [0], [0], [0, 0, 1, 0], [], []>} : vector<32x4xbf16>, vector<32x4xbf16>, vector<32x32xf32> -> vector<32x32xf32>
    %208 = arith.addf %207, %40 : vector<32x32xf32>
    %cst_65 = arith.constant dense<0xFF800000> : vector<32xf32>
    %209 = vector.multi_reduction <maximumf>, %208, %cst_65 [1] : vector<32x32xf32> to vector<32xf32>
    %210 = vector.shape_cast %209 : vector<32xf32> to vector<32x1xf32>
    %211 = vector.broadcast %210 : vector<32x1xf32> to vector<32x32xf32>
    %212 = arith.subf %208, %211 : vector<32x32xf32>
    %213 = math.exp %212 : vector<32x32xf32>
    %cst_66 = arith.constant dense<0.000000e+00> : vector<32xf32>
    %214 = vector.multi_reduction <add>, %213, %cst_66 [1] : vector<32x32xf32> to vector<32xf32>
    %215 = vector.shape_cast %214 : vector<32xf32> to vector<32x1xf32>
    %216 = tpu.reciprocal %215 {approx = true} : vector<32x1xf32> -> vector<32x1xf32>
    %217 = vector.broadcast %216 : vector<32x1xf32> to vector<32x32xf32>
    %218 = arith.mulf %213, %217 : vector<32x32xf32>
    %219 = arith.truncf %218 : vector<32x32xf32> to vector<32x32xbf16>
    %220 = vector.extract_strided_slice %78 {offsets = [0, 28], sizes = [32, 4], strides = [1, 1]} : vector<32x32xbf16> to vector<32x4xbf16>
    %cst_67 = arith.constant dense<0.000000e+00> : vector<32x4xf32>
    %221 = tpu.matmul %219, %220, %cst_67 {dimension_numbers = #tpu.dot_dimension_numbers<[1], [0], [0], [1], [0, 0, 1, 1], [], []>} : vector<32x32xbf16>, vector<32x4xbf16>, vector<32x4xf32> -> vector<32x4xf32>
    %c0_68 = arith.constant 0 : index
    %c28 = arith.constant 28 : index
    %222 = vector.load %arg19[%c0_68, %c28] : memref<32x32xf32, #tpu.memory_space<vmem>>, vector<32x4xf32>
    tpu.vector_store %arg19[%c0_68, %c28], %221 {strides = array<i32>} : memref<32x32xf32, #tpu.memory_space<vmem>>, vector<32x4xf32>,
    %c0_69 = arith.constant 0 : index
    %c0_70 = arith.constant 0 : index
    %223 = vector.load %arg19[%c0_69, %c0_70] : memref<32x32xf32, #tpu.memory_space<vmem>>, vector<32x32xf32>
    %224 = arith.truncf %223 : vector<32x32xf32> to vector<32x32xbf16>
    %c0_71 = arith.constant 0 : index
    %c0_72 = arith.constant 0 : index
    %c0_73 = arith.constant 0 : index
    %225 = vector.load %arg6[%c0_71, %c0_72, %c0_73] : memref<2x32x32xbf16, #tpu.memory_space<vmem>>, vector<1x32x32xbf16>
    %226 = vector.shape_cast %225 : vector<1x32x32xbf16> to vector<32x32xbf16>
    %cst_74 = arith.constant dense<0.000000e+00> : vector<32x32xf32>
    %227 = tpu.matmul %224, %226, %cst_74 {dimension_numbers = #tpu.dot_dimension_numbers<[1], [0], [0], [1], [0, 0, 1, 1], [], []>} : vector<32x32xbf16>, vector<32x32xbf16>, vector<32x32xf32> -> vector<32x32xf32>
    %c0_75 = arith.constant 0 : index
    %c0_76 = arith.constant 0 : index
    %c0_77 = arith.constant 0 : index
    %228 = vector.load %arg7[%c0_75, %c0_76, %c0_77] : memref<2x1x32xf32, #tpu.memory_space<vmem>>, vector<1x1x32xf32>
    %229 = vector.shape_cast %228 : vector<1x1x32xf32> to vector<1x32xf32>
    %230 = vector.broadcast %229 : vector<1x32xf32> to vector<32x32xf32>
    %231 = arith.addf %227, %230 : vector<32x32xf32>
    %232 = arith.addf %10, %231 : vector<32x32xf32>
    %c0_78 = arith.constant 0 : index
    %c0_79 = arith.constant 0 : index
    %c0_80 = arith.constant 0 : index
    %233 = vector.load %arg8[%c0_78, %c0_79, %c0_80] : memref<2x1x32xf32, #tpu.memory_space<vmem>>, vector<1x1x32xf32>
    %234 = vector.shape_cast %233 : vector<1x1x32xf32> to vector<1x32xf32>
    %c0_81 = arith.constant 0 : index
    %c0_82 = arith.constant 0 : index
    %c0_83 = arith.constant 0 : index
    %235 = vector.load %arg9[%c0_81, %c0_82, %c0_83] : memref<2x1x32xf32, #tpu.memory_space<vmem>>, vector<1x1x32xf32>
    %236 = vector.shape_cast %235 : vector<1x1x32xf32> to vector<1x32xf32>
    %cst_84 = arith.constant dense<0.000000e+00> : vector<32xf32>
    %237 = vector.multi_reduction <add>, %232, %cst_84 [1] : vector<32x32xf32> to vector<32xf32>
    %238 = vector.shape_cast %237 : vector<32xf32> to vector<32x1xf32>
    %cst_85 = arith.constant 3.200000e+01 : f32
    %239 = vector.broadcast %cst_85 : f32 to vector<32x1xf32>
    %240 = arith.divf %238, %239 : vector<32x1xf32>
    %241 = vector.broadcast %240 : vector<32x1xf32> to vector<32x32xf32>
    %242 = arith.subf %232, %241 : vector<32x32xf32>
    %243 = arith.mulf %242, %242 : vector<32x32xf32>
    %cst_86 = arith.constant dense<0.000000e+00> : vector<32xf32>
    %244 = vector.multi_reduction <add>, %243, %cst_86 [1] : vector<32x32xf32> to vector<32xf32>
    %245 = vector.shape_cast %244 : vector<32xf32> to vector<32x1xf32>
    %cst_87 = arith.constant 3.200000e+01 : f32
    %246 = vector.broadcast %cst_87 : f32 to vector<32x1xf32>
    %247 = arith.divf %245, %246 : vector<32x1xf32>
    %248 = vector.broadcast %240 : vector<32x1xf32> to vector<32x32xf32>
    %249 = arith.subf %232, %248 : vector<32x32xf32>
    %cst_88 = arith.constant 9.99999974E-6 : f32
    %250 = vector.broadcast %cst_88 : f32 to vector<32x1xf32>
    %251 = arith.addf %247, %250 : vector<32x1xf32>
    %252 = math.rsqrt %251 : vector<32x1xf32>
    %253 = vector.broadcast %252 : vector<32x1xf32> to vector<32x32xf32>
    %254 = arith.mulf %249, %253 : vector<32x32xf32>
    %255 = vector.broadcast %234 : vector<1x32xf32> to vector<32x32xf32>
    %256 = arith.mulf %254, %255 : vector<32x32xf32>
    %257 = vector.broadcast %236 : vector<1x32xf32> to vector<32x32xf32>
    %258 = arith.addf %256, %257 : vector<32x32xf32>
    %259 = arith.truncf %258 : vector<32x32xf32> to vector<32x32xbf16>
    %c0_89 = arith.constant 0 : index
    %c0_90 = arith.constant 0 : index
    %c0_91 = arith.constant 0 : index
    %260 = vector.load %arg10[%c0_89, %c0_90, %c0_91] : memref<2x32x128xbf16, #tpu.memory_space<vmem>>, vector<1x32x128xbf16>
    %261 = vector.shape_cast %260 : vector<1x32x128xbf16> to vector<32x128xbf16>
    %cst_92 = arith.constant dense<0.000000e+00> : vector<32x128xf32>
    %262 = tpu.matmul %259, %261, %cst_92 {dimension_numbers = #tpu.dot_dimension_numbers<[1], [0], [0], [1], [0, 0, 1, 1], [], []>} : vector<32x32xbf16>, vector<32x128xbf16>, vector<32x128xf32> -> vector<32x128xf32>
    %c0_93 = arith.constant 0 : index
    %c0_94 = arith.constant 0 : index
    %c0_95 = arith.constant 0 : index
    %263 = vector.load %arg11[%c0_93, %c0_94, %c0_95] : memref<2x1x128xf32, #tpu.memory_space<vmem>>, vector<1x1x128xf32>
    %264 = vector.shape_cast %263 : vector<1x1x128xf32> to vector<1x128xf32>
    %265 = vector.broadcast %264 : vector<1x128xf32> to vector<32x128xf32>
    %266 = arith.addf %262, %265 : vector<32x128xf32>
    %cst_96 = arith.constant 0.000000e+00 : f32
    %267 = vector.broadcast %cst_96 : f32 to vector<32x128xf32>
    %268 = arith.maximumf %266, %267 : vector<32x128xf32>
    %269 = arith.truncf %268 : vector<32x128xf32> to vector<32x128xbf16>
    %c0_97 = arith.constant 0 : index
    %c0_98 = arith.constant 0 : index
    %c0_99 = arith.constant 0 : index
    %270 = vector.load %arg12[%c0_97, %c0_98, %c0_99] : memref<2x128x32xbf16, #tpu.memory_space<vmem>>, vector<1x128x32xbf16>
    %271 = vector.shape_cast %270 : vector<1x128x32xbf16> to vector<128x32xbf16>
    %cst_100 = arith.constant dense<0.000000e+00> : vector<32x32xf32>
    %272 = tpu.matmul %269, %271, %cst_100 {dimension_numbers = #tpu.dot_dimension_numbers<[1], [0], [0], [1], [0, 0, 1, 1], [], []>} : vector<32x128xbf16>, vector<128x32xbf16>, vector<32x32xf32> -> vector<32x32xf32>
    %c0_101 = arith.constant 0 : index
    %c0_102 = arith.constant 0 : index
    %c0_103 = arith.constant 0 : index
    %273 = vector.load %arg13[%c0_101, %c0_102, %c0_103] : memref<2x1x32xf32, #tpu.memory_space<vmem>>, vector<1x1x32xf32>
    %274 = vector.shape_cast %273 : vector<1x1x32xf32> to vector<1x32xf32>
    %275 = vector.broadcast %274 : vector<1x32xf32> to vector<32x32xf32>
    %276 = arith.addf %272, %275 : vector<32x32xf32>
    %277 = arith.addf %232, %276 : vector<32x32xf32>
    %c1 = arith.constant 1 : index
    %c0_104 = arith.constant 0 : index
    %c0_105 = arith.constant 0 : index
    %278 = vector.load %arg3[%c1, %c0_104, %c0_105] : memref<2x1x32xf32, #tpu.memory_space<vmem>>, vector<1x1x32xf32>
    %279 = vector.shape_cast %278 : vector<1x1x32xf32> to vector<1x32xf32>
    %c1_106 = arith.constant 1 : index
    %c0_107 = arith.constant 0 : index
    %c0_108 = arith.constant 0 : index
    %280 = vector.load %arg4[%c1_106, %c0_107, %c0_108] : memref<2x1x32xf32, #tpu.memory_space<vmem>>, vector<1x1x32xf32>
    %281 = vector.shape_cast %280 : vector<1x1x32xf32> to vector<1x32xf32>
    %cst_109 = arith.constant dense<0.000000e+00> : vector<32xf32>
    %282 = vector.multi_reduction <add>, %277, %cst_109 [1] : vector<32x32xf32> to vector<32xf32>
    %283 = vector.shape_cast %282 : vector<32xf32> to vector<32x1xf32>
    %cst_110 = arith.constant 3.200000e+01 : f32
    %284 = vector.broadcast %cst_110 : f32 to vector<32x1xf32>
    %285 = arith.divf %283, %284 : vector<32x1xf32>
    %286 = vector.broadcast %285 : vector<32x1xf32> to vector<32x32xf32>
    %287 = arith.subf %277, %286 : vector<32x32xf32>
    %288 = arith.mulf %287, %287 : vector<32x32xf32>
    %cst_111 = arith.constant dense<0.000000e+00> : vector<32xf32>
    %289 = vector.multi_reduction <add>, %288, %cst_111 [1] : vector<32x32xf32> to vector<32xf32>
    %290 = vector.shape_cast %289 : vector<32xf32> to vector<32x1xf32>
    %cst_112 = arith.constant 3.200000e+01 : f32
    %291 = vector.broadcast %cst_112 : f32 to vector<32x1xf32>
    %292 = arith.divf %290, %291 : vector<32x1xf32>
    %293 = vector.broadcast %285 : vector<32x1xf32> to vector<32x32xf32>
    %294 = arith.subf %277, %293 : vector<32x32xf32>
    %cst_113 = arith.constant 9.99999974E-6 : f32
    %295 = vector.broadcast %cst_113 : f32 to vector<32x1xf32>
    %296 = arith.addf %292, %295 : vector<32x1xf32>
    %297 = math.rsqrt %296 : vector<32x1xf32>
    %298 = vector.broadcast %297 : vector<32x1xf32> to vector<32x32xf32>
    %299 = arith.mulf %294, %298 : vector<32x32xf32>
    %300 = vector.broadcast %279 : vector<1x32xf32> to vector<32x32xf32>
    %301 = arith.mulf %299, %300 : vector<32x32xf32>
    %302 = vector.broadcast %281 : vector<1x32xf32> to vector<32x32xf32>
    %303 = arith.addf %301, %302 : vector<32x32xf32>
    %304 = arith.truncf %303 : vector<32x32xf32> to vector<32x32xbf16>
    %c1_114 = arith.constant 1 : index
    %c0_115 = arith.constant 0 : index
    %c0_116 = arith.constant 0 : index
    %305 = vector.load %arg5[%c1_114, %c0_115, %c0_116] : memref<2x32x96xbf16, #tpu.memory_space<vmem>>, vector<1x32x96xbf16>
    %306 = vector.shape_cast %305 : vector<1x32x96xbf16> to vector<32x96xbf16>
    %cst_117 = arith.constant dense<0.000000e+00> : vector<32x96xf32>
    %307 = tpu.matmul %304, %306, %cst_117 {dimension_numbers = #tpu.dot_dimension_numbers<[1], [0], [0], [1], [0, 0, 1, 1], [], []>} : vector<32x32xbf16>, vector<32x96xbf16>, vector<32x96xf32> -> vector<32x96xf32>
    %308 = vector.extract_strided_slice %307 {offsets = [0, 0], sizes = [32, 32], strides = [1, 1]} : vector<32x96xf32> to vector<32x32xf32>
    %cst_118 = arith.constant 0.176776692 : f32
    %309 = vector.broadcast %cst_118 : f32 to vector<32x32xf32>
    %310 = arith.mulf %308, %309 : vector<32x32xf32>
    %311 = arith.truncf %310 : vector<32x32xf32> to vector<32x32xbf16>
    %312 = vector.extract_strided_slice %307 {offsets = [0, 32], sizes = [32, 32], strides = [1, 1]} : vector<32x96xf32> to vector<32x32xf32>
    %313 = arith.truncf %312 : vector<32x32xf32> to vector<32x32xbf16>
    %314 = vector.extract_strided_slice %307 {offsets = [0, 64], sizes = [32, 32], strides = [1, 1]} : vector<32x96xf32> to vector<32x32xf32>
    %315 = arith.truncf %314 : vector<32x32xf32> to vector<32x32xbf16>
    %316 = vector.extract_strided_slice %311 {offsets = [0, 0], sizes = [32, 4], strides = [1, 1]} : vector<32x32xbf16> to vector<32x4xbf16>
    %317 = vector.extract_strided_slice %313 {offsets = [0, 0], sizes = [32, 4], strides = [1, 1]} : vector<32x32xbf16> to vector<32x4xbf16>
    %cst_119 = arith.constant dense<0.000000e+00> : vector<32x32xf32>
    %318 = tpu.matmul %316, %317, %cst_119 {dimension_numbers = #tpu.dot_dimension_numbers<[1], [1], [0], [0], [0, 0, 1, 0], [], []>} : vector<32x4xbf16>, vector<32x4xbf16>, vector<32x32xf32> -> vector<32x32xf32>
    %319 = arith.addf %318, %40 : vector<32x32xf32>
    %cst_120 = arith.constant dense<0xFF800000> : vector<32xf32>
    %320 = vector.multi_reduction <maximumf>, %319, %cst_120 [1] : vector<32x32xf32> to vector<32xf32>
    %321 = vector.shape_cast %320 : vector<32xf32> to vector<32x1xf32>
    %322 = vector.broadcast %321 : vector<32x1xf32> to vector<32x32xf32>
    %323 = arith.subf %319, %322 : vector<32x32xf32>
    %324 = math.exp %323 : vector<32x32xf32>
    %cst_121 = arith.constant dense<0.000000e+00> : vector<32xf32>
    %325 = vector.multi_reduction <add>, %324, %cst_121 [1] : vector<32x32xf32> to vector<32xf32>
    %326 = vector.shape_cast %325 : vector<32xf32> to vector<32x1xf32>
    %327 = tpu.reciprocal %326 {approx = true} : vector<32x1xf32> -> vector<32x1xf32>
    %328 = vector.broadcast %327 : vector<32x1xf32> to vector<32x32xf32>
    %329 = arith.mulf %324, %328 : vector<32x32xf32>
    %330 = arith.truncf %329 : vector<32x32xf32> to vector<32x32xbf16>
    %331 = vector.extract_strided_slice %315 {offsets = [0, 0], sizes = [32, 4], strides = [1, 1]} : vector<32x32xbf16> to vector<32x4xbf16>
    %cst_122 = arith.constant dense<0.000000e+00> : vector<32x4xf32>
    %332 = tpu.matmul %330, %331, %cst_122 {dimension_numbers = #tpu.dot_dimension_numbers<[1], [0], [0], [1], [0, 0, 1, 1], [], []>} : vector<32x32xbf16>, vector<32x4xbf16>, vector<32x4xf32> -> vector<32x4xf32>
    %c0_123 = arith.constant 0 : index
    %c0_124 = arith.constant 0 : index
    %333 = vector.load %arg19[%c0_123, %c0_124] : memref<32x32xf32, #tpu.memory_space<vmem>>, vector<32x4xf32>
    tpu.vector_store %arg19[%c0_123, %c0_124], %332 {strides = array<i32>} : memref<32x32xf32, #tpu.memory_space<vmem>>, vector<32x4xf32>,
    %334 = vector.extract_strided_slice %311 {offsets = [0, 4], sizes = [32, 4], strides = [1, 1]} : vector<32x32xbf16> to vector<32x4xbf16>
    %335 = vector.extract_strided_slice %313 {offsets = [0, 4], sizes = [32, 4], strides = [1, 1]} : vector<32x32xbf16> to vector<32x4xbf16>
    %cst_125 = arith.constant dense<0.000000e+00> : vector<32x32xf32>
    %336 = tpu.matmul %334, %335, %cst_125 {dimension_numbers = #tpu.dot_dimension_numbers<[1], [1], [0], [0], [0, 0, 1, 0], [], []>} : vector<32x4xbf16>, vector<32x4xbf16>, vector<32x32xf32> -> vector<32x32xf32>
    %337 = arith.addf %336, %40 : vector<32x32xf32>
    %cst_126 = arith.constant dense<0xFF800000> : vector<32xf32>
    %338 = vector.multi_reduction <maximumf>, %337, %cst_126 [1] : vector<32x32xf32> to vector<32xf32>
    %339 = vector.shape_cast %338 : vector<32xf32> to vector<32x1xf32>
    %340 = vector.broadcast %339 : vector<32x1xf32> to vector<32x32xf32>
    %341 = arith.subf %337, %340 : vector<32x32xf32>
    %342 = math.exp %341 : vector<32x32xf32>
    %cst_127 = arith.constant dense<0.000000e+00> : vector<32xf32>
    %343 = vector.multi_reduction <add>, %342, %cst_127 [1] : vector<32x32xf32> to vector<32xf32>
    %344 = vector.shape_cast %343 : vector<32xf32> to vector<32x1xf32>
    %345 = tpu.reciprocal %344 {approx = true} : vector<32x1xf32> -> vector<32x1xf32>
    %346 = vector.broadcast %345 : vector<32x1xf32> to vector<32x32xf32>
    %347 = arith.mulf %342, %346 : vector<32x32xf32>
    %348 = arith.truncf %347 : vector<32x32xf32> to vector<32x32xbf16>
    %349 = vector.extract_strided_slice %315 {offsets = [0, 4], sizes = [32, 4], strides = [1, 1]} : vector<32x32xbf16> to vector<32x4xbf16>
    %cst_128 = arith.constant dense<0.000000e+00> : vector<32x4xf32>
    %350 = tpu.matmul %348, %349, %cst_128 {dimension_numbers = #tpu.dot_dimension_numbers<[1], [0], [0], [1], [0, 0, 1, 1], [], []>} : vector<32x32xbf16>, vector<32x4xbf16>, vector<32x4xf32> -> vector<32x4xf32>
    %c0_129 = arith.constant 0 : index
    %c4_130 = arith.constant 4 : index
    %351 = vector.load %arg19[%c0_129, %c4_130] : memref<32x32xf32, #tpu.memory_space<vmem>>, vector<32x4xf32>
    tpu.vector_store %arg19[%c0_129, %c4_130], %350 {strides = array<i32>} : memref<32x32xf32, #tpu.memory_space<vmem>>, vector<32x4xf32>,
    %352 = vector.extract_strided_slice %311 {offsets = [0, 8], sizes = [32, 4], strides = [1, 1]} : vector<32x32xbf16> to vector<32x4xbf16>
    %353 = vector.extract_strided_slice %313 {offsets = [0, 8], sizes = [32, 4], strides = [1, 1]} : vector<32x32xbf16> to vector<32x4xbf16>
    %cst_131 = arith.constant dense<0.000000e+00> : vector<32x32xf32>
    %354 = tpu.matmul %352, %353, %cst_131 {dimension_numbers = #tpu.dot_dimension_numbers<[1], [1], [0], [0], [0, 0, 1, 0], [], []>} : vector<32x4xbf16>, vector<32x4xbf16>, vector<32x32xf32> -> vector<32x32xf32>
    %355 = arith.addf %354, %40 : vector<32x32xf32>
    %cst_132 = arith.constant dense<0xFF800000> : vector<32xf32>
    %356 = vector.multi_reduction <maximumf>, %355, %cst_132 [1] : vector<32x32xf32> to vector<32xf32>
    %357 = vector.shape_cast %356 : vector<32xf32> to vector<32x1xf32>
    %358 = vector.broadcast %357 : vector<32x1xf32> to vector<32x32xf32>
    %359 = arith.subf %355, %358 : vector<32x32xf32>
    %360 = math.exp %359 : vector<32x32xf32>
    %cst_133 = arith.constant dense<0.000000e+00> : vector<32xf32>
    %361 = vector.multi_reduction <add>, %360, %cst_133 [1] : vector<32x32xf32> to vector<32xf32>
    %362 = vector.shape_cast %361 : vector<32xf32> to vector<32x1xf32>
    %363 = tpu.reciprocal %362 {approx = true} : vector<32x1xf32> -> vector<32x1xf32>
    %364 = vector.broadcast %363 : vector<32x1xf32> to vector<32x32xf32>
    %365 = arith.mulf %360, %364 : vector<32x32xf32>
    %366 = arith.truncf %365 : vector<32x32xf32> to vector<32x32xbf16>
    %367 = vector.extract_strided_slice %315 {offsets = [0, 8], sizes = [32, 4], strides = [1, 1]} : vector<32x32xbf16> to vector<32x4xbf16>
    %cst_134 = arith.constant dense<0.000000e+00> : vector<32x4xf32>
    %368 = tpu.matmul %366, %367, %cst_134 {dimension_numbers = #tpu.dot_dimension_numbers<[1], [0], [0], [1], [0, 0, 1, 1], [], []>} : vector<32x32xbf16>, vector<32x4xbf16>, vector<32x4xf32> -> vector<32x4xf32>
    %c0_135 = arith.constant 0 : index
    %c8_136 = arith.constant 8 : index
    %369 = vector.load %arg19[%c0_135, %c8_136] : memref<32x32xf32, #tpu.memory_space<vmem>>, vector<32x4xf32>
    tpu.vector_store %arg19[%c0_135, %c8_136], %368 {strides = array<i32>} : memref<32x32xf32, #tpu.memory_space<vmem>>, vector<32x4xf32>,
    %370 = vector.extract_strided_slice %311 {offsets = [0, 12], sizes = [32, 4], strides = [1, 1]} : vector<32x32xbf16> to vector<32x4xbf16>
    %371 = vector.extract_strided_slice %313 {offsets = [0, 12], sizes = [32, 4], strides = [1, 1]} : vector<32x32xbf16> to vector<32x4xbf16>
    %cst_137 = arith.constant dense<0.000000e+00> : vector<32x32xf32>
    %372 = tpu.matmul %370, %371, %cst_137 {dimension_numbers = #tpu.dot_dimension_numbers<[1], [1], [0], [0], [0, 0, 1, 0], [], []>} : vector<32x4xbf16>, vector<32x4xbf16>, vector<32x32xf32> -> vector<32x32xf32>
    %373 = arith.addf %372, %40 : vector<32x32xf32>
    %cst_138 = arith.constant dense<0xFF800000> : vector<32xf32>
    %374 = vector.multi_reduction <maximumf>, %373, %cst_138 [1] : vector<32x32xf32> to vector<32xf32>
    %375 = vector.shape_cast %374 : vector<32xf32> to vector<32x1xf32>
    %376 = vector.broadcast %375 : vector<32x1xf32> to vector<32x32xf32>
    %377 = arith.subf %373, %376 : vector<32x32xf32>
    %378 = math.exp %377 : vector<32x32xf32>
    %cst_139 = arith.constant dense<0.000000e+00> : vector<32xf32>
    %379 = vector.multi_reduction <add>, %378, %cst_139 [1] : vector<32x32xf32> to vector<32xf32>
    %380 = vector.shape_cast %379 : vector<32xf32> to vector<32x1xf32>
    %381 = tpu.reciprocal %380 {approx = true} : vector<32x1xf32> -> vector<32x1xf32>
    %382 = vector.broadcast %381 : vector<32x1xf32> to vector<32x32xf32>
    %383 = arith.mulf %378, %382 : vector<32x32xf32>
    %384 = arith.truncf %383 : vector<32x32xf32> to vector<32x32xbf16>
    %385 = vector.extract_strided_slice %315 {offsets = [0, 12], sizes = [32, 4], strides = [1, 1]} : vector<32x32xbf16> to vector<32x4xbf16>
    %cst_140 = arith.constant dense<0.000000e+00> : vector<32x4xf32>
    %386 = tpu.matmul %384, %385, %cst_140 {dimension_numbers = #tpu.dot_dimension_numbers<[1], [0], [0], [1], [0, 0, 1, 1], [], []>} : vector<32x32xbf16>, vector<32x4xbf16>, vector<32x4xf32> -> vector<32x4xf32>
    %c0_141 = arith.constant 0 : index
    %c12_142 = arith.constant 12 : index
    %387 = vector.load %arg19[%c0_141, %c12_142] : memref<32x32xf32, #tpu.memory_space<vmem>>, vector<32x4xf32>
    tpu.vector_store %arg19[%c0_141, %c12_142], %386 {strides = array<i32>} : memref<32x32xf32, #tpu.memory_space<vmem>>, vector<32x4xf32>,
    %388 = vector.extract_strided_slice %311 {offsets = [0, 16], sizes = [32, 4], strides = [1, 1]} : vector<32x32xbf16> to vector<32x4xbf16>
    %389 = vector.extract_strided_slice %313 {offsets = [0, 16], sizes = [32, 4], strides = [1, 1]} : vector<32x32xbf16> to vector<32x4xbf16>
    %cst_143 = arith.constant dense<0.000000e+00> : vector<32x32xf32>
    %390 = tpu.matmul %388, %389, %cst_143 {dimension_numbers = #tpu.dot_dimension_numbers<[1], [1], [0], [0], [0, 0, 1, 0], [], []>} : vector<32x4xbf16>, vector<32x4xbf16>, vector<32x32xf32> -> vector<32x32xf32>
    %391 = arith.addf %390, %40 : vector<32x32xf32>
    %cst_144 = arith.constant dense<0xFF800000> : vector<32xf32>
    %392 = vector.multi_reduction <maximumf>, %391, %cst_144 [1] : vector<32x32xf32> to vector<32xf32>
    %393 = vector.shape_cast %392 : vector<32xf32> to vector<32x1xf32>
    %394 = vector.broadcast %393 : vector<32x1xf32> to vector<32x32xf32>
    %395 = arith.subf %391, %394 : vector<32x32xf32>
    %396 = math.exp %395 : vector<32x32xf32>
    %cst_145 = arith.constant dense<0.000000e+00> : vector<32xf32>
    %397 = vector.multi_reduction <add>, %396, %cst_145 [1] : vector<32x32xf32> to vector<32xf32>
    %398 = vector.shape_cast %397 : vector<32xf32> to vector<32x1xf32>
    %399 = tpu.reciprocal %398 {approx = true} : vector<32x1xf32> -> vector<32x1xf32>
    %400 = vector.broadcast %399 : vector<32x1xf32> to vector<32x32xf32>
    %401 = arith.mulf %396, %400 : vector<32x32xf32>
    %402 = arith.truncf %401 : vector<32x32xf32> to vector<32x32xbf16>
    %403 = vector.extract_strided_slice %315 {offsets = [0, 16], sizes = [32, 4], strides = [1, 1]} : vector<32x32xbf16> to vector<32x4xbf16>
    %cst_146 = arith.constant dense<0.000000e+00> : vector<32x4xf32>
    %404 = tpu.matmul %402, %403, %cst_146 {dimension_numbers = #tpu.dot_dimension_numbers<[1], [0], [0], [1], [0, 0, 1, 1], [], []>} : vector<32x32xbf16>, vector<32x4xbf16>, vector<32x4xf32> -> vector<32x4xf32>
    %c0_147 = arith.constant 0 : index
    %c16_148 = arith.constant 16 : index
    %405 = vector.load %arg19[%c0_147, %c16_148] : memref<32x32xf32, #tpu.memory_space<vmem>>, vector<32x4xf32>
    tpu.vector_store %arg19[%c0_147, %c16_148], %404 {strides = array<i32>} : memref<32x32xf32, #tpu.memory_space<vmem>>, vector<32x4xf32>,
    %406 = vector.extract_strided_slice %311 {offsets = [0, 20], sizes = [32, 4], strides = [1, 1]} : vector<32x32xbf16> to vector<32x4xbf16>
    %407 = vector.extract_strided_slice %313 {offsets = [0, 20], sizes = [32, 4], strides = [1, 1]} : vector<32x32xbf16> to vector<32x4xbf16>
    %cst_149 = arith.constant dense<0.000000e+00> : vector<32x32xf32>
    %408 = tpu.matmul %406, %407, %cst_149 {dimension_numbers = #tpu.dot_dimension_numbers<[1], [1], [0], [0], [0, 0, 1, 0], [], []>} : vector<32x4xbf16>, vector<32x4xbf16>, vector<32x32xf32> -> vector<32x32xf32>
    %409 = arith.addf %408, %40 : vector<32x32xf32>
    %cst_150 = arith.constant dense<0xFF800000> : vector<32xf32>
    %410 = vector.multi_reduction <maximumf>, %409, %cst_150 [1] : vector<32x32xf32> to vector<32xf32>
    %411 = vector.shape_cast %410 : vector<32xf32> to vector<32x1xf32>
    %412 = vector.broadcast %411 : vector<32x1xf32> to vector<32x32xf32>
    %413 = arith.subf %409, %412 : vector<32x32xf32>
    %414 = math.exp %413 : vector<32x32xf32>
    %cst_151 = arith.constant dense<0.000000e+00> : vector<32xf32>
    %415 = vector.multi_reduction <add>, %414, %cst_151 [1] : vector<32x32xf32> to vector<32xf32>
    %416 = vector.shape_cast %415 : vector<32xf32> to vector<32x1xf32>
    %417 = tpu.reciprocal %416 {approx = true} : vector<32x1xf32> -> vector<32x1xf32>
    %418 = vector.broadcast %417 : vector<32x1xf32> to vector<32x32xf32>
    %419 = arith.mulf %414, %418 : vector<32x32xf32>
    %420 = arith.truncf %419 : vector<32x32xf32> to vector<32x32xbf16>
    %421 = vector.extract_strided_slice %315 {offsets = [0, 20], sizes = [32, 4], strides = [1, 1]} : vector<32x32xbf16> to vector<32x4xbf16>
    %cst_152 = arith.constant dense<0.000000e+00> : vector<32x4xf32>
    %422 = tpu.matmul %420, %421, %cst_152 {dimension_numbers = #tpu.dot_dimension_numbers<[1], [0], [0], [1], [0, 0, 1, 1], [], []>} : vector<32x32xbf16>, vector<32x4xbf16>, vector<32x4xf32> -> vector<32x4xf32>
    %c0_153 = arith.constant 0 : index
    %c20_154 = arith.constant 20 : index
    %423 = vector.load %arg19[%c0_153, %c20_154] : memref<32x32xf32, #tpu.memory_space<vmem>>, vector<32x4xf32>
    tpu.vector_store %arg19[%c0_153, %c20_154], %422 {strides = array<i32>} : memref<32x32xf32, #tpu.memory_space<vmem>>, vector<32x4xf32>,
    %424 = vector.extract_strided_slice %311 {offsets = [0, 24], sizes = [32, 4], strides = [1, 1]} : vector<32x32xbf16> to vector<32x4xbf16>
    %425 = vector.extract_strided_slice %313 {offsets = [0, 24], sizes = [32, 4], strides = [1, 1]} : vector<32x32xbf16> to vector<32x4xbf16>
    %cst_155 = arith.constant dense<0.000000e+00> : vector<32x32xf32>
    %426 = tpu.matmul %424, %425, %cst_155 {dimension_numbers = #tpu.dot_dimension_numbers<[1], [1], [0], [0], [0, 0, 1, 0], [], []>} : vector<32x4xbf16>, vector<32x4xbf16>, vector<32x32xf32> -> vector<32x32xf32>
    %427 = arith.addf %426, %40 : vector<32x32xf32>
    %cst_156 = arith.constant dense<0xFF800000> : vector<32xf32>
    %428 = vector.multi_reduction <maximumf>, %427, %cst_156 [1] : vector<32x32xf32> to vector<32xf32>
    %429 = vector.shape_cast %428 : vector<32xf32> to vector<32x1xf32>
    %430 = vector.broadcast %429 : vector<32x1xf32> to vector<32x32xf32>
    %431 = arith.subf %427, %430 : vector<32x32xf32>
    %432 = math.exp %431 : vector<32x32xf32>
    %cst_157 = arith.constant dense<0.000000e+00> : vector<32xf32>
    %433 = vector.multi_reduction <add>, %432, %cst_157 [1] : vector<32x32xf32> to vector<32xf32>
    %434 = vector.shape_cast %433 : vector<32xf32> to vector<32x1xf32>
    %435 = tpu.reciprocal %434 {approx = true} : vector<32x1xf32> -> vector<32x1xf32>
    %436 = vector.broadcast %435 : vector<32x1xf32> to vector<32x32xf32>
    %437 = arith.mulf %432, %436 : vector<32x32xf32>
    %438 = arith.truncf %437 : vector<32x32xf32> to vector<32x32xbf16>
    %439 = vector.extract_strided_slice %315 {offsets = [0, 24], sizes = [32, 4], strides = [1, 1]} : vector<32x32xbf16> to vector<32x4xbf16>
    %cst_158 = arith.constant dense<0.000000e+00> : vector<32x4xf32>
    %440 = tpu.matmul %438, %439, %cst_158 {dimension_numbers = #tpu.dot_dimension_numbers<[1], [0], [0], [1], [0, 0, 1, 1], [], []>} : vector<32x32xbf16>, vector<32x4xbf16>, vector<32x4xf32> -> vector<32x4xf32>
    %c0_159 = arith.constant 0 : index
    %c24_160 = arith.constant 24 : index
    %441 = vector.load %arg19[%c0_159, %c24_160] : memref<32x32xf32, #tpu.memory_space<vmem>>, vector<32x4xf32>
    tpu.vector_store %arg19[%c0_159, %c24_160], %440 {strides = array<i32>} : memref<32x32xf32, #tpu.memory_space<vmem>>, vector<32x4xf32>,
    %442 = vector.extract_strided_slice %311 {offsets = [0, 28], sizes = [32, 4], strides = [1, 1]} : vector<32x32xbf16> to vector<32x4xbf16>
    %443 = vector.extract_strided_slice %313 {offsets = [0, 28], sizes = [32, 4], strides = [1, 1]} : vector<32x32xbf16> to vector<32x4xbf16>
    %cst_161 = arith.constant dense<0.000000e+00> : vector<32x32xf32>
    %444 = tpu.matmul %442, %443, %cst_161 {dimension_numbers = #tpu.dot_dimension_numbers<[1], [1], [0], [0], [0, 0, 1, 0], [], []>} : vector<32x4xbf16>, vector<32x4xbf16>, vector<32x32xf32> -> vector<32x32xf32>
    %445 = arith.addf %444, %40 : vector<32x32xf32>
    %cst_162 = arith.constant dense<0xFF800000> : vector<32xf32>
    %446 = vector.multi_reduction <maximumf>, %445, %cst_162 [1] : vector<32x32xf32> to vector<32xf32>
    %447 = vector.shape_cast %446 : vector<32xf32> to vector<32x1xf32>
    %448 = vector.broadcast %447 : vector<32x1xf32> to vector<32x32xf32>
    %449 = arith.subf %445, %448 : vector<32x32xf32>
    %450 = math.exp %449 : vector<32x32xf32>
    %cst_163 = arith.constant dense<0.000000e+00> : vector<32xf32>
    %451 = vector.multi_reduction <add>, %450, %cst_163 [1] : vector<32x32xf32> to vector<32xf32>
    %452 = vector.shape_cast %451 : vector<32xf32> to vector<32x1xf32>
    %453 = tpu.reciprocal %452 {approx = true} : vector<32x1xf32> -> vector<32x1xf32>
    %454 = vector.broadcast %453 : vector<32x1xf32> to vector<32x32xf32>
    %455 = arith.mulf %450, %454 : vector<32x32xf32>
    %456 = arith.truncf %455 : vector<32x32xf32> to vector<32x32xbf16>
    %457 = vector.extract_strided_slice %315 {offsets = [0, 28], sizes = [32, 4], strides = [1, 1]} : vector<32x32xbf16> to vector<32x4xbf16>
    %cst_164 = arith.constant dense<0.000000e+00> : vector<32x4xf32>
    %458 = tpu.matmul %456, %457, %cst_164 {dimension_numbers = #tpu.dot_dimension_numbers<[1], [0], [0], [1], [0, 0, 1, 1], [], []>} : vector<32x32xbf16>, vector<32x4xbf16>, vector<32x4xf32> -> vector<32x4xf32>
    %c0_165 = arith.constant 0 : index
    %c28_166 = arith.constant 28 : index
    %459 = vector.load %arg19[%c0_165, %c28_166] : memref<32x32xf32, #tpu.memory_space<vmem>>, vector<32x4xf32>
    tpu.vector_store %arg19[%c0_165, %c28_166], %458 {strides = array<i32>} : memref<32x32xf32, #tpu.memory_space<vmem>>, vector<32x4xf32>,
    %c0_167 = arith.constant 0 : index
    %c0_168 = arith.constant 0 : index
    %460 = vector.load %arg19[%c0_167, %c0_168] : memref<32x32xf32, #tpu.memory_space<vmem>>, vector<32x32xf32>
    %461 = arith.truncf %460 : vector<32x32xf32> to vector<32x32xbf16>
    %c1_169 = arith.constant 1 : index
    %c0_170 = arith.constant 0 : index
    %c0_171 = arith.constant 0 : index
    %462 = vector.load %arg6[%c1_169, %c0_170, %c0_171] : memref<2x32x32xbf16, #tpu.memory_space<vmem>>, vector<1x32x32xbf16>
    %463 = vector.shape_cast %462 : vector<1x32x32xbf16> to vector<32x32xbf16>
    %cst_172 = arith.constant dense<0.000000e+00> : vector<32x32xf32>
    %464 = tpu.matmul %461, %463, %cst_172 {dimension_numbers = #tpu.dot_dimension_numbers<[1], [0], [0], [1], [0, 0, 1, 1], [], []>} : vector<32x32xbf16>, vector<32x32xbf16>, vector<32x32xf32> -> vector<32x32xf32>
    %c1_173 = arith.constant 1 : index
    %c0_174 = arith.constant 0 : index
    %c0_175 = arith.constant 0 : index
    %465 = vector.load %arg7[%c1_173, %c0_174, %c0_175] : memref<2x1x32xf32, #tpu.memory_space<vmem>>, vector<1x1x32xf32>
    %466 = vector.shape_cast %465 : vector<1x1x32xf32> to vector<1x32xf32>
    %467 = vector.broadcast %466 : vector<1x32xf32> to vector<32x32xf32>
    %468 = arith.addf %464, %467 : vector<32x32xf32>
    %469 = arith.addf %277, %468 : vector<32x32xf32>
    %c1_176 = arith.constant 1 : index
    %c0_177 = arith.constant 0 : index
    %c0_178 = arith.constant 0 : index
    %470 = vector.load %arg8[%c1_176, %c0_177, %c0_178] : memref<2x1x32xf32, #tpu.memory_space<vmem>>, vector<1x1x32xf32>
    %471 = vector.shape_cast %470 : vector<1x1x32xf32> to vector<1x32xf32>
    %c1_179 = arith.constant 1 : index
    %c0_180 = arith.constant 0 : index
    %c0_181 = arith.constant 0 : index
    %472 = vector.load %arg9[%c1_179, %c0_180, %c0_181] : memref<2x1x32xf32, #tpu.memory_space<vmem>>, vector<1x1x32xf32>
    %473 = vector.shape_cast %472 : vector<1x1x32xf32> to vector<1x32xf32>
    %cst_182 = arith.constant dense<0.000000e+00> : vector<32xf32>
    %474 = vector.multi_reduction <add>, %469, %cst_182 [1] : vector<32x32xf32> to vector<32xf32>
    %475 = vector.shape_cast %474 : vector<32xf32> to vector<32x1xf32>
    %cst_183 = arith.constant 3.200000e+01 : f32
    %476 = vector.broadcast %cst_183 : f32 to vector<32x1xf32>
    %477 = arith.divf %475, %476 : vector<32x1xf32>
    %478 = vector.broadcast %477 : vector<32x1xf32> to vector<32x32xf32>
    %479 = arith.subf %469, %478 : vector<32x32xf32>
    %480 = arith.mulf %479, %479 : vector<32x32xf32>
    %cst_184 = arith.constant dense<0.000000e+00> : vector<32xf32>
    %481 = vector.multi_reduction <add>, %480, %cst_184 [1] : vector<32x32xf32> to vector<32xf32>
    %482 = vector.shape_cast %481 : vector<32xf32> to vector<32x1xf32>
    %cst_185 = arith.constant 3.200000e+01 : f32
    %483 = vector.broadcast %cst_185 : f32 to vector<32x1xf32>
    %484 = arith.divf %482, %483 : vector<32x1xf32>
    %485 = vector.broadcast %477 : vector<32x1xf32> to vector<32x32xf32>
    %486 = arith.subf %469, %485 : vector<32x32xf32>
    %cst_186 = arith.constant 9.99999974E-6 : f32
    %487 = vector.broadcast %cst_186 : f32 to vector<32x1xf32>
    %488 = arith.addf %484, %487 : vector<32x1xf32>
    %489 = math.rsqrt %488 : vector<32x1xf32>
    %490 = vector.broadcast %489 : vector<32x1xf32> to vector<32x32xf32>
    %491 = arith.mulf %486, %490 : vector<32x32xf32>
    %492 = vector.broadcast %471 : vector<1x32xf32> to vector<32x32xf32>
    %493 = arith.mulf %491, %492 : vector<32x32xf32>
    %494 = vector.broadcast %473 : vector<1x32xf32> to vector<32x32xf32>
    %495 = arith.addf %493, %494 : vector<32x32xf32>
    %496 = arith.truncf %495 : vector<32x32xf32> to vector<32x32xbf16>
    %c1_187 = arith.constant 1 : index
    %c0_188 = arith.constant 0 : index
    %c0_189 = arith.constant 0 : index
    %497 = vector.load %arg10[%c1_187, %c0_188, %c0_189] : memref<2x32x128xbf16, #tpu.memory_space<vmem>>, vector<1x32x128xbf16>
    %498 = vector.shape_cast %497 : vector<1x32x128xbf16> to vector<32x128xbf16>
    %cst_190 = arith.constant dense<0.000000e+00> : vector<32x128xf32>
    %499 = tpu.matmul %496, %498, %cst_190 {dimension_numbers = #tpu.dot_dimension_numbers<[1], [0], [0], [1], [0, 0, 1, 1], [], []>} : vector<32x32xbf16>, vector<32x128xbf16>, vector<32x128xf32> -> vector<32x128xf32>
    %c1_191 = arith.constant 1 : index
    %c0_192 = arith.constant 0 : index
    %c0_193 = arith.constant 0 : index
    %500 = vector.load %arg11[%c1_191, %c0_192, %c0_193] : memref<2x1x128xf32, #tpu.memory_space<vmem>>, vector<1x1x128xf32>
    %501 = vector.shape_cast %500 : vector<1x1x128xf32> to vector<1x128xf32>
    %502 = vector.broadcast %501 : vector<1x128xf32> to vector<32x128xf32>
    %503 = arith.addf %499, %502 : vector<32x128xf32>
    %cst_194 = arith.constant 0.000000e+00 : f32
    %504 = vector.broadcast %cst_194 : f32 to vector<32x128xf32>
    %505 = arith.maximumf %503, %504 : vector<32x128xf32>
    %506 = arith.truncf %505 : vector<32x128xf32> to vector<32x128xbf16>
    %c1_195 = arith.constant 1 : index
    %c0_196 = arith.constant 0 : index
    %c0_197 = arith.constant 0 : index
    %507 = vector.load %arg12[%c1_195, %c0_196, %c0_197] : memref<2x128x32xbf16, #tpu.memory_space<vmem>>, vector<1x128x32xbf16>
    %508 = vector.shape_cast %507 : vector<1x128x32xbf16> to vector<128x32xbf16>
    %cst_198 = arith.constant dense<0.000000e+00> : vector<32x32xf32>
    %509 = tpu.matmul %506, %508, %cst_198 {dimension_numbers = #tpu.dot_dimension_numbers<[1], [0], [0], [1], [0, 0, 1, 1], [], []>} : vector<32x128xbf16>, vector<128x32xbf16>, vector<32x32xf32> -> vector<32x32xf32>
    %c1_199 = arith.constant 1 : index
    %c0_200 = arith.constant 0 : index
    %c0_201 = arith.constant 0 : index
    %510 = vector.load %arg13[%c1_199, %c0_200, %c0_201] : memref<2x1x32xf32, #tpu.memory_space<vmem>>, vector<1x1x32xf32>
    %511 = vector.shape_cast %510 : vector<1x1x32xf32> to vector<1x32xf32>
    %512 = vector.broadcast %511 : vector<1x32xf32> to vector<32x32xf32>
    %513 = arith.addf %509, %512 : vector<32x32xf32>
    %514 = arith.addf %469, %513 : vector<32x32xf32>
    %c0_202 = arith.constant 0 : index
    %c0_203 = arith.constant 0 : index
    %515 = vector.load %arg14[%c0_202, %c0_203] : memref<1x32xf32, #tpu.memory_space<vmem>>, vector<1x32xf32>
    %c0_204 = arith.constant 0 : index
    %c0_205 = arith.constant 0 : index
    %516 = vector.load %arg15[%c0_204, %c0_205] : memref<1x32xf32, #tpu.memory_space<vmem>>, vector<1x32xf32>
    %cst_206 = arith.constant dense<0.000000e+00> : vector<32xf32>
    %517 = vector.multi_reduction <add>, %514, %cst_206 [1] : vector<32x32xf32> to vector<32xf32>
    %518 = vector.shape_cast %517 : vector<32xf32> to vector<32x1xf32>
    %cst_207 = arith.constant 3.200000e+01 : f32
    %519 = vector.broadcast %cst_207 : f32 to vector<32x1xf32>
    %520 = arith.divf %518, %519 : vector<32x1xf32>
    %521 = vector.broadcast %520 : vector<32x1xf32> to vector<32x32xf32>
    %522 = arith.subf %514, %521 : vector<32x32xf32>
    %523 = arith.mulf %522, %522 : vector<32x32xf32>
    %cst_208 = arith.constant dense<0.000000e+00> : vector<32xf32>
    %524 = vector.multi_reduction <add>, %523, %cst_208 [1] : vector<32x32xf32> to vector<32xf32>
    %525 = vector.shape_cast %524 : vector<32xf32> to vector<32x1xf32>
    %cst_209 = arith.constant 3.200000e+01 : f32
    %526 = vector.broadcast %cst_209 : f32 to vector<32x1xf32>
    %527 = arith.divf %525, %526 : vector<32x1xf32>
    %528 = vector.broadcast %520 : vector<32x1xf32> to vector<32x32xf32>
    %529 = arith.subf %514, %528 : vector<32x32xf32>
    %cst_210 = arith.constant 9.99999974E-6 : f32
    %530 = vector.broadcast %cst_210 : f32 to vector<32x1xf32>
    %531 = arith.addf %527, %530 : vector<32x1xf32>
    %532 = math.rsqrt %531 : vector<32x1xf32>
    %533 = vector.broadcast %532 : vector<32x1xf32> to vector<32x32xf32>
    %534 = arith.mulf %529, %533 : vector<32x32xf32>
    %535 = vector.broadcast %515 : vector<1x32xf32> to vector<32x32xf32>
    %536 = arith.mulf %534, %535 : vector<32x32xf32>
    %537 = vector.broadcast %516 : vector<1x32xf32> to vector<32x32xf32>
    %538 = arith.addf %536, %537 : vector<32x32xf32>
    %539 = arith.truncf %538 : vector<32x32xf32> to vector<32x32xbf16>
    %c0_211 = arith.constant 0 : index
    %c0_212 = arith.constant 0 : index
    %540 = vector.load %arg16[%c0_211, %c0_212] : memref<32x128xbf16, #tpu.memory_space<vmem>>, vector<32x128xbf16>
    %cst_213 = arith.constant dense<0.000000e+00> : vector<32x128xf32>
    %541 = tpu.matmul %539, %540, %cst_213 {dimension_numbers = #tpu.dot_dimension_numbers<[1], [0], [0], [1], [0, 0, 1, 1], [], []>} : vector<32x32xbf16>, vector<32x128xbf16>, vector<32x128xf32> -> vector<32x128xf32>
    %c0_214 = arith.constant 0 : index
    %c0_215 = arith.constant 0 : index
    %542 = vector.load %arg17[%c0_214, %c0_215] : memref<1x128xf32, #tpu.memory_space<vmem>>, vector<1x128xf32>
    %543 = vector.broadcast %542 : vector<1x128xf32> to vector<32x128xf32>
    %544 = arith.addf %541, %543 : vector<32x128xf32>
    %c0_216 = arith.constant 0 : index
    %c0_217 = arith.constant 0 : index
    %545 = vector.load %arg18[%c0_216, %c0_217] : memref<32x128xf32, #tpu.memory_space<vmem>>, vector<32x128xf32>
    tpu.vector_store %arg18[%c0_216, %c0_217], %544 {strides = array<i32>} : memref<32x128xf32, #tpu.memory_space<vmem>>, vector<32x128xf32>,
    return
  }
}

</mosaic_0001>

<llo_original>
// kernel: gpt_forward.1
$region0: #{gpt_forward.1}
  #allocation0 [shape = 'u32[]', space=smem, size = 0x4, offset = 0x4, fixed_abs, tag = 'smem constant byte address 0x4 - core index']
  #allocation1 [shape = 'u32[144,128]{1,0:T(1,128)}', space=vmem, size = 0x12000, scoped, tag = 'internal scratch']
  #allocation2 [shape = 'f32[32,32]{1,0:T(8,128)}', space=vmem, size = 0x4000, scoped, tag = 'scratch operand']
  %s0 = inlined_call_operand.vmem [shape: s32[32,1], index: 0, kind: input, shape index: {}]
  %s1 = inlined_call_operand.vmem [shape: f32[32,32], index: 1, kind: input, shape index: {}]
  %s2 = inlined_call_operand.vmem [shape: bf16[128,32], index: 2, kind: input, shape index: {}]
  %s3 = inlined_call_operand.vmem [shape: f32[2,1,32], index: 3, kind: input, shape index: {}]
  %s4 = inlined_call_operand.vmem [shape: f32[2,1,32], index: 4, kind: input, shape index: {}]
  %s5 = inlined_call_operand.vmem [shape: bf16[2,32,96], index: 5, kind: input, shape index: {}]
  %s6 = inlined_call_operand.vmem [shape: bf16[2,32,32], index: 6, kind: input, shape index: {}]
  %s7 = inlined_call_operand.vmem [shape: f32[2,1,32], index: 7, kind: input, shape index: {}]
  %s8 = inlined_call_operand.vmem [shape: f32[2,1,32], index: 8, kind: input, shape index: {}]
  %s9 = inlined_call_operand.vmem [shape: f32[2,1,32], index: 9, kind: input, shape index: {}]
  %s10 = inlined_call_operand.vmem [shape: bf16[2,32,128], index: 10, kind: input, shape index: {}]
  %s11 = inlined_call_operand.vmem [shape: f32[2,1,128], index: 11, kind: input, shape index: {}]
  %s12 = inlined_call_operand.vmem [shape: bf16[2,128,32], index: 12, kind: input, shape index: {}]
  %s13 = inlined_call_operand.vmem [shape: f32[2,1,32], index: 13, kind: input, shape index: {}]
  %s14 = inlined_call_operand.vmem [shape: f32[1,32], index: 14, kind: input, shape index: {}]
  %s15 = inlined_call_operand.vmem [shape: f32[1,32], index: 15, kind: input, shape index: {}]
  %s16 = inlined_call_operand.vmem [shape: bf16[32,128], index: 16, kind: input, shape index: {}]
  %s17 = inlined_call_operand.vmem [shape: f32[1,128], index: 17, kind: input, shape index: {}]
  %s18 = inlined_call_operand.hbm [shape: f32[32,128], index: 18, kind: output, shape index: {}]
  %s19 = sld [smem:[#allocation0]]
  $region82: #{gpt_forward.1} parent=0
    _
  %s21 = ssub.s32 1, %s19
  %s22 = scalar_select 0, %s21, %s19
  $region1: #{gpt_forward.1} parent=0
    #allocation3 [shape = 'u8[16384]{0}', space=vmem, size = 0x4000, scoped, tag = 'output window, operand 0, single buffered']
    #allocation4 [shape = 's32[1]{0}', space=sflag, size = 0x4, scoped, tag = 'scoped memory for gpt_forward.1']
    %23 = vsyncpa [#allocation4], 0
    // Predicated region
    $region2: #{gpt_forward.1} parent=1 // pred_check
      _
    $region3: #{gpt_forward.1} parent=1 // pred_check_branch
      %25 = sbr.rel (0) target = $region5
    $region4: #{gpt_forward.1} parent=1 // pred_region
      _
    $region5: #{gpt_forward.1} parent=1 // pred_fallthru
      _
    // Predicated region
    $region6: #{gpt_forward.1} parent=1 // pred_check
      _
    $region7: #{gpt_forward.1} parent=1 // pred_check_branch
      %27 = sbr.rel (0) target = $region9
    $region8: #{gpt_forward.1} parent=1 // pred_region
      _
    $region9: #{gpt_forward.1} parent=1 // pred_fallthru
      _
    // Predicated region
    $region10: #{gpt_forward.1} parent=1 // pred_check
      _
    $region11: #{gpt_forward.1} parent=1 // pred_check_branch
      %29 = sbr.rel (0) target = $region13
    $region12: #{gpt_forward.1} parent=1 // pred_region
      _
    $region13: #{gpt_forward.1} parent=1 // pred_fallthru
      _
    // Predicated region
    $region14: #{gpt_forward.1} parent=1 // pred_check
      _
    $region15: #{gpt_forward.1} parent=1 // pred_check_branch
      %31 = sbr.rel (0) target = $region17
    $region16: #{gpt_forward.1} parent=1 // pred_region
      _
    $region17: #{gpt_forward.1} parent=1 // pred_fallthru
      _
    // Predicated region
    $region18: #{gpt_forward.1} parent=1 // pred_check
      _
    $region19: #{gpt_forward.1} parent=1 // pred_check_branch
      %33 = sbr.rel (0) target = $region21
    $region20: #{gpt_forward.1} parent=1 // pred_region
      _
    $region21: #{gpt_forward.1} parent=1 // pred_fallthru
      _
    // Predicated region
    $region22: #{gpt_forward.1} parent=1 // pred_check
      _
    $region23: #{gpt_forward.1} parent=1 // pred_check_branch
      %35 = sbr.rel (0) target = $region25
    $region24: #{gpt_forward.1} parent=1 // pred_region
      _
    $region25: #{gpt_forward.1} parent=1 // pred_fallthru
      _
    // Predicated region
    $region26: #{gpt_forward.1} parent=1 // pred_check
      _
    $region27: #{gpt_forward.1} parent=1 // pred_check_branch
      %37 = sbr.rel (0) target = $region29
    $region28: #{gpt_forward.1} parent=1 // pred_region
      _
    $region29: #{gpt_forward.1} parent=1 // pred_fallthru
      _
    // Predicated region
    $region30: #{gpt_forward.1} parent=1 // pred_check
      _
    $region31: #{gpt_forward.1} parent=1 // pred_check_branch
      %39 = sbr.rel (0) target = $region33
    $region32: #{gpt_forward.1} parent=1 // pred_region
      _
    $region33: #{gpt_forward.1} parent=1 // pred_fallthru
      _
    // Predicated region
    $region34: #{gpt_forward.1} parent=1 // pred_check
      _
    $region35: #{gpt_forward.1} parent=1 // pred_check_branch
      %41 = sbr.rel (0) target = $region37
    $region36: #{gpt_forward.1} parent=1 // pred_region
      _
    $region37: #{gpt_forward.1} parent=1 // pred_fallthru
      _
    // Predicated region
    $region38: #{gpt_forward.1} parent=1 // pred_check
      _
    $region39: #{gpt_forward.1} parent=1 // pred_check_branch
      %43 = sbr.rel (0) target = $region41
    $region40: #{gpt_forward.1} parent=1 // pred_region
      _
    $region41: #{gpt_forward.1} parent=1 // pred_fallthru
      _
    // Predicated region
    $region42: #{gpt_forward.1} parent=1 // pred_check
      _
    $region43: #{gpt_forward.1} parent=1 // pred_check_branch
      %45 = sbr.rel (0) target = $region45
    $region44: #{gpt_forward.1} parent=1 // pred_region
      _
    $region45: #{gpt_forward.1} parent=1 // pred_fallthru
      _
    // Predicated region
    $region46: #{gpt_forward.1} parent=1 // pred_check
      _
    $region47: #{gpt_forward.1} parent=1 // pred_check_branch
      %47 = sbr.rel (0) target = $region49
    $region48: #{gpt_forward.1} parent=1 // pred_region
      _
    $region49: #{gpt_forward.1} parent=1 // pred_fallthru
      _
    // Predicated region
    $region50: #{gpt_forward.1} parent=1 // pred_check
      _
    $region51: #{gpt_forward.1} parent=1 // pred_check_branch
      %49 = sbr.rel (0) target = $region53
    $region52: #{gpt_forward.1} parent=1 // pred_region
      _
    $region53: #{gpt_forward.1} parent=1 // pred_fallthru
      _
    // Predicated region
    $region54: #{gpt_forward.1} parent=1 // pred_check
      _
    $region55: #{gpt_forward.1} parent=1 // pred_check_branch
      %51 = sbr.rel (0) target = $region57
    $region56: #{gpt_forward.1} parent=1 // pred_region
      _
    $region57: #{gpt_forward.1} parent=1 // pred_fallthru
      _
    // Predicated region
    $region58: #{gpt_forward.1} parent=1 // pred_check
      _
    $region59: #{gpt_forward.1} parent=1 // pred_check_branch
      %53 = sbr.rel (0) target = $region61
    $region60: #{gpt_forward.1} parent=1 // pred_region
      _
    $region61: #{gpt_forward.1} parent=1 // pred_fallthru
      _
    // Predicated region
    $region62: #{gpt_forward.1} parent=1 // pred_check
      _
    $region63: #{gpt_forward.1} parent=1 // pred_check_branch
      %55 = sbr.rel (0) target = $region65
    $region64: #{gpt_forward.1} parent=1 // pred_region
      _
    $region65: #{gpt_forward.1} parent=1 // pred_fallthru
      _
    // Predicated region
    $region66: #{gpt_forward.1} parent=1 // pred_check
      _
    $region67: #{gpt_forward.1} parent=1 // pred_check_branch
      %57 = sbr.rel (0) target = $region69
    $region68: #{gpt_forward.1} parent=1 // pred_region
      _
    $region69: #{gpt_forward.1} parent=1 // pred_fallthru
      _
    // Predicated region
    $region70: #{gpt_forward.1} parent=1 // pred_check
      _
    $region71: #{gpt_forward.1} parent=1 // pred_check_branch
      %59 = sbr.rel (0) target = $region73
    $region72: #{gpt_forward.1} parent=1 // pred_region
      _
    $region73: #{gpt_forward.1} parent=1 // pred_fallthru
      _
    %v61 = vld [vmem:[%s0] sm:$0xff]
    %v62 = vld [vmem:[%s0 + $0x8] sm:$0xff]
    %v63 = vld [vmem:[%s0 + $0x10] sm:$0xff]
    %v64 = vld [vmem:[%s0 + $0x18] sm:$0xff]
    %v65 = vlaneseq
    %v66 = vand.u32 %v65, 127
    %67 = vset.pattern.permute.xlu0 0
    %68 = vperm.xlu0 %67, %v61
    %v69 = vpop.permute.xlu0 %68
    %70 = vset.pattern.permute.xlu0 0
    %71 = vperm.xlu0 %70, %v62
    %v72 = vpop.permute.xlu0 %71
    %73 = vset.pattern.permute.xlu0 0
    %74 = vperm.xlu0 %73, %v63
    %v75 = vpop.permute.xlu0 %74
    %76 = vset.pattern.permute.xlu0 0
    %77 = vperm.xlu0 %76, %v64
    %v78 = vpop.permute.xlu0 %77
    %vm79 = vcmp.eq.s32.totalorder %v69, %v66
    %vm80 = vcmp.eq.s32.totalorder %v72, %v66
    %vm81 = vcmp.eq.s32.totalorder %v75, %v66
    %vm82 = vcmp.eq.s32.totalorder %v78, %v66
    %v83 = vsel %vm79, 1, 0
    %v84 = vsel %vm80, 1, 0
    %v85 = vsel %vm81, 1, 0
    %v86 = vsel %vm82, 1, 0
    %v87 = vcvt.s32.f32 %v83
    %v88 = vcvt.s32.f32 %v84
    %v89 = vcvt.s32.f32 %v85
    %v90 = vcvt.s32.f32 %v86
    %v91 = vpack.c.bf16 %v88, %v87
    %v92 = vpack.c.bf16 %v90, %v89
    %v93 = vld [vmem:[%s2] sm:$0xf]
    %v94 = vld [vmem:[%s2 + $0x4] sm:$0xf]
    %v95 = vld [vmem:[%s2 + $0x8] sm:$0xf]
    %v96 = vld [vmem:[%s2 + $0xc] sm:$0xf]
    %v97 = vld [vmem:[%s2 + $0x10] sm:$0xf]
    %v98 = vld [vmem:[%s2 + $0x14] sm:$0xf]
    %v99 = vld [vmem:[%s2 + $0x18] sm:$0xf]
    %v100 = vld [vmem:[%s2 + $0x1c] sm:$0xf]
    %v101 = vld [vmem:[%s2 + $0x20] sm:$0xf]
    %v102 = vld [vmem:[%s2 + $0x24] sm:$0xf]
    %v103 = vld [vmem:[%s2 + $0x28] sm:$0xf]
    %v104 = vld [vmem:[%s2 + $0x2c] sm:$0xf]
    %v105 = vld [vmem:[%s2 + $0x30] sm:$0xf]
    %v106 = vld [vmem:[%s2 + $0x34] sm:$0xf]
    %v107 = vld [vmem:[%s2 + $0x38] sm:$0xf]
    %v108 = vld [vmem:[%s2 + $0x3c] sm:$0xf]
    %v109 = vld [vmem:[%s1] sm:$0xff]
    %v110 = vld [vmem:[%s1 + $0x8] sm:$0xff]
    %v111 = vld [vmem:[%s1 + $0x10] sm:$0xff]
    %v112 = vld [vmem:[%s1 + $0x18] sm:$0xff]
    %v129 = vunpack.c.l.b16 %v93
    %v130 = vunpack.c.l.b16 %v94
    %v131 = vunpack.c.l.b16 %v95
    %v132 = vunpack.c.l.b16 %v96
    %v133 = vunpack.c.l.b16 %v97
    %v134 = vunpack.c.l.b16 %v98
    %v135 = vunpack.c.l.b16 %v99
    %v136 = vunpack.c.l.b16 %v100
    %v137 = vunpack.c.l.b16 %v101
    %v138 = vunpack.c.l.b16 %v102
    %v139 = vunpack.c.l.b16 %v103
    %v140 = vunpack.c.l.b16 %v104
    %v141 = vunpack.c.l.b16 %v105
    %v142 = vunpack.c.l.b16 %v106
    %v143 = vunpack.c.l.b16 %v107
    %v144 = vunpack.c.l.b16 %v108
    %v145 = vpack.c.b16 %v130, %v129
    %v146 = vpack.c.b16 %v132, %v131
    %v147 = vpack.c.b16 %v134, %v133
    %v148 = vpack.c.b16 %v136, %v135
    %v149 = vpack.c.b16 %v138, %v137
    %v150 = vpack.c.b16 %v140, %v139
    %v151 = vpack.c.b16 %v142, %v141
    %v152 = vpack.c.b16 %v144, %v143
    %161 = vmatprep.subr.bf16.mxu0 0
    %162 = vmatpush1.bf16.msra.mxu0 %v145
    %163 = vmatprep.subr.bf16.mxu0 0
    %164 = vmatpush1.bf16.msra.mxu0 %v146
    %165 = vmatprep.subr.bf16.mxu0 0
    %166 = vmatpush1.bf16.msra.mxu0 %v147
    %167 = vmatprep.subr.bf16.mxu0 0
    %168 = vmatpush1.bf16.msra.mxu0 %v148
    %169 = vmatprep.subr.bf16.mxu0 0
    %170 = vmatpush1.bf16.msra.mxu0 %v149
    %171 = vmatprep.subr.bf16.mxu0 0
    %172 = vmatpush1.bf16.msra.mxu0 %v150
    %173 = vmatprep.subr.bf16.mxu0 0
    %174 = vmatpush1.bf16.msra.mxu0 %v151
    %175 = vmatprep.subr.bf16.mxu0 0
    %176 = vmatpush1.bf16.msra.mxu0 %v152
    %177 = vmatprep.subr.bf16.mxu0 0
    %178 = vmatpush1.bf16.msra.mxu0 0
    %179 = vmatprep.subr.bf16.mxu0 0
    %180 = vmatpush1.bf16.msra.mxu0 0
    %181 = vmatprep.subr.bf16.mxu0 0
    %182 = vmatpush1.bf16.msra.mxu0 0
    %183 = vmatprep.subr.bf16.mxu0 0
    %184 = vmatpush1.bf16.msra.mxu0 0
    %185 = vmatprep.subr.bf16.mxu0 0
    %186 = vmatpush1.bf16.msra.mxu0 0
    %187 = vmatprep.subr.bf16.mxu0 0
    %188 = vmatpush1.bf16.msra.mxu0 0
    %189 = vmatprep.subr.bf16.mxu0 0
    %190 = vmatpush1.bf16.msra.mxu0 0
    %191 = vmatprep.subr.bf16.mxu0 0
    %192 = vmatpush1.bf16.msra.mxu0 0
    %193 = vmatprep.mubr.bf16.mxu0 0
    %194 = vmatmul.mubr.bf16.gmra.mrb[0].mxu0 %v91
    %v195 = vpop.f32.mrb[0].mxu0
    %v196 = vadd.f32 %v109, %v195
    %v197 = vpop.f32.mrb[0].mxu0
    %v198 = vpop.f32.mrb[0].mxu0
    %v199 = vadd.f32 %v110, %v198
    %v200 = vpop.f32.mrb[0].mxu0
    %201 = vmatprep.mubr.bf16.mxu0 0
    %202 = vmatmul.mubr.bf16.gmra.mrb[0].mxu0 %v92
    %v203 = vpop.f32.mrb[0].mxu0
    %v204 = vadd.f32 %v111, %v203
    %v205 = vpop.f32.mrb[0].mxu0
    %v206 = vpop.f32.mrb[0].mxu0
    %v207 = vadd.f32 %v112, %v206
    %v208 = vpop.f32.mrb[0].mxu0
    %209 = vdwg.mxu0
    %v210 = vlaneseq
    %v211 = vshrl.u32 %v210, 7
    %v212 = vadd.s32 %v211, 8
    %v213 = vadd.s32 %v211, 16
    %v214 = vadd.s32 %v211, 24
    %vm215 = vcmp.ge.s32.totalorder %v211, %v66
    %vm216 = vcmp.ge.s32.totalorder %v212, %v66
    %vm217 = vcmp.ge.s32.totalorder %v213, %v66
    %vm218 = vcmp.ge.s32.totalorder %v214, %v66
    %vm219 = vcmp.ge.s32.totalorder %v211, 0
    %vm220 = vcmp.ge.s32.totalorder %v212, 0
    %vm221 = vcmp.ge.s32.totalorder %v213, 0
    %vm222 = vcmp.ge.s32.totalorder %v214, 0
    %vm223 = vcmp.lt.s32.totalorder %v211, 16
    %vm224 = vcmp.lt.s32.totalorder %v212, 16
    %vm225 = vcmp.lt.s32.totalorder %v213, 16
    %vm226 = vcmp.lt.s32.totalorder %v214, 16
    %vm227 = vmand %vm219, %vm223
    %vm228 = vmand %vm220, %vm224
    %vm229 = vmand %vm221, %vm225
    %vm230 = vmand %vm222, %vm226
    %vm231 = vcmp.ge.s32.totalorder %v66, 0
    %vm232 = vmand %vm227, %vm231
    %vm233 = vmand %vm228, %vm231
    %vm234 = vmand %vm229, %vm231
    %vm235 = vmand %vm230, %vm231
    %vm236 = vcmp.lt.s32.totalorder %v66, 16
    %vm237 = vmand %vm232, %vm236
    %vm238 = vmand %vm233, %vm236
    %vm239 = vmand %vm234, %vm236
    %vm240 = vmand %vm235, %vm236
    %vm241 = vcmp.ge.s32.totalorder %v211, 16
    %vm242 = vcmp.ge.s32.totalorder %v212, 16
    %vm243 = vcmp.ge.s32.totalorder %v213, 16
    %vm244 = vcmp.ge.s32.totalorder %v214, 16
    %vm245 = vcmp.lt.s32.totalorder %v211, 32
    %vm246 = vcmp.lt.s32.totalorder %v212, 32
    %vm247 = vcmp.lt.s32.totalorder %v213, 32
    %vm248 = vcmp.lt.s32.totalorder %v214, 32
    %vm249 = vmand %vm241, %vm245
    %vm250 = vmand %vm242, %vm246
    %vm251 = vmand %vm243, %vm247
    %vm252 = vmand %vm244, %vm248
    %vm253 = vcmp.ge.s32.totalorder %v66, 16
    %vm254 = vmand %vm249, %vm253
    %vm255 = vmand %vm250, %vm253
    %vm256 = vmand %vm251, %vm253
    %vm257 = vmand %vm252, %vm253
    %vm258 = vcmp.lt.s32.totalorder %v66, 32
    %vm259 = vmand %vm254, %vm258
    %vm260 = vmand %vm255, %vm258
    %vm261 = vmand %vm256, %vm258
    %vm262 = vmand %vm257, %vm258
    %vm263 = vmor %vm237, %vm259
    %vm264 = vmor %vm238, %vm260
    %vm265 = vmor %vm239, %vm261
    %vm266 = vmor %vm240, %vm262
    %vm267 = vmand %vm215, %vm263
    %vm268 = vmand %vm216, %vm264
    %vm269 = vmand %vm217, %vm265
    %vm270 = vmand %vm218, %vm266
    %v271 = vsel %vm267, 0.0, -1e+30
    %v272 = vsel %vm268, 0.0, -1e+30
    %v273 = vsel %vm269, 0.0, -1e+30
    %v274 = vsel %vm270, 0.0, -1e+30
    %v275 = vld [vmem:[%s3] sm:$0x1]
    %v276 = vld [vmem:[%s4] sm:$0x1]
    %vm277 = vcmask 261120
    %v278 = vsel %vm277, %v196, 0.0
    %279 = vadd.xlane.f32.xlu0 %v278
    %v280 = vpop.xlane.xlu0 %279
    %v281 = vsel %vm277, %v199, 0.0
    %282 = vadd.xlane.f32.xlu0 %v281
    %v283 = vpop.xlane.xlu0 %282
    %v284 = vsel %vm277, %v204, 0.0
    %285 = vadd.xlane.f32.xlu0 %v284
    %v286 = vpop.xlane.xlu0 %285
    %v287 = vsel %vm277, %v207, 0.0
    %288 = vadd.xlane.f32.xlu0 %v287
    %v289 = vpop.xlane.xlu0 %288
    %v290 = vrcp.pop 32.0
    %v291 = vmul.f32 %v280, %v290
    %v292 = vmul.f32 %v283, %v290
    %v293 = vmul.f32 %v286, %v290
    %v294 = vmul.f32 %v289, %v290
    %v295 = vsub.f32 %v196, %v291
    %v296 = vsub.f32 %v199, %v292
    %v297 = vsub.f32 %v204, %v293
    %v298 = vsub.f32 %v207, %v294
    %v299 = vmul.f32 %v295, %v295
    %v300 = vmul.f32 %v296, %v296
    %v301 = vmul.f32 %v297, %v297
    %v302 = vmul.f32 %v298, %v298
    %v303 = vsel %vm277, %v299, 0.0
    %304 = vadd.xlane.f32.xlu0 %v303
    %v305 = vpop.xlane.xlu0 %304
    %v306 = vsel %vm277, %v300, 0.0
    %307 = vadd.xlane.f32.xlu0 %v306
    %v308 = vpop.xlane.xlu0 %307
    %v309 = vsel %vm277, %v301, 0.0
    %310 = vadd.xlane.f32.xlu0 %v309
    %v311 = vpop.xlane.xlu0 %310
    %v312 = vsel %vm277, %v302, 0.0
    %313 = vadd.xlane.f32.xlu0 %v312
    %v314 = vpop.xlane.xlu0 %313
    %v315 = vmul.f32 %v305, %v290
    %v316 = vmul.f32 %v308, %v290
    %v317 = vmul.f32 %v311, %v290
    %v318 = vmul.f32 %v314, %v290
    %v319 = vadd.f32 %v315, 1e-05
    %v320 = vadd.f32 %v316, 1e-05
    %v321 = vadd.f32 %v317, 1e-05
    %v322 = vadd.f32 %v318, 1e-05
    %v323 = vrsqrt.pop %v319
    %v324 = vrsqrt.pop %v320
    %v325 = vrsqrt.pop %v321
    %v326 = vrsqrt.pop %v322
    %v327 = vmul.f32 %v295, %v323
    %v328 = vmul.f32 %v296, %v324
    %v329 = vmul.f32 %v297, %v325
    %v330 = vmul.f32 %v298, %v326
    %v332 = vlaneseq
    %v333 = vshrl.u32 %v332, 7
    %v334 = vsub.s32 0, %v333
    %v335 = vrot.slane %v275, %v334
    %v337 = vmul.f32 %v327, %v335
    %v338 = vmul.f32 %v328, %v335
    %v339 = vmul.f32 %v329, %v335
    %v340 = vmul.f32 %v330, %v335
    %v342 = vlaneseq
    %v343 = vshrl.u32 %v342, 7
    %v344 = vsub.s32 0, %v343
    %v345 = vrot.slane %v276, %v344
    %v347 = vadd.f32 %v337, %v345
    %v348 = vadd.f32 %v338, %v345
    %v349 = vadd.f32 %v339, %v345
    %v350 = vadd.f32 %v340, %v345
    %v351 = vpack.c.bf16 %v348, %v347
    %v352 = vpack.c.bf16 %v350, %v349
    %v353 = vld [vmem:[%s5] sm:$0xf]
    %v354 = vld [vmem:[%s5 + $0x4] sm:$0xf]
    %v355 = vld [vmem:[%s5 + $0x8] sm:$0xf]
    %v356 = vld [vmem:[%s5 + $0xc] sm:$0xf]
    %v361 = vunpack.c.l.b16 %v353
    %v362 = vunpack.c.l.b16 %v354
    %v363 = vunpack.c.l.b16 %v355
    %v364 = vunpack.c.l.b16 %v356
    %v365 = vpack.c.b16 %v362, %v361
    %v366 = vpack.c.b16 %v364, %v363
    %v370 = vsel %vm277, %v351, 0
    %v373 = vsel %vm277, %v352, 0
    %375 = vmatprep.subr.bf16.mxu0 0
    %376 = vmatpush1.bf16.msra.mxu0 %v365
    %377 = vmatprep.subr.bf16.mxu0 0
    %378 = vmatpush1.bf16.msra.mxu0 %v366
    %379 = vmatprep.subr.bf16.mxu0 0
    %380 = vmatpush1.bf16.msra.mxu0 0
    %381 = vmatprep.subr.bf16.mxu0 0
    %382 = vmatpush1.bf16.msra.mxu0 0
    %383 = vmatprep.subr.bf16.mxu0 0
    %384 = vmatpush1.bf16.msra.mxu0 0
    %385 = vmatprep.subr.bf16.mxu0 0
    %386 = vmatpush1.bf16.msra.mxu0 0
    %387 = vmatprep.subr.bf16.mxu0 0
    %388 = vmatpush1.bf16.msra.mxu0 0
    %389 = vmatprep.subr.bf16.mxu0 0
    %390 = vmatpush1.bf16.msra.mxu0 0
    %391 = vmatprep.subr.bf16.mxu0 0
    %392 = vmatpush1.bf16.msra.mxu0 0
    %393 = vmatprep.subr.bf16.mxu0 0
    %394 = vmatpush1.bf16.msra.mxu0 0
    %395 = vmatprep.subr.bf16.mxu0 0
    %396 = vmatpush1.bf16.msra.mxu0 0
    %397 = vmatprep.subr.bf16.mxu0 0
    %398 = vmatpush1.bf16.msra.mxu0 0
    %399 = vmatprep.subr.bf16.mxu0 0
    %400 = vmatpush1.bf16.msra.mxu0 0
    %401 = vmatprep.subr.bf16.mxu0 0
    %402 = vmatpush1.bf16.msra.mxu0 0
    %403 = vmatprep.subr.bf16.mxu0 0
    %404 = vmatpush1.bf16.msra.mxu0 0
    %405 = vmatprep.subr.bf16.mxu0 0
    %406 = vmatpush1.bf16.msra.mxu0 0
    %407 = vmatprep.mubr.bf16.mxu0 0
    %408 = vmatmul.mubr.bf16.gmra.mrb[0].mxu0 %v370
    %v409 = vpop.f32.mrb[0].mxu0
    %v410 = vadd.f32 0.0, %v409
    %v411 = vpop.f32.mrb[0].mxu0
    %v412 = vpop.f32.mrb[0].mxu0
    %v413 = vadd.f32 0.0, %v412
    %v414 = vpop.f32.mrb[0].mxu0
    %415 = vmatprep.mubr.bf16.mxu0 0
    %416 = vmatmul.mubr.bf16.gmra.mrb[0].mxu0 %v373
    %v417 = vpop.f32.mrb[0].mxu0
    %v418 = vadd.f32 0.0, %v417
    %v419 = vpop.f32.mrb[0].mxu0
    %v420 = vpop.f32.mrb[0].mxu0
    %v421 = vadd.f32 0.0, %v420
    %v422 = vpop.f32.mrb[0].mxu0
    %423 = vdwg.mxu0
    %v424 = vmul.f32 %v410, 0.17677669
    %v425 = vmul.f32 %v413, 0.17677669
    %v426 = vmul.f32 %v418, 0.17677669
    %v427 = vmul.f32 %v421, 0.17677669
    %v428 = vpack.c.bf16 %v425, %v424
    %v429 = vpack.c.bf16 %v427, %v426
    %v430 = vpack.c.bf16 %v413, %v410
    %v431 = vpack.c.bf16 %v421, %v418
    %434 = vrot.lane.b32.xlu0 %v430, 96
    %v435 = vpop.permute.xlu0 %434
    %436 = vrot.lane.b32.xlu0 %v431, 96
    %v437 = vpop.permute.xlu0 %436
    %vm438 = vcmask 31744
    %v440 = vsel %vm438, %v428, 0
    %v443 = vsel %vm438, %v429, 0
    %v446 = vsel %vm438, %v435, 0
    %v449 = vsel %vm438, %v437, 0
    %451 = vmatprep.subr.bf16.mxu0 0
    %452 = vmatpush1.bf16.xpose.msra.mxu0 %v446
    %453 = vmatprep.subr.bf16.mxu0 0
    %454 = vmatpush1.bf16.xpose.msra.mxu0 %v449
    %455 = vmatprep.subr.bf16.mxu0 0
    %456 = vmatpush1.bf16.xpose.msra.mxu0 0
    %457 = vmatprep.subr.bf16.mxu0 0
    %458 = vmatpush1.bf16.xpose.msra.mxu0 0
    %459 = vmatprep.subr.bf16.mxu0 0
    %460 = vmatpush1.bf16.xpose.msra.mxu0 0
    %461 = vmatprep.subr.bf16.mxu0 0
    %462 = vmatpush1.bf16.xpose.msra.mxu0 0
    %463 = vmatprep.subr.bf16.mxu0 0
    %464 = vmatpush1.bf16.xpose.msra.mxu0 0
    %465 = vmatprep.subr.bf16.mxu0 0
    %466 = vmatpush1.bf16.xpose.msra.mxu0 0
    %467 = vmatprep.subr.bf16.mxu0 0
    %468 = vmatpush1.bf16.xpose.msra.mxu0 0
    %469 = vmatprep.subr.bf16.mxu0 0
    %470 = vmatpush1.bf16.xpose.msra.mxu0 0
    %471 = vmatprep.subr.bf16.mxu0 0
    %472 = vmatpush1.bf16.xpose.msra.mxu0 0
    %473 = vmatprep.subr.bf16.mxu0 0
    %474 = vmatpush1.bf16.xpose.msra.mxu0 0
    %475 = vmatprep.subr.bf16.mxu0 0
    %476 = vmatpush1.bf16.xpose.msra.mxu0 0
    %477 = vmatprep.subr.bf16.mxu0 0
    %478 = vmatpush1.bf16.xpose.msra.mxu0 0
    %479 = vmatprep.subr.bf16.mxu0 0
    %480 = vmatpush1.bf16.xpose.msra.mxu0 0
    %481 = vmatprep.subr.bf16.mxu0 0
    %482 = vmatpush1.bf16.xpose.msra.mxu0 0
    %483 = vmatprep.mubr.bf16.mxu0 0
    %484 = vmatmul.mubr.bf16.gmra.mrb[0].mxu0 %v440
    %v485 = vpop.f32.mrb[0].mxu0
    %v486 = vadd.f32 %v271, %v485
    %v487 = vpop.f32.mrb[0].mxu0
    %v488 = vpop.f32.mrb[0].mxu0
    %v489 = vadd.f32 %v272, %v488
    %v490 = vpop.f32.mrb[0].mxu0
    %491 = vmatprep.mubr.bf16.mxu0 0
    %492 = vmatmul.mubr.bf16.gmra.mrb[0].mxu0 %v443
    %v493 = vpop.f32.mrb[0].mxu0
    %v494 = vadd.f32 %v273, %v493
    %v495 = vpop.f32.mrb[0].mxu0
    %v496 = vpop.f32.mrb[0].mxu0
    %v497 = vadd.f32 %v274, %v496
    %v498 = vpop.f32.mrb[0].mxu0
    %499 = vdwg.mxu0
    %v500 = vsel %vm277, %v486, -inf
    %501 = vmax.xlane.f32.xlu0 %v500
    %v502 = vpop.xlane.xlu0 %501
    %v503 = vsel %vm277, %v489, -inf
    %504 = vmax.xlane.f32.xlu0 %v503
    %v505 = vpop.xlane.xlu0 %504
    %v506 = vsel %vm277, %v494, -inf
    %507 = vmax.xlane.f32.xlu0 %v506
    %v508 = vpop.xlane.xlu0 %507
    %v509 = vsel %vm277, %v497, -inf
    %510 = vmax.xlane.f32.xlu0 %v509
    %v511 = vpop.xlane.xlu0 %510
    %v512 = vsub.f32 %v486, %v502
    %v513 = vsub.f32 %v489, %v505
    %v514 = vsub.f32 %v494, %v508
    %v515 = vsub.f32 %v497, %v511
    %v516 = vmul.f32 %v512, 1.442695
    %v517 = vpow.pop %v516
    %v518 = vmul.f32 %v513, 1.442695
    %v519 = vpow.pop %v518
    %v520 = vmul.f32 %v514, 1.442695
    %v521 = vpow.pop %v520
    %v522 = vmul.f32 %v515, 1.442695
    %v523 = vpow.pop %v522
    %v524 = vsel %vm277, %v517, 0.0
    %525 = vadd.xlane.f32.xlu0 %v524
    %v526 = vpop.xlane.xlu0 %525
    %v527 = vsel %vm277, %v519, 0.0
    %528 = vadd.xlane.f32.xlu0 %v527
    %v529 = vpop.xlane.xlu0 %528
    %v530 = vsel %vm277, %v521, 0.0
    %531 = vadd.xlane.f32.xlu0 %v530
    %v532 = vpop.xlane.xlu0 %531
    %v533 = vsel %vm277, %v523, 0.0
    %534 = vadd.xlane.f32.xlu0 %v533
    %v535 = vpop.xlane.xlu0 %534
    %v536 = vrcp.pop %v526
    %v537 = vrcp.pop %v529
    %v538 = vrcp.pop %v532
    %v539 = vrcp.pop %v535
    %v540 = vmul.f32 %v517, %v536
    %v541 = vmul.f32 %v519, %v537
    %v542 = vmul.f32 %v521, %v538
    %v543 = vmul.f32 %v523, %v539
    %v544 = vpack.c.bf16 %v541, %v540
    %v545 = vpack.c.bf16 %v543, %v542
    %546 = vrot.lane.b32.xlu0 %v430, 64
    %v547 = vpop.permute.xlu0 %546
    %548 = vrot.lane.b32.xlu0 %v431, 64
    %v549 = vpop.permute.xlu0 %548
    %v553 = vsel %vm277, %v544, 0
    %v556 = vsel %vm277, %v545, 0
    %558 = vmatprep.subr.bf16.mxu0 0
    %559 = vmatpush1.bf16.msra.mxu0 %v547
    %560 = vmatprep.subr.bf16.mxu0 0
    %561 = vmatpush1.bf16.msra.mxu0 %v549
    %562 = vmatprep.subr.bf16.mxu0 0
    %563 = vmatpush1.bf16.msra.mxu0 0
    %564 = vmatprep.subr.bf16.mxu0 0
    %565 = vmatpush1.bf16.msra.mxu0 0
    %566 = vmatprep.subr.bf16.mxu0 0
    %567 = vmatpush1.bf16.msra.mxu0 0
    %568 = vmatprep.subr.bf16.mxu0 0
    %569 = vmatpush1.bf16.msra.mxu0 0
    %570 = vmatprep.subr.bf16.mxu0 0
    %571 = vmatpush1.bf16.msra.mxu0 0
    %572 = vmatprep.subr.bf16.mxu0 0
    %573 = vmatpush1.bf16.msra.mxu0 0
    %574 = vmatprep.subr.bf16.mxu0 0
    %575 = vmatpush1.bf16.msra.mxu0 0
    %576 = vmatprep.subr.bf16.mxu0 0
    %577 = vmatpush1.bf16.msra.mxu0 0
    %578 = vmatprep.subr.bf16.mxu0 0
    %579 = vmatpush1.bf16.msra.mxu0 0
    %580 = vmatprep.subr.bf16.mxu0 0
    %581 = vmatpush1.bf16.msra.mxu0 0
    %582 = vmatprep.subr.bf16.mxu0 0
    %583 = vmatpush1.bf16.msra.mxu0 0
    %584 = vmatprep.subr.bf16.mxu0 0
    %585 = vmatpush1.bf16.msra.mxu0 0
    %586 = vmatprep.subr.bf16.mxu0 0
    %587 = vmatpush1.bf16.msra.mxu0 0
    %588 = vmatprep.subr.bf16.mxu0 0
    %589 = vmatpush1.bf16.msra.mxu0 0
    %590 = vmatprep.mubr.bf16.mxu0 0
    %591 = vmatmul.mubr.bf16.gmra.mrb[0].mxu0 %v553
    %v592 = vpop.f32.mrb[0].mxu0
    %v593 = vadd.f32 0.0, %v592
    %v594 = vpop.f32.mrb[0].mxu0
    %v595 = vpop.f32.mrb[0].mxu0
    %v596 = vadd.f32 0.0, %v595
    %v597 = vpop.f32.mrb[0].mxu0
    %598 = vmatprep.mubr.bf16.mxu0 0
    %599 = vmatmul.mubr.bf16.gmra.mrb[0].mxu0 %v556
    %v600 = vpop.f32.mrb[0].mxu0
    %v601 = vadd.f32 0.0, %v600
    %v602 = vpop.f32.mrb[0].mxu0
    %v603 = vpop.f32.mrb[0].mxu0
    %v604 = vadd.f32 0.0, %v603
    %v605 = vpop.f32.mrb[0].mxu0
    %606 = vdwg.mxu0
    %607 = vst.msk [vmem:[#allocation2] sm:$0xff] %vm438, %v593
    %608 = vst.msk [vmem:[#allocation2 + $0x8] sm:$0xff] %vm438, %v596
    %609 = vst.msk [vmem:[#allocation2 + $0x10] sm:$0xff] %vm438, %v601
    %610 = vst.msk [vmem:[#allocation2 + $0x18] sm:$0xff] %vm438, %v604
    %613 = vrot.lane.b32.xlu0 %v428, 124
    %v614 = vpop.permute.xlu0 %613
    %615 = vrot.lane.b32.xlu0 %v429, 124
    %v616 = vpop.permute.xlu0 %615
    %617 = vrot.lane.b32.xlu0 %v430, 92
    %v618 = vpop.permute.xlu0 %617
    %619 = vrot.lane.b32.xlu0 %v431, 92
    %v620 = vpop.permute.xlu0 %619
    %v622 = vsel %vm438, %v614, 0
    %v625 = vsel %vm438, %v616, 0
    %v628 = vsel %vm438, %v618, 0
    %v631 = vsel %vm438, %v620, 0
    %633 = vmatprep.subr.bf16.mxu0 0
    %634 = vmatpush1.bf16.xpose.msra.mxu0 %v628
    %635 = vmatprep.subr.bf16.mxu0 0
    %636 = vmatpush1.bf16.xpose.msra.mxu0 %v631
    %637 = vmatprep.subr.bf16.mxu0 0
    %638 = vmatpush1.bf16.xpose.msra.mxu0 0
    %639 = vmatprep.subr.bf16.mxu0 0
    %640 = vmatpush1.bf16.xpose.msra.mxu0 0
    %641 = vmatprep.subr.bf16.mxu0 0
    %642 = vmatpush1.bf16.xpose.msra.mxu0 0
    %643 = vmatprep.subr.bf16.mxu0 0
    %644 = vmatpush1.bf16.xpose.msra.mxu0 0
    %645 = vmatprep.subr.bf16.mxu0 0
    %646 = vmatpush1.bf16.xpose.msra.mxu0 0
    %647 = vmatprep.subr.bf16.mxu0 0
    %648 = vmatpush1.bf16.xpose.msra.mxu0 0
    %649 = vmatprep.subr.bf16.mxu0 0
    %650 = vmatpush1.bf16.xpose.msra.mxu0 0
    %651 = vmatprep.subr.bf16.mxu0 0
    %652 = vmatpush1.bf16.xpose.msra.mxu0 0
    %653 = vmatprep.subr.bf16.mxu0 0
    %654 = vmatpush1.bf16.xpose.msra.mxu0 0
    %655 = vmatprep.subr.bf16.mxu0 0
    %656 = vmatpush1.bf16.xpose.msra.mxu0 0
    %657 = vmatprep.subr.bf16.mxu0 0
    %658 = vmatpush1.bf16.xpose.msra.mxu0 0
    %659 = vmatprep.subr.bf16.mxu0 0
    %660 = vmatpush1.bf16.xpose.msra.mxu0 0
    %661 = vmatprep.subr.bf16.mxu0 0
    %662 = vmatpush1.bf16.xpose.msra.mxu0 0
    %663 = vmatprep.subr.bf16.mxu0 0
    %664 = vmatpush1.bf16.xpose.msra.mxu0 0
    %665 = vmatprep.mubr.bf16.mxu0 0
    %666 = vmatmul.mubr.bf16.gmra.mrb[0].mxu0 %v622
    %v667 = vpop.f32.mrb[0].mxu0
    %v668 = vadd.f32 %v271, %v667
    %v669 = vpop.f32.mrb[0].mxu0
    %v670 = vpop.f32.mrb[0].mxu0
    %v671 = vadd.f32 %v272, %v670
    %v672 = vpop.f32.mrb[0].mxu0
    %673 = vmatprep.mubr.bf16.mxu0 0
    %674 = vmatmul.mubr.bf16.gmra.mrb[0].mxu0 %v625
    %v675 = vpop.f32.mrb[0].mxu0
    %v676 = vadd.f32 %v273, %v675
    %v677 = vpop.f32.mrb[0].mxu0
    %v678 = vpop.f32.mrb[0].mxu0
    %v679 = vadd.f32 %v274, %v678
    %v680 = vpop.f32.mrb[0].mxu0
    %681 = vdwg.mxu0
    %v682 = vsel %vm277, %v668, -inf
    %683 = vmax.xlane.f32.xlu0 %v682
    %v684 = vpop.xlane.xlu0 %683
    %v685 = vsel %vm277, %v671, -inf
    %686 = vmax.xlane.f32.xlu0 %v685
    %v687 = vpop.xlane.xlu0 %686
    %v688 = vsel %vm277, %v676, -inf
    %689 = vmax.xlane.f32.xlu0 %v688
    %v690 = vpop.xlane.xlu0 %689
    %v691 = vsel %vm277, %v679, -inf
    %692 = vmax.xlane.f32.xlu0 %v691
    %v693 = vpop.xlane.xlu0 %692
    %v694 = vsub.f32 %v668, %v684
    %v695 = vsub.f32 %v671, %v687
    %v696 = vsub.f32 %v676, %v690
    %v697 = vsub.f32 %v679, %v693
    %v698 = vmul.f32 %v694, 1.442695
    %v699 = vpow.pop %v698
    %v700 = vmul.f32 %v695, 1.442695
    %v701 = vpow.pop %v700
    %v702 = vmul.f32 %v696, 1.442695
    %v703 = vpow.pop %v702
    %v704 = vmul.f32 %v697, 1.442695
    %v705 = vpow.pop %v704
    %v706 = vsel %vm277, %v699, 0.0
    %707 = vadd.xlane.f32.xlu0 %v706
    %v708 = vpop.xlane.xlu0 %707
    %v709 = vsel %vm277, %v701, 0.0
    %710 = vadd.xlane.f32.xlu0 %v709
    %v711 = vpop.xlane.xlu0 %710
    %v712 = vsel %vm277, %v703, 0.0
    %713 = vadd.xlane.f32.xlu0 %v712
    %v714 = vpop.xlane.xlu0 %713
    %v715 = vsel %vm277, %v705, 0.0
    %716 = vadd.xlane.f32.xlu0 %v715
    %v717 = vpop.xlane.xlu0 %716
    %v718 = vrcp.pop %v708
    %v719 = vrcp.pop %v711
    %v720 = vrcp.pop %v714
    %v721 = vrcp.pop %v717
    %v722 = vmul.f32 %v699, %v718
    %v723 = vmul.f32 %v701, %v719
    %v724 = vmul.f32 %v703, %v720
    %v725 = vmul.f32 %v705, %v721
    %v726 = vpack.c.bf16 %v723, %v722
    %v727 = vpack.c.bf16 %v725, %v724
    %728 = vrot.lane.b32.xlu0 %v430, 60
    %v729 = vpop.permute.xlu0 %728
    %730 = vrot.lane.b32.xlu0 %v431, 60
    %v731 = vpop.permute.xlu0 %730
    %v735 = vsel %vm277, %v726, 0
    %v738 = vsel %vm277, %v727, 0
    %740 = vmatprep.subr.bf16.mxu0 0
    %741 = vmatpush1.bf16.msra.mxu0 %v729
    %742 = vmatprep.subr.bf16.mxu0 0
    %743 = vmatpush1.bf16.msra.mxu0 %v731
    %744 = vmatprep.subr.bf16.mxu0 0
    %745 = vmatpush1.bf16.msra.mxu0 0
    %746 = vmatprep.subr.bf16.mxu0 0
    %747 = vmatpush1.bf16.msra.mxu0 0
    %748 = vmatprep.subr.bf16.mxu0 0
    %749 = vmatpush1.bf16.msra.mxu0 0
    %750 = vmatprep.subr.bf16.mxu0 0
    %751 = vmatpush1.bf16.msra.mxu0 0
    %752 = vmatprep.subr.bf16.mxu0 0
    %753 = vmatpush1.bf16.msra.mxu0 0
    %754 = vmatprep.subr.bf16.mxu0 0
    %755 = vmatpush1.bf16.msra.mxu0 0
    %756 = vmatprep.subr.bf16.mxu0 0
    %757 = vmatpush1.bf16.msra.mxu0 0
    %758 = vmatprep.subr.bf16.mxu0 0
    %759 = vmatpush1.bf16.msra.mxu0 0
    %760 = vmatprep.subr.bf16.mxu0 0
    %761 = vmatpush1.bf16.msra.mxu0 0
    %762 = vmatprep.subr.bf16.mxu0 0
    %763 = vmatpush1.bf16.msra.mxu0 0
    %764 = vmatprep.subr.bf16.mxu0 0
    %765 = vmatpush1.bf16.msra.mxu0 0
    %766 = vmatprep.subr.bf16.mxu0 0
    %767 = vmatpush1.bf16.msra.mxu0 0
    %768 = vmatprep.subr.bf16.mxu0 0
    %769 = vmatpush1.bf16.msra.mxu0 0
    %770 = vmatprep.subr.bf16.mxu0 0
    %771 = vmatpush1.bf16.msra.mxu0 0
    %772 = vmatprep.mubr.bf16.mxu0 0
    %773 = vmatmul.mubr.bf16.gmra.mrb[0].mxu0 %v735
    %v774 = vpop.f32.mrb[0].mxu0
    %v775 = vadd.f32 0.0, %v774
    %v776 = vpop.f32.mrb[0].mxu0
    %v777 = vpop.f32.mrb[0].mxu0
    %v778 = vadd.f32 0.0, %v777
    %v779 = vpop.f32.mrb[0].mxu0
    %780 = vmatprep.mubr.bf16.mxu0 0
    %781 = vmatmul.mubr.bf16.gmra.mrb[0].mxu0 %v738
    %v782 = vpop.f32.mrb[0].mxu0
    %v783 = vadd.f32 0.0, %v782
    %v784 = vpop.f32.mrb[0].mxu0
    %v785 = vpop.f32.mrb[0].mxu0
    %v786 = vadd.f32 0.0, %v785
    %v787 = vpop.f32.mrb[0].mxu0
    %788 = vdwg.mxu0
    %793 = vrot.lane.b32.xlu0 %v775, 4
    %v794 = vpop.permute.xlu0 %793
    %795 = vrot.lane.b32.xlu0 %v778, 4
    %v796 = vpop.permute.xlu0 %795
    %797 = vrot.lane.b32.xlu0 %v783, 4
    %v798 = vpop.permute.xlu0 %797
    %799 = vrot.lane.b32.xlu0 %v786, 4
    %v800 = vpop.permute.xlu0 %799
    %vm805 = vcmask 64544
    %806 = vst.msk [vmem:[#allocation2] sm:$0xff] %vm805, %v794
    %807 = vst.msk [vmem:[#allocation2 + $0x8] sm:$0xff] %vm805, %v796
    %808 = vst.msk [vmem:[#allocation2 + $0x10] sm:$0xff] %vm805, %v798
    %809 = vst.msk [vmem:[#allocation2 + $0x18] sm:$0xff] %vm805, %v800
    %810 = vrot.lane.b32.xlu0 %v428, 120
    %v811 = vpop.permute.xlu0 %810
    %812 = vrot.lane.b32.xlu0 %v429, 120
    %v813 = vpop.permute.xlu0 %812
    %814 = vrot.lane.b32.xlu0 %v430, 88
    %v815 = vpop.permute.xlu0 %814
    %816 = vrot.lane.b32.xlu0 %v431, 88
    %v817 = vpop.permute.xlu0 %816
    %v819 = vsel %vm438, %v811, 0
    %v822 = vsel %vm438, %v813, 0
    %v825 = vsel %vm438, %v815, 0
    %v828 = vsel %vm438, %v817, 0
    %830 = vmatprep.subr.bf16.mxu0 0
    %831 = vmatpush1.bf16.xpose.msra.mxu0 %v825
    %832 = vmatprep.subr.bf16.mxu0 0
    %833 = vmatpush1.bf16.xpose.msra.mxu0 %v828
    %834 = vmatprep.subr.bf16.mxu0 0
    %835 = vmatpush1.bf16.xpose.msra.mxu0 0
    %836 = vmatprep.subr.bf16.mxu0 0
    %837 = vmatpush1.bf16.xpose.msra.mxu0 0
    %838 = vmatprep.subr.bf16.mxu0 0
    %839 = vmatpush1.bf16.xpose.msra.mxu0 0
    %840 = vmatprep.subr.bf16.mxu0 0
    %841 = vmatpush1.bf16.xpose.msra.mxu0 0
    %842 = vmatprep.subr.bf16.mxu0 0
    %843 = vmatpush1.bf16.xpose.msra.mxu0 0
    %844 = vmatprep.subr.bf16.mxu0 0
    %845 = vmatpush1.bf16.xpose.msra.mxu0 0
    %846 = vmatprep.subr.bf16.mxu0 0
    %847 = vmatpush1.bf16.xpose.msra.mxu0 0
    %848 = vmatprep.subr.bf16.mxu0 0
    %849 = vmatpush1.bf16.xpose.msra.mxu0 0
    %850 = vmatprep.subr.bf16.mxu0 0
    %851 = vmatpush1.bf16.xpose.msra.mxu0 0
    %852 = vmatprep.subr.bf16.mxu0 0
    %853 = vmatpush1.bf16.xpose.msra.mxu0 0
    %854 = vmatprep.subr.bf16.mxu0 0
    %855 = vmatpush1.bf16.xpose.msra.mxu0 0
    %856 = vmatprep.subr.bf16.mxu0 0
    %857 = vmatpush1.bf16.xpose.msra.mxu0 0
    %858 = vmatprep.subr.bf16.mxu0 0
    %859 = vmatpush1.bf16.xpose.msra.mxu0 0
    %860 = vmatprep.subr.bf16.mxu0 0
    %861 = vmatpush1.bf16.xpose.msra.mxu0 0
    %862 = vmatprep.mubr.bf16.mxu0 0
    %863 = vmatmul.mubr.bf16.gmra.mrb[0].mxu0 %v819
    %v864 = vpop.f32.mrb[0].mxu0
    %v865 = vadd.f32 %v271, %v864
    %v866 = vpop.f32.mrb[0].mxu0
    %v867 = vpop.f32.mrb[0].mxu0
    %v868 = vadd.f32 %v272, %v867
    %v869 = vpop.f32.mrb[0].mxu0
    %870 = vmatprep.mubr.bf16.mxu0 0
    %871 = vmatmul.mubr.bf16.gmra.mrb[0].mxu0 %v822
    %v872 = vpop.f32.mrb[0].mxu0
    %v873 = vadd.f32 %v273, %v872
    %v874 = vpop.f32.mrb[0].mxu0
    %v875 = vpop.f32.mrb[0].mxu0
    %v876 = vadd.f32 %v274, %v875
    %v877 = vpop.f32.mrb[0].mxu0
    %878 = vdwg.mxu0
    %v879 = vsel %vm277, %v865, -inf
    %880 = vmax.xlane.f32.xlu0 %v879
    %v881 = vpop.xlane.xlu0 %880
    %v882 = vsel %vm277, %v868, -inf
    %883 = vmax.xlane.f32.xlu0 %v882
    %v884 = vpop.xlane.xlu0 %883
    %v885 = vsel %vm277, %v873, -inf
    %886 = vmax.xlane.f32.xlu0 %v885
    %v887 = vpop.xlane.xlu0 %886
    %v888 = vsel %vm277, %v876, -inf
    %889 = vmax.xlane.f32.xlu0 %v888
    %v890 = vpop.xlane.xlu0 %889
    %v891 = vsub.f32 %v865, %v881
    %v892 = vsub.f32 %v868, %v884
    %v893 = vsub.f32 %v873, %v887
    %v894 = vsub.f32 %v876, %v890
    %v895 = vmul.f32 %v891, 1.442695
    %v896 = vpow.pop %v895
    %v897 = vmul.f32 %v892, 1.442695
    %v898 = vpow.pop %v897
    %v899 = vmul.f32 %v893, 1.442695
    %v900 = vpow.pop %v899
    %v901 = vmul.f32 %v894, 1.442695
    %v902 = vpow.pop %v901
    %v903 = vsel %vm277, %v896, 0.0
    %904 = vadd.xlane.f32.xlu0 %v903
    %v905 = vpop.xlane.xlu0 %904
    %v906 = vsel %vm277, %v898, 0.0
    %907 = vadd.xlane.f32.xlu0 %v906
    %v908 = vpop.xlane.xlu0 %907
    %v909 = vsel %vm277, %v900, 0.0
    %910 = vadd.xlane.f32.xlu0 %v909
    %v911 = vpop.xlane.xlu0 %910
    %v912 = vsel %vm277, %v902, 0.0
    %913 = vadd.xlane.f32.xlu0 %v912
    %v914 = vpop.xlane.xlu0 %913
    %v915 = vrcp.pop %v905
    %v916 = vrcp.pop %v908
    %v917 = vrcp.pop %v911
    %v918 = vrcp.pop %v914
    %v919 = vmul.f32 %v896, %v915
    %v920 = vmul.f32 %v898, %v916
    %v921 = vmul.f32 %v900, %v917
    %v922 = vmul.f32 %v902, %v918
    %v923 = vpack.c.bf16 %v920, %v919
    %v924 = vpack.c.bf16 %v922, %v921
    %925 = vrot.lane.b32.xlu0 %v430, 56
    %v926 = vpop.permute.xlu0 %925
    %927 = vrot.lane.b32.xlu0 %v431, 56
    %v928 = vpop.permute.xlu0 %927
    %v932 = vsel %vm277, %v923, 0
    %v935 = vsel %vm277, %v924, 0
    %937 = vmatprep.subr.bf16.mxu0 0
    %938 = vmatpush1.bf16.msra.mxu0 %v926
    %939 = vmatprep.subr.bf16.mxu0 0
    %940 = vmatpush1.bf16.msra.mxu0 %v928
    %941 = vmatprep.subr.bf16.mxu0 0
    %942 = vmatpush1.bf16.msra.mxu0 0
    %943 = vmatprep.subr.bf16.mxu0 0
    %944 = vmatpush1.bf16.msra.mxu0 0
    %945 = vmatprep.subr.bf16.mxu0 0
    %946 = vmatpush1.bf16.msra.mxu0 0
    %947 = vmatprep.subr.bf16.mxu0 0
    %948 = vmatpush1.bf16.msra.mxu0 0
    %949 = vmatprep.subr.bf16.mxu0 0
    %950 = vmatpush1.bf16.msra.mxu0 0
    %951 = vmatprep.subr.bf16.mxu0 0
    %952 = vmatpush1.bf16.msra.mxu0 0
    %953 = vmatprep.subr.bf16.mxu0 0
    %954 = vmatpush1.bf16.msra.mxu0 0
    %955 = vmatprep.subr.bf16.mxu0 0
    %956 = vmatpush1.bf16.msra.mxu0 0
    %957 = vmatprep.subr.bf16.mxu0 0
    %958 = vmatpush1.bf16.msra.mxu0 0
    %959 = vmatprep.subr.bf16.mxu0 0
    %960 = vmatpush1.bf16.msra.mxu0 0
    %961 = vmatprep.subr.bf16.mxu0 0
    %962 = vmatpush1.bf16.msra.mxu0 0
    %963 = vmatprep.subr.bf16.mxu0 0
    %964 = vmatpush1.bf16.msra.mxu0 0
    %965 = vmatprep.subr.bf16.mxu0 0
    %966 = vmatpush1.bf16.msra.mxu0 0
    %967 = vmatprep.subr.bf16.mxu0 0
    %968 = vmatpush1.bf16.msra.mxu0 0
    %969 = vmatprep.mubr.bf16.mxu0 0
    %970 = vmatmul.mubr.bf16.gmra.mrb[0].mxu0 %v932
    %v971 = vpop.f32.mrb[0].mxu0
    %v972 = vadd.f32 0.0, %v971
    %v973 = vpop.f32.mrb[0].mxu0
    %v974 = vpop.f32.mrb[0].mxu0
    %v975 = vadd.f32 0.0, %v974
    %v976 = vpop.f32.mrb[0].mxu0
    %977 = vmatprep.mubr.bf16.mxu0 0
    %978 = vmatmul.mubr.bf16.gmra.mrb[0].mxu0 %v935
    %v979 = vpop.f32.mrb[0].mxu0
    %v980 = vadd.f32 0.0, %v979
    %v981 = vpop.f32.mrb[0].mxu0
    %v982 = vpop.f32.mrb[0].mxu0
    %v983 = vadd.f32 0.0, %v982
    %v984 = vpop.f32.mrb[0].mxu0
    %985 = vdwg.mxu0
    %990 = vrot.lane.b32.xlu0 %v972, 8
    %v991 = vpop.permute.xlu0 %990
    %992 = vrot.lane.b32.xlu0 %v975, 8
    %v993 = vpop.permute.xlu0 %992
    %994 = vrot.lane.b32.xlu0 %v980, 8
    %v995 = vpop.permute.xlu0 %994
    %996 = vrot.lane.b32.xlu0 %v983, 8
    %v997 = vpop.permute.xlu0 %996
    %vm1002 = vcmask 97344
    %1003 = vst.msk [vmem:[#allocation2] sm:$0xff] %vm1002, %v991
    %1004 = vst.msk [vmem:[#allocation2 + $0x8] sm:$0xff] %vm1002, %v993
    %1005 = vst.msk [vmem:[#allocation2 + $0x10] sm:$0xff] %vm1002, %v995
    %1006 = vst.msk [vmem:[#allocation2 + $0x18] sm:$0xff] %vm1002, %v997
    %1007 = vrot.lane.b32.xlu0 %v428, 116
    %v1008 = vpop.permute.xlu0 %1007
    %1009 = vrot.lane.b32.xlu0 %v429, 116
    %v1010 = vpop.permute.xlu0 %1009
    %1011 = vrot.lane.b32.xlu0 %v430, 84
    %v1012 = vpop.permute.xlu0 %1011
    %1013 = vrot.lane.b32.xlu0 %v431, 84
    %v1014 = vpop.permute.xlu0 %1013
    %v1016 = vsel %vm438, %v1008, 0
    %v1019 = vsel %vm438, %v1010, 0
    %v1022 = vsel %vm438, %v1012, 0
    %v1025 = vsel %vm438, %v1014, 0
    %1027 = vmatprep.subr.bf16.mxu0 0
    %1028 = vmatpush1.bf16.xpose.msra.mxu0 %v1022
    %1029 = vmatprep.subr.bf16.mxu0 0
    %1030 = vmatpush1.bf16.xpose.msra.mxu0 %v1025
    %1031 = vmatprep.subr.bf16.mxu0 0
    %1032 = vmatpush1.bf16.xpose.msra.mxu0 0
    %1033 = vmatprep.subr.bf16.mxu0 0
    %1034 = vmatpush1.bf16.xpose.msra.mxu0 0
    %1035 = vmatprep.subr.bf16.mxu0 0
    %1036 = vmatpush1.bf16.xpose.msra.mxu0 0
    %1037 = vmatprep.subr.bf16.mxu0 0
    %1038 = vmatpush1.bf16.xpose.msra.mxu0 0
    %1039 = vmatprep.subr.bf16.mxu0 0
    %1040 = vmatpush1.bf16.xpose.msra.mxu0 0
    %1041 = vmatprep.subr.bf16.mxu0 0
    %1042 = vmatpush1.bf16.xpose.msra.mxu0 0
    %1043 = vmatprep.subr.bf16.mxu0 0
    %1044 = vmatpush1.bf16.xpose.msra.mxu0 0
    %1045 = vmatprep.subr.bf16.mxu0 0
    %1046 = vmatpush1.bf16.xpose.msra.mxu0 0
    %1047 = vmatprep.subr.bf16.mxu0 0
    %1048 = vmatpush1.bf16.xpose.msra.mxu0 0
    %1049 = vmatprep.subr.bf16.mxu0 0
    %1050 = vmatpush1.bf16.xpose.msra.mxu0 0
    %1051 = vmatprep.subr.bf16.mxu0 0
    %1052 = vmatpush1.bf16.xpose.msra.mxu0 0
    %1053 = vmatprep.subr.bf16.mxu0 0
    %1054 = vmatpush1.bf16.xpose.msra.mxu0 0
    %1055 = vmatprep.subr.bf16.mxu0 0
    %1056 = vmatpush1.bf16.xpose.msra.mxu0 0
    %1057 = vmatprep.subr.bf16.mxu0 0
    %1058 = vmatpush1.bf16.xpose.msra.mxu0 0
    %1059 = vmatprep.mubr.bf16.mxu0 0
    %1060 = vmatmul.mubr.bf16.gmra.mrb[0].mxu0 %v1016
    %v1061 = vpop.f32.mrb[0].mxu0
    %v1062 = vadd.f32 %v271, %v1061
    %v1063 = vpop.f32.mrb[0].mxu0
    %v1064 = vpop.f32.mrb[0].mxu0
    %v1065 = vadd.f32 %v272, %v1064
    %v1066 = vpop.f32.mrb[0].mxu0
    %1067 = vmatprep.mubr.bf16.mxu0 0
    %1068 = vmatmul.mubr.bf16.gmra.mrb[0].mxu0 %v1019
    %v1069 = vpop.f32.mrb[0].mxu0
    %v1070 = vadd.f32 %v273, %v1069
    %v1071 = vpop.f32.mrb[0].mxu0
    %v1072 = vpop.f32.mrb[0].mxu0
    %v1073 = vadd.f32 %v274, %v1072
    %v1074 = vpop.f32.mrb[0].mxu0
    %1075 = vdwg.mxu0
    %v1076 = vsel %vm277, %v1062, -inf
    %1077 = vmax.xlane.f32.xlu0 %v1076
    %v1078 = vpop.xlane.xlu0 %1077
    %v1079 = vsel %vm277, %v1065, -inf
    %1080 = vmax.xlane.f32.xlu0 %v1079
    %v1081 = vpop.xlane.xlu0 %1080
    %v1082 = vsel %vm277, %v1070, -inf
    %1083 = vmax.xlane.f32.xlu0 %v1082
    %v1084 = vpop.xlane.xlu0 %1083
    %v1085 = vsel %vm277, %v1073, -inf
    %1086 = vmax.xlane.f32.xlu0 %v1085
    %v1087 = vpop.xlane.xlu0 %1086
    %v1088 = vsub.f32 %v1062, %v1078
    %v1089 = vsub.f32 %v1065, %v1081
    %v1090 = vsub.f32 %v1070, %v1084
    %v1091 = vsub.f32 %v1073, %v1087
    %v1092 = vmul.f32 %v1088, 1.442695
    %v1093 = vpow.pop %v1092
    %v1094 = vmul.f32 %v1089, 1.442695
    %v1095 = vpow.pop %v1094
    %v1096 = vmul.f32 %v1090, 1.442695
    %v1097 = vpow.pop %v1096
    %v1098 = vmul.f32 %v1091, 1.442695
    %v1099 = vpow.pop %v1098
    %v1100 = vsel %vm277, %v1093, 0.0
    %1101 = vadd.xlane.f32.xlu0 %v1100
    %v1102 = vpop.xlane.xlu0 %1101
    %v1103 = vsel %vm277, %v1095, 0.0
    %1104 = vadd.xlane.f32.xlu0 %v1103
    %v1105 = vpop.xlane.xlu0 %1104
    %v1106 = vsel %vm277, %v1097, 0.0
    %1107 = vadd.xlane.f32.xlu0 %v1106
    %v1108 = vpop.xlane.xlu0 %1107
    %v1109 = vsel %vm277, %v1099, 0.0
    %1110 = vadd.xlane.f32.xlu0 %v1109
    %v1111 = vpop.xlane.xlu0 %1110
    %v1112 = vrcp.pop %v1102
    %v1113 = vrcp.pop %v1105
    %v1114 = vrcp.pop %v1108
    %v1115 = vrcp.pop %v1111
    %v1116 = vmul.f32 %v1093, %v1112
    %v1117 = vmul.f32 %v1095, %v1113
    %v1118 = vmul.f32 %v1097, %v1114
    %v1119 = vmul.f32 %v1099, %v1115
    %v1120 = vpack.c.bf16 %v1117, %v1116
    %v1121 = vpack.c.bf16 %v1119, %v1118
    %1122 = vrot.lane.b32.xlu0 %v430, 52
    %v1123 = vpop.permute.xlu0 %1122
    %1124 = vrot.lane.b32.xlu0 %v431, 52
    %v1125 = vpop.permute.xlu0 %1124
    %v1129 = vsel %vm277, %v1120, 0
    %v1132 = vsel %vm277, %v1121, 0
    %1134 = vmatprep.subr.bf16.mxu0 0
    %1135 = vmatpush1.bf16.msra.mxu0 %v1123
    %1136 = vmatprep.subr.bf16.mxu0 0
    %1137 = vmatpush1.bf16.msra.mxu0 %v1125
    %1138 = vmatprep.subr.bf16.mxu0 0
    %1139 = vmatpush1.bf16.msra.mxu0 0
    %1140 = vmatprep.subr.bf16.mxu0 0
    %1141 = vmatpush1.bf16.msra.mxu0 0
    %1142 = vmatprep.subr.bf16.mxu0 0
    %1143 = vmatpush1.bf16.msra.mxu0 0
    %1144 = vmatprep.subr.bf16.mxu0 0
    %1145 = vmatpush1.bf16.msra.mxu0 0
    %1146 = vmatprep.subr.bf16.mxu0 0
    %1147 = vmatpush1.bf16.msra.mxu0 0
    %1148 = vmatprep.subr.bf16.mxu0 0
    %1149 = vmatpush1.bf16.msra.mxu0 0
    %1150 = vmatprep.subr.bf16.mxu0 0
    %1151 = vmatpush1.bf16.msra.mxu0 0
    %1152 = vmatprep.subr.bf16.mxu0 0
    %1153 = vmatpush1.bf16.msra.mxu0 0
    %1154 = vmatprep.subr.bf16.mxu0 0
    %1155 = vmatpush1.bf16.msra.mxu0 0
    %1156 = vmatprep.subr.bf16.mxu0 0
    %1157 = vmatpush1.bf16.msra.mxu0 0
    %1158 = vmatprep.subr.bf16.mxu0 0
    %1159 = vmatpush1.bf16.msra.mxu0 0
    %1160 = vmatprep.subr.bf16.mxu0 0
    %1161 = vmatpush1.bf16.msra.mxu0 0
    %1162 = vmatprep.subr.bf16.mxu0 0
    %1163 = vmatpush1.bf16.msra.mxu0 0
    %1164 = vmatprep.subr.bf16.mxu0 0
    %1165 = vmatpush1.bf16.msra.mxu0 0
    %1166 = vmatprep.mubr.bf16.mxu0 0
    %1167 = vmatmul.mubr.bf16.gmra.mrb[0].mxu0 %v1129
    %v1168 = vpop.f32.mrb[0].mxu0
    %v1169 = vadd.f32 0.0, %v1168
    %v1170 = vpop.f32.mrb[0].mxu0
    %v1171 = vpop.f32.mrb[0].mxu0
    %v1172 = vadd.f32 0.0, %v1171
    %v1173 = vpop.f32.mrb[0].mxu0
    %1174 = vmatprep.mubr.bf16.mxu0 0
    %1175 = vmatmul.mubr.bf16.gmra.mrb[0].mxu0 %v1132
    %v1176 = vpop.f32.mrb[0].mxu0
    %v1177 = vadd.f32 0.0, %v1176
    %v1178 = vpop.f32.mrb[0].mxu0
    %v1179 = vpop.f32.mrb[0].mxu0
    %v1180 = vadd.f32 0.0, %v1179
    %v1181 = vpop.f32.mrb[0].mxu0
    %1182 = vdwg.mxu0
    %1187 = vrot.lane.b32.xlu0 %v1169, 12
    %v1188 = vpop.permute.xlu0 %1187
    %1189 = vrot.lane.b32.xlu0 %v1172, 12
    %v1190 = vpop.permute.xlu0 %1189
    %1191 = vrot.lane.b32.xlu0 %v1177, 12
    %v1192 = vpop.permute.xlu0 %1191
    %1193 = vrot.lane.b32.xlu0 %v1180, 12
    %v1194 = vpop.permute.xlu0 %1193
    %vm1199 = vcmask 130144
    %1200 = vst.msk [vmem:[#allocation2] sm:$0xff] %vm1199, %v1188
    %1201 = vst.msk [vmem:[#allocation2 + $0x8] sm:$0xff] %vm1199, %v1190
    %1202 = vst.msk [vmem:[#allocation2 + $0x10] sm:$0xff] %vm1199, %v1192
    %1203 = vst.msk [vmem:[#allocation2 + $0x18] sm:$0xff] %vm1199, %v1194
    %1204 = vrot.lane.b32.xlu0 %v428, 112
    %v1205 = vpop.permute.xlu0 %1204
    %1206 = vrot.lane.b32.xlu0 %v429, 112
    %v1207 = vpop.permute.xlu0 %1206
    %1208 = vrot.lane.b32.xlu0 %v430, 80
    %v1209 = vpop.permute.xlu0 %1208
    %1210 = vrot.lane.b32.xlu0 %v431, 80
    %v1211 = vpop.permute.xlu0 %1210
    %v1213 = vsel %vm438, %v1205, 0
    %v1216 = vsel %vm438, %v1207, 0
    %v1219 = vsel %vm438, %v1209, 0
    %v1222 = vsel %vm438, %v1211, 0
    %1224 = vmatprep.subr.bf16.mxu0 0
    %1225 = vmatpush1.bf16.xpose.msra.mxu0 %v1219
    %1226 = vmatprep.subr.bf16.mxu0 0
    %1227 = vmatpush1.bf16.xpose.msra.mxu0 %v1222
    %1228 = vmatprep.subr.bf16.mxu0 0
    %1229 = vmatpush1.bf16.xpose.msra.mxu0 0
    %1230 = vmatprep.subr.bf16.mxu0 0
    %1231 = vmatpush1.bf16.xpose.msra.mxu0 0
    %1232 = vmatprep.subr.bf16.mxu0 0
    %1233 = vmatpush1.bf16.xpose.msra.mxu0 0
    %1234 = vmatprep.subr.bf16.mxu0 0
    %1235 = vmatpush1.bf16.xpose.msra.mxu0 0
    %1236 = vmatprep.subr.bf16.mxu0 0
    %1237 = vmatpush1.bf16.xpose.msra.mxu0 0
    %1238 = vmatprep.subr.bf16.mxu0 0
    %1239 = vmatpush1.bf16.xpose.msra.mxu0 0
    %1240 = vmatprep.subr.bf16.mxu0 0
    %1241 = vmatpush1.bf16.xpose.msra.mxu0 0
    %1242 = vmatprep.subr.bf16.mxu0 0
    %1243 = vmatpush1.bf16.xpose.msra.mxu0 0
    %1244 = vmatprep.subr.bf16.mxu0 0
    %1245 = vmatpush1.bf16.xpose.msra.mxu0 0
    %1246 = vmatprep.subr.bf16.mxu0 0
    %1247 = vmatpush1.bf16.xpose.msra.mxu0 0
    %1248 = vmatprep.subr.bf16.mxu0 0
    %1249 = vmatpush1.bf16.xpose.msra.mxu0 0
    %1250 = vmatprep.subr.bf16.mxu0 0
    %1251 = vmatpush1.bf16.xpose.msra.mxu0 0
    %1252 = vmatprep.subr.bf16.mxu0 0
    %1253 = vmatpush1.bf16.xpose.msra.mxu0 0
    %1254 = vmatprep.subr.bf16.mxu0 0
    %1255 = vmatpush1.bf16.xpose.msra.mxu0 0
    %1256 = vmatprep.mubr.bf16.mxu0 0
    %1257 = vmatmul.mubr.bf16.gmra.mrb[0].mxu0 %v1213
    %v1258 = vpop.f32.mrb[0].mxu0
    %v1259 = vadd.f32 %v271, %v1258
    %v1260 = vpop.f32.mrb[0].mxu0
    %v1261 = vpop.f32.mrb[0].mxu0
    %v1262 = vadd.f32 %v272, %v1261
    %v1263 = vpop.f32.mrb[0].mxu0
    %1264 = vmatprep.mubr.bf16.mxu0 0
    %1265 = vmatmul.mubr.bf16.gmra.mrb[0].mxu0 %v1216
    %v1266 = vpop.f32.mrb[0].mxu0
    %v1267 = vadd.f32 %v273, %v1266
    %v1268 = vpop.f32.mrb[0].mxu0
    %v1269 = vpop.f32.mrb[0].mxu0
    %v1270 = vadd.f32 %v274, %v1269
    %v1271 = vpop.f32.mrb[0].mxu0
    %1272 = vdwg.mxu0
    %v1273 = vsel %vm277, %v1259, -inf
    %1274 = vmax.xlane.f32.xlu0 %v1273
    %v1275 = vpop.xlane.xlu0 %1274
    %v1276 = vsel %vm277, %v1262, -inf
    %1277 = vmax.xlane.f32.xlu0 %v1276
    %v1278 = vpop.xlane.xlu0 %1277
    %v1279 = vsel %vm277, %v1267, -inf
    %1280 = vmax.xlane.f32.xlu0 %v1279
    %v1281 = vpop.xlane.xlu0 %1280
    %v1282 = vsel %vm277, %v1270, -inf
    %1283 = vmax.xlane.f32.xlu0 %v1282
    %v1284 = vpop.xlane.xlu0 %1283
    %v1285 = vsub.f32 %v1259, %v1275
    %v1286 = vsub.f32 %v1262, %v1278
    %v1287 = vsub.f32 %v1267, %v1281
    %v1288 = vsub.f32 %v1270, %v1284
    %v1289 = vmul.f32 %v1285, 1.442695
    %v1290 = vpow.pop %v1289
    %v1291 = vmul.f32 %v1286, 1.442695
    %v1292 = vpow.pop %v1291
    %v1293 = vmul.f32 %v1287, 1.442695
    %v1294 = vpow.pop %v1293
    %v1295 = vmul.f32 %v1288, 1.442695
    %v1296 = vpow.pop %v1295
    %v1297 = vsel %vm277, %v1290, 0.0
    %1298 = vadd.xlane.f32.xlu0 %v1297
    %v1299 = vpop.xlane.xlu0 %1298
    %v1300 = vsel %vm277, %v1292, 0.0
    %1301 = vadd.xlane.f32.xlu0 %v1300
    %v1302 = vpop.xlane.xlu0 %1301
    %v1303 = vsel %vm277, %v1294, 0.0
    %1304 = vadd.xlane.f32.xlu0 %v1303
    %v1305 = vpop.xlane.xlu0 %1304
    %v1306 = vsel %vm277, %v1296, 0.0
    %1307 = vadd.xlane.f32.xlu0 %v1306
    %v1308 = vpop.xlane.xlu0 %1307
    %v1309 = vrcp.pop %v1299
    %v1310 = vrcp.pop %v1302
    %v1311 = vrcp.pop %v1305
    %v1312 = vrcp.pop %v1308
    %v1313 = vmul.f32 %v1290, %v1309
    %v1314 = vmul.f32 %v1292, %v1310
    %v1315 = vmul.f32 %v1294, %v1311
    %v1316 = vmul.f32 %v1296, %v1312
    %v1317 = vpack.c.bf16 %v1314, %v1313
    %v1318 = vpack.c.bf16 %v1316, %v1315
    %1319 = vrot.lane.b32.xlu0 %v430, 48
    %v1320 = vpop.permute.xlu0 %1319
    %1321 = vrot.lane.b32.xlu0 %v431, 48
    %v1322 = vpop.permute.xlu0 %1321
    %v1326 = vsel %vm277, %v1317, 0
    %v1329 = vsel %vm277, %v1318, 0
    %1331 = vmatprep.subr.bf16.mxu0 0
    %1332 = vmatpush1.bf16.msra.mxu0 %v1320
    %1333 = vmatprep.subr.bf16.mxu0 0
    %1334 = vmatpush1.bf16.msra.mxu0 %v1322
    %1335 = vmatprep.subr.bf16.mxu0 0
    %1336 = vmatpush1.bf16.msra.mxu0 0
    %1337 = vmatprep.subr.bf16.mxu0 0
    %1338 = vmatpush1.bf16.msra.mxu0 0
    %1339 = vmatprep.subr.bf16.mxu0 0
    %1340 = vmatpush1.bf16.msra.mxu0 0
    %1341 = vmatprep.subr.bf16.mxu0 0
    %1342 = vmatpush1.bf16.msra.mxu0 0
    %1343 = vmatprep.subr.bf16.mxu0 0
    %1344 = vmatpush1.bf16.msra.mxu0 0
    %1345 = vmatprep.subr.bf16.mxu0 0
    %1346 = vmatpush1.bf16.msra.mxu0 0
    %1347 = vmatprep.subr.bf16.mxu0 0
    %1348 = vmatpush1.bf16.msra.mxu0 0
    %1349 = vmatprep.subr.bf16.mxu0 0
    %1350 = vmatpush1.bf16.msra.mxu0 0
    %1351 = vmatprep.subr.bf16.mxu0 0
    %1352 = vmatpush1.bf16.msra.mxu0 0
    %1353 = vmatprep.subr.bf16.mxu0 0
    %1354 = vmatpush1.bf16.msra.mxu0 0
    %1355 = vmatprep.subr.bf16.mxu0 0
    %1356 = vmatpush1.bf16.msra.mxu0 0
    %1357 = vmatprep.subr.bf16.mxu0 0
    %1358 = vmatpush1.bf16.msra.mxu0 0
    %1359 = vmatprep.subr.bf16.mxu0 0
    %1360 = vmatpush1.bf16.msra.mxu0 0
    %1361 = vmatprep.subr.bf16.mxu0 0
    %1362 = vmatpush1.bf16.msra.mxu0 0
    %1363 = vmatprep.mubr.bf16.mxu0 0
    %1364 = vmatmul.mubr.bf16.gmra.mrb[0].mxu0 %v1326
    %v1365 = vpop.f32.mrb[0].mxu0
    %v1366 = vadd.f32 0.0, %v1365
    %v1367 = vpop.f32.mrb[0].mxu0
    %v1368 = vpop.f32.mrb[0].mxu0
    %v1369 = vadd.f32 0.0, %v1368
    %v1370 = vpop.f32.mrb[0].mxu0
    %1371 = vmatprep.mubr.bf16.mxu0 0
    %1372 = vmatmul.mubr.bf16.gmra.mrb[0].mxu0 %v1329
    %v1373 = vpop.f32.mrb[0].mxu0
    %v1374 = vadd.f32 0.0, %v1373
    %v1375 = vpop.f32.mrb[0].mxu0
    %v1376 = vpop.f32.mrb[0].mxu0
    %v1377 = vadd.f32 0.0, %v1376
    %v1378 = vpop.f32.mrb[0].mxu0
    %1379 = vdwg.mxu0
    %1384 = vrot.lane.b32.xlu0 %v1366, 16
    %v1385 = vpop.permute.xlu0 %1384
    %1386 = vrot.lane.b32.xlu0 %v1369, 16
    %v1387 = vpop.permute.xlu0 %1386
    %1388 = vrot.lane.b32.xlu0 %v1374, 16
    %v1389 = vpop.permute.xlu0 %1388
    %1390 = vrot.lane.b32.xlu0 %v1377, 16
    %v1391 = vpop.permute.xlu0 %1390
    %vm1396 = vcmask 162944
    %1397 = vst.msk [vmem:[#allocation2] sm:$0xff] %vm1396, %v1385
    %1398 = vst.msk [vmem:[#allocation2 + $0x8] sm:$0xff] %vm1396, %v1387
    %1399 = vst.msk [vmem:[#allocation2 + $0x10] sm:$0xff] %vm1396, %v1389
    %1400 = vst.msk [vmem:[#allocation2 + $0x18] sm:$0xff] %vm1396, %v1391
    %1401 = vrot.lane.b32.xlu0 %v428, 108
    %v1402 = vpop.permute.xlu0 %1401
    %1403 = vrot.lane.b32.xlu0 %v429, 108
    %v1404 = vpop.permute.xlu0 %1403
    %1405 = vrot.lane.b32.xlu0 %v430, 76
    %v1406 = vpop.permute.xlu0 %1405
    %1407 = vrot.lane.b32.xlu0 %v431, 76
    %v1408 = vpop.permute.xlu0 %1407
    %v1410 = vsel %vm438, %v1402, 0
    %v1413 = vsel %vm438, %v1404, 0
    %v1416 = vsel %vm438, %v1406, 0
    %v1419 = vsel %vm438, %v1408, 0
    %1421 = vmatprep.subr.bf16.mxu0 0
    %1422 = vmatpush1.bf16.xpose.msra.mxu0 %v1416
    %1423 = vmatprep.subr.bf16.mxu0 0
    %1424 = vmatpush1.bf16.xpose.msra.mxu0 %v1419
    %1425 = vmatprep.subr.bf16.mxu0 0
    %1426 = vmatpush1.bf16.xpose.msra.mxu0 0
    %1427 = vmatprep.subr.bf16.mxu0 0
    %1428 = vmatpush1.bf16.xpose.msra.mxu0 0
    %1429 = vmatprep.subr.bf16.mxu0 0
    %1430 = vmatpush1.bf16.xpose.msra.mxu0 0
    %1431 = vmatprep.subr.bf16.mxu0 0
    %1432 = vmatpush1.bf16.xpose.msra.mxu0 0
    %1433 = vmatprep.subr.bf16.mxu0 0
    %1434 = vmatpush1.bf16.xpose.msra.mxu0 0
    %1435 = vmatprep.subr.bf16.mxu0 0
    %1436 = vmatpush1.bf16.xpose.msra.mxu0 0
    %1437 = vmatprep.subr.bf16.mxu0 0
    %1438 = vmatpush1.bf16.xpose.msra.mxu0 0
    %1439 = vmatprep.subr.bf16.mxu0 0
    %1440 = vmatpush1.bf16.xpose.msra.mxu0 0
    %1441 = vmatprep.subr.bf16.mxu0 0
    %1442 = vmatpush1.bf16.xpose.msra.mxu0 0
    %1443 = vmatprep.subr.bf16.mxu0 0
    %1444 = vmatpush1.bf16.xpose.msra.mxu0 0
    %1445 = vmatprep.subr.bf16.mxu0 0
    %1446 = vmatpush1.bf16.xpose.msra.mxu0 0
    %1447 = vmatprep.subr.bf16.mxu0 0
    %1448 = vmatpush1.bf16.xpose.msra.mxu0 0
    %1449 = vmatprep.subr.bf16.mxu0 0
    %1450 = vmatpush1.bf16.xpose.msra.mxu0 0
    %1451 = vmatprep.subr.bf16.mxu0 0
    %1452 = vmatpush1.bf16.xpose.msra.mxu0 0
    %1453 = vmatprep.mubr.bf16.mxu0 0
    %1454 = vmatmul.mubr.bf16.gmra.mrb[0].mxu0 %v1410
    %v1455 = vpop.f32.mrb[0].mxu0
    %v1456 = vadd.f32 %v271, %v1455
    %v1457 = vpop.f32.mrb[0].mxu0
    %v1458 = vpop.f32.mrb[0].mxu0
    %v1459 = vadd.f32 %v272, %v1458
    %v1460 = vpop.f32.mrb[0].mxu0
    %1461 = vmatprep.mubr.bf16.mxu0 0
    %1462 = vmatmul.mubr.bf16.gmra.mrb[0].mxu0 %v1413
    %v1463 = vpop.f32.mrb[0].mxu0
    %v1464 = vadd.f32 %v273, %v1463
    %v1465 = vpop.f32.mrb[0].mxu0
    %v1466 = vpop.f32.mrb[0].mxu0
    %v1467 = vadd.f32 %v274, %v1466
    %v1468 = vpop.f32.mrb[0].mxu0
    %1469 = vdwg.mxu0
    %v1470 = vsel %vm277, %v1456, -inf
    %1471 = vmax.xlane.f32.xlu0 %v1470
    %v1472 = vpop.xlane.xlu0 %1471
    %v1473 = vsel %vm277, %v1459, -inf
    %1474 = vmax.xlane.f32.xlu0 %v1473
    %v1475 = vpop.xlane.xlu0 %1474
    %v1476 = vsel %vm277, %v1464, -inf
    %1477 = vmax.xlane.f32.xlu0 %v1476
    %v1478 = vpop.xlane.xlu0 %1477
    %v1479 = vsel %vm277, %v1467, -inf
    %1480 = vmax.xlane.f32.xlu0 %v1479
    %v1481 = vpop.xlane.xlu0 %1480
    %v1482 = vsub.f32 %v1456, %v1472
    %v1483 = vsub.f32 %v1459, %v1475
    %v1484 = vsub.f32 %v1464, %v1478
    %v1485 = vsub.f32 %v1467, %v1481
    %v1486 = vmul.f32 %v1482, 1.442695
    %v1487 = vpow.pop %v1486
    %v1488 = vmul.f32 %v1483, 1.442695
    %v1489 = vpow.pop %v1488
    %v1490 = vmul.f32 %v1484, 1.442695
    %v1491 = vpow.pop %v1490
    %v1492 = vmul.f32 %v1485, 1.442695
    %v1493 = vpow.pop %v1492
    %v1494 = vsel %vm277, %v1487, 0.0
    %1495 = vadd.xlane.f32.xlu0 %v1494
    %v1496 = vpop.xlane.xlu0 %1495
    %v1497 = vsel %vm277, %v1489, 0.0
    %1498 = vadd.xlane.f32.xlu0 %v1497
    %v1499 = vpop.xlane.xlu0 %1498
    %v1500 = vsel %vm277, %v1491, 0.0
    %1501 = vadd.xlane.f32.xlu0 %v1500
    %v1502 = vpop.xlane.xlu0 %1501
    %v1503 = vsel %vm277, %v1493, 0.0
    %1504 = vadd.xlane.f32.xlu0 %v1503
    %v1505 = vpop.xlane.xlu0 %1504
    %v1506 = vrcp.pop %v1496
    %v1507 = vrcp.pop %v1499
    %v1508 = vrcp.pop %v1502
    %v1509 = vrcp.pop %v1505
    %v1510 = vmul.f32 %v1487, %v1506
    %v1511 = vmul.f32 %v1489, %v1507
    %v1512 = vmul.f32 %v1491, %v1508
    %v1513 = vmul.f32 %v1493, %v1509
    %v1514 = vpack.c.bf16 %v1511, %v1510
    %v1515 = vpack.c.bf16 %v1513, %v1512
    %1516 = vrot.lane.b32.xlu0 %v430, 44
    %v1517 = vpop.permute.xlu0 %1516
    %1518 = vrot.lane.b32.xlu0 %v431, 44
    %v1519 = vpop.permute.xlu0 %1518
    %v1523 = vsel %vm277, %v1514, 0
    %v1526 = vsel %vm277, %v1515, 0
    %1528 = vmatprep.subr.bf16.mxu0 0
    %1529 = vmatpush1.bf16.msra.mxu0 %v1517
    %1530 = vmatprep.subr.bf16.mxu0 0
    %1531 = vmatpush1.bf16.msra.mxu0 %v1519
    %1532 = vmatprep.subr.bf16.mxu0 0
    %1533 = vmatpush1.bf16.msra.mxu0 0
    %1534 = vmatprep.subr.bf16.mxu0 0
    %1535 = vmatpush1.bf16.msra.mxu0 0
    %1536 = vmatprep.subr.bf16.mxu0 0
    %1537 = vmatpush1.bf16.msra.mxu0 0
    %1538 = vmatprep.subr.bf16.mxu0 0
    %1539 = vmatpush1.bf16.msra.mxu0 0
    %1540 = vmatprep.subr.bf16.mxu0 0
    %1541 = vmatpush1.bf16.msra.mxu0 0
    %1542 = vmatprep.subr.bf16.mxu0 0
    %1543 = vmatpush1.bf16.msra.mxu0 0
    %1544 = vmatprep.subr.bf16.mxu0 0
    %1545 = vmatpush1.bf16.msra.mxu0 0
    %1546 = vmatprep.subr.bf16.mxu0 0
    %1547 = vmatpush1.bf16.msra.mxu0 0
    %1548 = vmatprep.subr.bf16.mxu0 0
    %1549 = vmatpush1.bf16.msra.mxu0 0
    %1550 = vmatprep.subr.bf16.mxu0 0
    %1551 = vmatpush1.bf16.msra.mxu0 0
    %1552 = vmatprep.subr.bf16.mxu0 0
    %1553 = vmatpush1.bf16.msra.mxu0 0
    %1554 = vmatprep.subr.bf16.mxu0 0
    %1555 = vmatpush1.bf16.msra.mxu0 0
    %1556 = vmatprep.subr.bf16.mxu0 0
    %1557 = vmatpush1.bf16.msra.mxu0 0
    %1558 = vmatprep.subr.bf16.mxu0 0
    %1559 = vmatpush1.bf16.msra.mxu0 0
    %1560 = vmatprep.mubr.bf16.mxu0 0
    %1561 = vmatmul.mubr.bf16.gmra.mrb[0].mxu0 %v1523
    %v1562 = vpop.f32.mrb[0].mxu0
    %v1563 = vadd.f32 0.0, %v1562
    %v1564 = vpop.f32.mrb[0].mxu0
    %v1565 = vpop.f32.mrb[0].mxu0
    %v1566 = vadd.f32 0.0, %v1565
    %v1567 = vpop.f32.mrb[0].mxu0
    %1568 = vmatprep.mubr.bf16.mxu0 0
    %1569 = vmatmul.mubr.bf16.gmra.mrb[0].mxu0 %v1526
    %v1570 = vpop.f32.mrb[0].mxu0
    %v1571 = vadd.f32 0.0, %v1570
    %v1572 = vpop.f32.mrb[0].mxu0
    %v1573 = vpop.f32.mrb[0].mxu0
    %v1574 = vadd.f32 0.0, %v1573
    %v1575 = vpop.f32.mrb[0].mxu0
    %1576 = vdwg.mxu0
    %1581 = vrot.lane.b32.xlu0 %v1563, 20
    %v1582 = vpop.permute.xlu0 %1581
    %1583 = vrot.lane.b32.xlu0 %v1566, 20
    %v1584 = vpop.permute.xlu0 %1583
    %1585 = vrot.lane.b32.xlu0 %v1571, 20
    %v1586 = vpop.permute.xlu0 %1585
    %1587 = vrot.lane.b32.xlu0 %v1574, 20
    %v1588 = vpop.permute.xlu0 %1587
    %vm1593 = vcmask 195744
    %1594 = vst.msk [vmem:[#allocation2] sm:$0xff] %vm1593, %v1582
    %1595 = vst.msk [vmem:[#allocation2 + $0x8] sm:$0xff] %vm1593, %v1584
    %1596 = vst.msk [vmem:[#allocation2 + $0x10] sm:$0xff] %vm1593, %v1586
    %1597 = vst.msk [vmem:[#allocation2 + $0x18] sm:$0xff] %vm1593, %v1588
    %1598 = vrot.lane.b32.xlu0 %v428, 104
    %v1599 = vpop.permute.xlu0 %1598
    %1600 = vrot.lane.b32.xlu0 %v429, 104
    %v1601 = vpop.permute.xlu0 %1600
    %1602 = vrot.lane.b32.xlu0 %v430, 72
    %v1603 = vpop.permute.xlu0 %1602
    %1604 = vrot.lane.b32.xlu0 %v431, 72
    %v1605 = vpop.permute.xlu0 %1604
    %v1607 = vsel %vm438, %v1599, 0
    %v1610 = vsel %vm438, %v1601, 0
    %v1613 = vsel %vm438, %v1603, 0
    %v1616 = vsel %vm438, %v1605, 0
    %1618 = vmatprep.subr.bf16.mxu0 0
    %1619 = vmatpush1.bf16.xpose.msra.mxu0 %v1613
    %1620 = vmatprep.subr.bf16.mxu0 0
    %1621 = vmatpush1.bf16.xpose.msra.mxu0 %v1616
    %1622 = vmatprep.subr.bf16.mxu0 0
    %1623 = vmatpush1.bf16.xpose.msra.mxu0 0
    %1624 = vmatprep.subr.bf16.mxu0 0
    %1625 = vmatpush1.bf16.xpose.msra.mxu0 0
    %1626 = vmatprep.subr.bf16.mxu0 0
    %1627 = vmatpush1.bf16.xpose.msra.mxu0 0
    %1628 = vmatprep.subr.bf16.mxu0 0
    %1629 = vmatpush1.bf16.xpose.msra.mxu0 0
    %1630 = vmatprep.subr.bf16.mxu0 0
    %1631 = vmatpush1.bf16.xpose.msra.mxu0 0
    %1632 = vmatprep.subr.bf16.mxu0 0
    %1633 = vmatpush1.bf16.xpose.msra.mxu0 0
    %1634 = vmatprep.subr.bf16.mxu0 0
    %1635 = vmatpush1.bf16.xpose.msra.mxu0 0
    %1636 = vmatprep.subr.bf16.mxu0 0
    %1637 = vmatpush1.bf16.xpose.msra.mxu0 0
    %1638 = vmatprep.subr.bf16.mxu0 0
    %1639 = vmatpush1.bf16.xpose.msra.mxu0 0
    %1640 = vmatprep.subr.bf16.mxu0 0
    %1641 = vmatpush1.bf16.xpose.msra.mxu0 0
    %1642 = vmatprep.subr.bf16.mxu0 0
    %1643 = vmatpush1.bf16.xpose.msra.mxu0 0
    %1644 = vmatprep.subr.bf16.mxu0 0
    %1645 = vmatpush1.bf16.xpose.msra.mxu0 0
    %1646 = vmatprep.subr.bf16.mxu0 0
    %1647 = vmatpush1.bf16.xpose.msra.mxu0 0
    %1648 = vmatprep.subr.bf16.mxu0 0
    %1649 = vmatpush1.bf16.xpose.msra.mxu0 0
    %1650 = vmatprep.mubr.bf16.mxu0 0
    %1651 = vmatmul.mubr.bf16.gmra.mrb[0].mxu0 %v1607
    %v1652 = vpop.f32.mrb[0].mxu0
    %v1653 = vadd.f32 %v271, %v1652
    %v1654 = vpop.f32.mrb[0].mxu0
    %v1655 = vpop.f32.mrb[0].mxu0
    %v1656 = vadd.f32 %v272, %v1655
    %v1657 = vpop.f32.mrb[0].mxu0
    %1658 = vmatprep.mubr.bf16.mxu0 0
    %1659 = vmatmul.mubr.bf16.gmra.mrb[0].mxu0 %v1610
    %v1660 = vpop.f32.mrb[0].mxu0
    %v1661 = vadd.f32 %v273, %v1660
    %v1662 = vpop.f32.mrb[0].mxu0
    %v1663 = vpop.f32.mrb[0].mxu0
    %v1664 = vadd.f32 %v274, %v1663
    %v1665 = vpop.f32.mrb[0].mxu0
    %1666 = vdwg.mxu0
    %v1667 = vsel %vm277, %v1653, -inf
    %1668 = vmax.xlane.f32.xlu0 %v1667
    %v1669 = vpop.xlane.xlu0 %1668
    %v1670 = vsel %vm277, %v1656, -inf
    %1671 = vmax.xlane.f32.xlu0 %v1670
    %v1672 = vpop.xlane.xlu0 %1671
    %v1673 = vsel %vm277, %v1661, -inf
    %1674 = vmax.xlane.f32.xlu0 %v1673
    %v1675 = vpop.xlane.xlu0 %1674
    %v1676 = vsel %vm277, %v1664, -inf
    %1677 = vmax.xlane.f32.xlu0 %v1676
    %v1678 = vpop.xlane.xlu0 %1677
    %v1679 = vsub.f32 %v1653, %v1669
    %v1680 = vsub.f32 %v1656, %v1672
    %v1681 = vsub.f32 %v1661, %v1675
    %v1682 = vsub.f32 %v1664, %v1678
    %v1683 = vmul.f32 %v1679, 1.442695
    %v1684 = vpow.pop %v1683
    %v1685 = vmul.f32 %v1680, 1.442695
    %v1686 = vpow.pop %v1685
    %v1687 = vmul.f32 %v1681, 1.442695
    %v1688 = vpow.pop %v1687
    %v1689 = vmul.f32 %v1682, 1.442695
    %v1690 = vpow.pop %v1689
    %v1691 = vsel %vm277, %v1684, 0.0
    %1692 = vadd.xlane.f32.xlu0 %v1691
    %v1693 = vpop.xlane.xlu0 %1692
    %v1694 = vsel %vm277, %v1686, 0.0
    %1695 = vadd.xlane.f32.xlu0 %v1694
    %v1696 = vpop.xlane.xlu0 %1695
    %v1697 = vsel %vm277, %v1688, 0.0
    %1698 = vadd.xlane.f32.xlu0 %v1697
    %v1699 = vpop.xlane.xlu0 %1698
    %v1700 = vsel %vm277, %v1690, 0.0
    %1701 = vadd.xlane.f32.xlu0 %v1700
    %v1702 = vpop.xlane.xlu0 %1701
    %v1703 = vrcp.pop %v1693
    %v1704 = vrcp.pop %v1696
    %v1705 = vrcp.pop %v1699
    %v1706 = vrcp.pop %v1702
    %v1707 = vmul.f32 %v1684, %v1703
    %v1708 = vmul.f32 %v1686, %v1704
    %v1709 = vmul.f32 %v1688, %v1705
    %v1710 = vmul.f32 %v1690, %v1706
    %v1711 = vpack.c.bf16 %v1708, %v1707
    %v1712 = vpack.c.bf16 %v1710, %v1709
    %1713 = vrot.lane.b32.xlu0 %v430, 40
    %v1714 = vpop.permute.xlu0 %1713
    %1715 = vrot.lane.b32.xlu0 %v431, 40
    %v1716 = vpop.permute.xlu0 %1715
    %v1720 = vsel %vm277, %v1711, 0
    %v1723 = vsel %vm277, %v1712, 0
    %1725 = vmatprep.subr.bf16.mxu0 0
    %1726 = vmatpush1.bf16.msra.mxu0 %v1714
    %1727 = vmatprep.subr.bf16.mxu0 0
    %1728 = vmatpush1.bf16.msra.mxu0 %v1716
    %1729 = vmatprep.subr.bf16.mxu0 0
    %1730 = vmatpush1.bf16.msra.mxu0 0
    %1731 = vmatprep.subr.bf16.mxu0 0
    %1732 = vmatpush1.bf16.msra.mxu0 0
    %1733 = vmatprep.subr.bf16.mxu0 0
    %1734 = vmatpush1.bf16.msra.mxu0 0
    %1735 = vmatprep.subr.bf16.mxu0 0
    %1736 = vmatpush1.bf16.msra.mxu0 0
    %1737 = vmatprep.subr.bf16.mxu0 0
    %1738 = vmatpush1.bf16.msra.mxu0 0
    %1739 = vmatprep.subr.bf16.mxu0 0
    %1740 = vmatpush1.bf16.msra.mxu0 0
    %1741 = vmatprep.subr.bf16.mxu0 0
    %1742 = vmatpush1.bf16.msra.mxu0 0
    %1743 = vmatprep.subr.bf16.mxu0 0
    %1744 = vmatpush1.bf16.msra.mxu0 0
    %1745 = vmatprep.subr.bf16.mxu0 0
    %1746 = vmatpush1.bf16.msra.mxu0 0
    %1747 = vmatprep.subr.bf16.mxu0 0
    %1748 = vmatpush1.bf16.msra.mxu0 0
    %1749 = vmatprep.subr.bf16.mxu0 0
    %1750 = vmatpush1.bf16.msra.mxu0 0
    %1751 = vmatprep.subr.bf16.mxu0 0
    %1752 = vmatpush1.bf16.msra.mxu0 0
    %1753 = vmatprep.subr.bf16.mxu0 0
    %1754 = vmatpush1.bf16.msra.mxu0 0
    %1755 = vmatprep.subr.bf16.mxu0 0
    %1756 = vmatpush1.bf16.msra.mxu0 0
    %1757 = vmatprep.mubr.bf16.mxu0 0
    %1758 = vmatmul.mubr.bf16.gmra.mrb[0].mxu0 %v1720
    %v1759 = vpop.f32.mrb[0].mxu0
    %v1760 = vadd.f32 0.0, %v1759
    %v1761 = vpop.f32.mrb[0].mxu0
    %v1762 = vpop.f32.mrb[0].mxu0
    %v1763 = vadd.f32 0.0, %v1762
    %v1764 = vpop.f32.mrb[0].mxu0
    %1765 = vmatprep.mubr.bf16.mxu0 0
    %1766 = vmatmul.mubr.bf16.gmra.mrb[0].mxu0 %v1723
    %v1767 = vpop.f32.mrb[0].mxu0
    %v1768 = vadd.f32 0.0, %v1767
    %v1769 = vpop.f32.mrb[0].mxu0
    %v1770 = vpop.f32.mrb[0].mxu0
    %v1771 = vadd.f32 0.0, %v1770
    %v1772 = vpop.f32.mrb[0].mxu0
    %1773 = vdwg.mxu0
    %1778 = vrot.lane.b32.xlu0 %v1760, 24
    %v1779 = vpop.permute.xlu0 %1778
    %1780 = vrot.lane.b32.xlu0 %v1763, 24
    %v1781 = vpop.permute.xlu0 %1780
    %1782 = vrot.lane.b32.xlu0 %v1768, 24
    %v1783 = vpop.permute.xlu0 %1782
    %1784 = vrot.lane.b32.xlu0 %v1771, 24
    %v1785 = vpop.permute.xlu0 %1784
    %vm1790 = vcmask 228544
    %1791 = vst.msk [vmem:[#allocation2] sm:$0xff] %vm1790, %v1779
    %1792 = vst.msk [vmem:[#allocation2 + $0x8] sm:$0xff] %vm1790, %v1781
    %1793 = vst.msk [vmem:[#allocation2 + $0x10] sm:$0xff] %vm1790, %v1783
    %1794 = vst.msk [vmem:[#allocation2 + $0x18] sm:$0xff] %vm1790, %v1785
    %1795 = vrot.lane.b32.xlu0 %v428, 100
    %v1796 = vpop.permute.xlu0 %1795
    %1797 = vrot.lane.b32.xlu0 %v429, 100
    %v1798 = vpop.permute.xlu0 %1797
    %1799 = vrot.lane.b32.xlu0 %v430, 68
    %v1800 = vpop.permute.xlu0 %1799
    %1801 = vrot.lane.b32.xlu0 %v431, 68
    %v1802 = vpop.permute.xlu0 %1801
    %v1804 = vsel %vm438, %v1796, 0
    %v1807 = vsel %vm438, %v1798, 0
    %v1810 = vsel %vm438, %v1800, 0
    %v1813 = vsel %vm438, %v1802, 0
    %1815 = vmatprep.subr.bf16.mxu0 0
    %1816 = vmatpush1.bf16.xpose.msra.mxu0 %v1810
    %1817 = vmatprep.subr.bf16.mxu0 0
    %1818 = vmatpush1.bf16.xpose.msra.mxu0 %v1813
    %1819 = vmatprep.subr.bf16.mxu0 0
    %1820 = vmatpush1.bf16.xpose.msra.mxu0 0
    %1821 = vmatprep.subr.bf16.mxu0 0
    %1822 = vmatpush1.bf16.xpose.msra.mxu0 0
    %1823 = vmatprep.subr.bf16.mxu0 0
    %1824 = vmatpush1.bf16.xpose.msra.mxu0 0
    %1825 = vmatprep.subr.bf16.mxu0 0
    %1826 = vmatpush1.bf16.xpose.msra.mxu0 0
    %1827 = vmatprep.subr.bf16.mxu0 0
    %1828 = vmatpush1.bf16.xpose.msra.mxu0 0
    %1829 = vmatprep.subr.bf16.mxu0 0
    %1830 = vmatpush1.bf16.xpose.msra.mxu0 0
    %1831 = vmatprep.subr.bf16.mxu0 0
    %1832 = vmatpush1.bf16.xpose.msra.mxu0 0
    %1833 = vmatprep.subr.bf16.mxu0 0
    %1834 = vmatpush1.bf16.xpose.msra.mxu0 0
    %1835 = vmatprep.subr.bf16.mxu0 0
    %1836 = vmatpush1.bf16.xpose.msra.mxu0 0
    %1837 = vmatprep.subr.bf16.mxu0 0
    %1838 = vmatpush1.bf16.xpose.msra.mxu0 0
    %1839 = vmatprep.subr.bf16.mxu0 0
    %1840 = vmatpush1.bf16.xpose.msra.mxu0 0
    %1841 = vmatprep.subr.bf16.mxu0 0
    %1842 = vmatpush1.bf16.xpose.msra.mxu0 0
    %1843 = vmatprep.subr.bf16.mxu0 0
    %1844 = vmatpush1.bf16.xpose.msra.mxu0 0
    %1845 = vmatprep.subr.bf16.mxu0 0
    %1846 = vmatpush1.bf16.xpose.msra.mxu0 0
    %1847 = vmatprep.mubr.bf16.mxu0 0
    %1848 = vmatmul.mubr.bf16.gmra.mrb[0].mxu0 %v1804
    %v1849 = vpop.f32.mrb[0].mxu0
    %v1850 = vadd.f32 %v271, %v1849
    %v1851 = vpop.f32.mrb[0].mxu0
    %v1852 = vpop.f32.mrb[0].mxu0
    %v1853 = vadd.f32 %v272, %v1852
    %v1854 = vpop.f32.mrb[0].mxu0
    %1855 = vmatprep.mubr.bf16.mxu0 0
    %1856 = vmatmul.mubr.bf16.gmra.mrb[0].mxu0 %v1807
    %v1857 = vpop.f32.mrb[0].mxu0
    %v1858 = vadd.f32 %v273, %v1857
    %v1859 = vpop.f32.mrb[0].mxu0
    %v1860 = vpop.f32.mrb[0].mxu0
    %v1861 = vadd.f32 %v274, %v1860
    %v1862 = vpop.f32.mrb[0].mxu0
    %1863 = vdwg.mxu0
    %v1864 = vsel %vm277, %v1850, -inf
    %1865 = vmax.xlane.f32.xlu0 %v1864
    %v1866 = vpop.xlane.xlu0 %1865
    %v1867 = vsel %vm277, %v1853, -inf
    %1868 = vmax.xlane.f32.xlu0 %v1867
    %v1869 = vpop.xlane.xlu0 %1868
    %v1870 = vsel %vm277, %v1858, -inf
    %1871 = vmax.xlane.f32.xlu0 %v1870
    %v1872 = vpop.xlane.xlu0 %1871
    %v1873 = vsel %vm277, %v1861, -inf
    %1874 = vmax.xlane.f32.xlu0 %v1873
    %v1875 = vpop.xlane.xlu0 %1874
    %v1876 = vsub.f32 %v1850, %v1866
    %v1877 = vsub.f32 %v1853, %v1869
    %v1878 = vsub.f32 %v1858, %v1872
    %v1879 = vsub.f32 %v1861, %v1875
    %v1880 = vmul.f32 %v1876, 1.442695
    %v1881 = vpow.pop %v1880
    %v1882 = vmul.f32 %v1877, 1.442695
    %v1883 = vpow.pop %v1882
    %v1884 = vmul.f32 %v1878, 1.442695
    %v1885 = vpow.pop %v1884
    %v1886 = vmul.f32 %v1879, 1.442695
    %v1887 = vpow.pop %v1886
    %v1888 = vsel %vm277, %v1881, 0.0
    %1889 = vadd.xlane.f32.xlu0 %v1888
    %v1890 = vpop.xlane.xlu0 %1889
    %v1891 = vsel %vm277, %v1883, 0.0
    %1892 = vadd.xlane.f32.xlu0 %v1891
    %v1893 = vpop.xlane.xlu0 %1892
    %v1894 = vsel %vm277, %v1885, 0.0
    %1895 = vadd.xlane.f32.xlu0 %v1894
    %v1896 = vpop.xlane.xlu0 %1895
    %v1897 = vsel %vm277, %v1887, 0.0
    %1898 = vadd.xlane.f32.xlu0 %v1897
    %v1899 = vpop.xlane.xlu0 %1898
    %v1900 = vrcp.pop %v1890
    %v1901 = vrcp.pop %v1893
    %v1902 = vrcp.pop %v1896
    %v1903 = vrcp.pop %v1899
    %v1904 = vmul.f32 %v1881, %v1900
    %v1905 = vmul.f32 %v1883, %v1901
    %v1906 = vmul.f32 %v1885, %v1902
    %v1907 = vmul.f32 %v1887, %v1903
    %v1908 = vpack.c.bf16 %v1905, %v1904
    %v1909 = vpack.c.bf16 %v1907, %v1906
    %1910 = vrot.lane.b32.xlu0 %v430, 36
    %v1911 = vpop.permute.xlu0 %1910
    %1912 = vrot.lane.b32.xlu0 %v431, 36
    %v1913 = vpop.permute.xlu0 %1912
    %v1917 = vsel %vm277, %v1908, 0
    %v1920 = vsel %vm277, %v1909, 0
    %1922 = vmatprep.subr.bf16.mxu0 0
    %1923 = vmatpush1.bf16.msra.mxu0 %v1911
    %1924 = vmatprep.subr.bf16.mxu0 0
    %1925 = vmatpush1.bf16.msra.mxu0 %v1913
    %1926 = vmatprep.subr.bf16.mxu0 0
    %1927 = vmatpush1.bf16.msra.mxu0 0
    %1928 = vmatprep.subr.bf16.mxu0 0
    %1929 = vmatpush1.bf16.msra.mxu0 0
    %1930 = vmatprep.subr.bf16.mxu0 0
    %1931 = vmatpush1.bf16.msra.mxu0 0
    %1932 = vmatprep.subr.bf16.mxu0 0
    %1933 = vmatpush1.bf16.msra.mxu0 0
    %1934 = vmatprep.subr.bf16.mxu0 0
    %1935 = vmatpush1.bf16.msra.mxu0 0
    %1936 = vmatprep.subr.bf16.mxu0 0
    %1937 = vmatpush1.bf16.msra.mxu0 0
    %1938 = vmatprep.subr.bf16.mxu0 0
    %1939 = vmatpush1.bf16.msra.mxu0 0
    %1940 = vmatprep.subr.bf16.mxu0 0
    %1941 = vmatpush1.bf16.msra.mxu0 0
    %1942 = vmatprep.subr.bf16.mxu0 0
    %1943 = vmatpush1.bf16.msra.mxu0 0
    %1944 = vmatprep.subr.bf16.mxu0 0
    %1945 = vmatpush1.bf16.msra.mxu0 0
    %1946 = vmatprep.subr.bf16.mxu0 0
    %1947 = vmatpush1.bf16.msra.mxu0 0
    %1948 = vmatprep.subr.bf16.mxu0 0
    %1949 = vmatpush1.bf16.msra.mxu0 0
    %1950 = vmatprep.subr.bf16.mxu0 0
    %1951 = vmatpush1.bf16.msra.mxu0 0
    %1952 = vmatprep.subr.bf16.mxu0 0
    %1953 = vmatpush1.bf16.msra.mxu0 0
    %1954 = vmatprep.mubr.bf16.mxu0 0
    %1955 = vmatmul.mubr.bf16.gmra.mrb[0].mxu0 %v1917
    %v1956 = vpop.f32.mrb[0].mxu0
    %v1957 = vadd.f32 0.0, %v1956
    %v1958 = vpop.f32.mrb[0].mxu0
    %v1959 = vpop.f32.mrb[0].mxu0
    %v1960 = vadd.f32 0.0, %v1959
    %v1961 = vpop.f32.mrb[0].mxu0
    %1962 = vmatprep.mubr.bf16.mxu0 0
    %1963 = vmatmul.mubr.bf16.gmra.mrb[0].mxu0 %v1920
    %v1964 = vpop.f32.mrb[0].mxu0
    %v1965 = vadd.f32 0.0, %v1964
    %v1966 = vpop.f32.mrb[0].mxu0
    %v1967 = vpop.f32.mrb[0].mxu0
    %v1968 = vadd.f32 0.0, %v1967
    %v1969 = vpop.f32.mrb[0].mxu0
    %1970 = vdwg.mxu0
    %1975 = vrot.lane.b32.xlu0 %v1957, 28
    %v1976 = vpop.permute.xlu0 %1975
    %1977 = vrot.lane.b32.xlu0 %v1960, 28
    %v1978 = vpop.permute.xlu0 %1977
    %1979 = vrot.lane.b32.xlu0 %v1965, 28
    %v1980 = vpop.permute.xlu0 %1979
    %1981 = vrot.lane.b32.xlu0 %v1968, 28
    %v1982 = vpop.permute.xlu0 %1981
    %vm1987 = vcmask 261344
    %1988 = vst.msk [vmem:[#allocation2] sm:$0xff] %vm1987, %v1976
    %1989 = vst.msk [vmem:[#allocation2 + $0x8] sm:$0xff] %vm1987, %v1978
    %1990 = vst.msk [vmem:[#allocation2 + $0x10] sm:$0xff] %vm1987, %v1980
    %1991 = vst.msk [vmem:[#allocation2 + $0x18] sm:$0xff] %vm1987, %v1982
    %v1992 = vld [vmem:[#allocation2] sm:$0xff]
    %v1993 = vld [vmem:[#allocation2 + $0x8] sm:$0xff]
    %v1994 = vld [vmem:[#allocation2 + $0x10] sm:$0xff]
    %v1995 = vld [vmem:[#allocation2 + $0x18] sm:$0xff]
    %v1996 = vpack.c.bf16 %v1993, %v1992
    %v1997 = vpack.c.bf16 %v1995, %v1994
    %v1998 = vld [vmem:[%s6] sm:$0xf]
    %v1999 = vld [vmem:[%s6 + $0x4] sm:$0xf]
    %v2000 = vld [vmem:[%s6 + $0x8] sm:$0xf]
    %v2001 = vld [vmem:[%s6 + $0xc] sm:$0xf]
    %v2002 = vld [vmem:[%s7] sm:$0x1]
    %v2004 = vlaneseq
    %v2005 = vshrl.u32 %v2004, 7
    %v2006 = vsub.s32 0, %v2005
    %v2007 = vrot.slane %v2002, %v2006
    %v2013 = vunpack.c.l.b16 %v1998
    %v2014 = vunpack.c.l.b16 %v1999
    %v2015 = vunpack.c.l.b16 %v2000
    %v2016 = vunpack.c.l.b16 %v2001
    %v2017 = vpack.c.b16 %v2014, %v2013
    %v2018 = vpack.c.b16 %v2016, %v2015
    %v2022 = vsel %vm277, %v1996, 0
    %v2025 = vsel %vm277, %v1997, 0
    %2027 = vmatprep.subr.bf16.mxu0 0
    %2028 = vmatpush1.bf16.msra.mxu0 %v2017
    %2029 = vmatprep.subr.bf16.mxu0 0
    %2030 = vmatpush1.bf16.msra.mxu0 %v2018
    %2031 = vmatprep.subr.bf16.mxu0 0
    %2032 = vmatpush1.bf16.msra.mxu0 0
    %2033 = vmatprep.subr.bf16.mxu0 0
    %2034 = vmatpush1.bf16.msra.mxu0 0
    %2035 = vmatprep.subr.bf16.mxu0 0
    %2036 = vmatpush1.bf16.msra.mxu0 0
    %2037 = vmatprep.subr.bf16.mxu0 0
    %2038 = vmatpush1.bf16.msra.mxu0 0
    %2039 = vmatprep.subr.bf16.mxu0 0
    %2040 = vmatpush1.bf16.msra.mxu0 0
    %2041 = vmatprep.subr.bf16.mxu0 0
    %2042 = vmatpush1.bf16.msra.mxu0 0
    %2043 = vmatprep.subr.bf16.mxu0 0
    %2044 = vmatpush1.bf16.msra.mxu0 0
    %2045 = vmatprep.subr.bf16.mxu0 0
    %2046 = vmatpush1.bf16.msra.mxu0 0
    %2047 = vmatprep.subr.bf16.mxu0 0
    %2048 = vmatpush1.bf16.msra.mxu0 0
    %2049 = vmatprep.subr.bf16.mxu0 0
    %2050 = vmatpush1.bf16.msra.mxu0 0
    %2051 = vmatprep.subr.bf16.mxu0 0
    %2052 = vmatpush1.bf16.msra.mxu0 0
    %2053 = vmatprep.subr.bf16.mxu0 0
    %2054 = vmatpush1.bf16.msra.mxu0 0
    %2055 = vmatprep.subr.bf16.mxu0 0
    %2056 = vmatpush1.bf16.msra.mxu0 0
    %2057 = vmatprep.subr.bf16.mxu0 0
    %2058 = vmatpush1.bf16.msra.mxu0 0
    %2059 = vmatprep.mubr.bf16.mxu0 0
    %2060 = vmatmul.mubr.bf16.gmra.mrb[0].mxu0 %v2022
    %v2061 = vpop.f32.mrb[0].mxu0
    %v2062 = vadd.f32 %v2007, %v2061
    %v2063 = vpop.f32.mrb[0].mxu0
    %v2064 = vpop.f32.mrb[0].mxu0
    %v2065 = vadd.f32 %v2007, %v2064
    %v2066 = vpop.f32.mrb[0].mxu0
    %2067 = vmatprep.mubr.bf16.mxu0 0
    %2068 = vmatmul.mubr.bf16.gmra.mrb[0].mxu0 %v2025
    %v2069 = vpop.f32.mrb[0].mxu0
    %v2070 = vadd.f32 %v2007, %v2069
    %v2071 = vpop.f32.mrb[0].mxu0
    %v2072 = vpop.f32.mrb[0].mxu0
    %v2073 = vadd.f32 %v2007, %v2072
    %v2074 = vpop.f32.mrb[0].mxu0
    %2075 = vdwg.mxu0
    %v2076 = vadd.f32 %v196, %v2062
    %v2077 = vadd.f32 %v199, %v2065
    %v2078 = vadd.f32 %v204, %v2070
    %v2079 = vadd.f32 %v207, %v2073
    %v2080 = vld [vmem:[%s8] sm:$0x1]
    %v2081 = vld [vmem:[%s9] sm:$0x1]
    %v2082 = vsel %vm277, %v2076, 0.0
    %2083 = vadd.xlane.f32.xlu0 %v2082
    %v2084 = vpop.xlane.xlu0 %2083
    %v2085 = vsel %vm277, %v2077, 0.0
    %2086 = vadd.xlane.f32.xlu0 %v2085
    %v2087 = vpop.xlane.xlu0 %2086
    %v2088 = vsel %vm277, %v2078, 0.0
    %2089 = vadd.xlane.f32.xlu0 %v2088
    %v2090 = vpop.xlane.xlu0 %2089
    %v2091 = vsel %vm277, %v2079, 0.0
    %2092 = vadd.xlane.f32.xlu0 %v2091
    %v2093 = vpop.xlane.xlu0 %2092
    %v2094 = vmul.f32 %v2084, %v290
    %v2095 = vmul.f32 %v2087, %v290
    %v2096 = vmul.f32 %v2090, %v290
    %v2097 = vmul.f32 %v2093, %v290
    %v2098 = vsub.f32 %v2076, %v2094
    %v2099 = vsub.f32 %v2077, %v2095
    %v2100 = vsub.f32 %v2078, %v2096
    %v2101 = vsub.f32 %v2079, %v2097
    %v2102 = vmul.f32 %v2098, %v2098
    %v2103 = vmul.f32 %v2099, %v2099
    %v2104 = vmul.f32 %v2100, %v2100
    %v2105 = vmul.f32 %v2101, %v2101
    %v2106 = vsel %vm277, %v2102, 0.0
    %2107 = vadd.xlane.f32.xlu0 %v2106
    %v2108 = vpop.xlane.xlu0 %2107
    %v2109 = vsel %vm277, %v2103, 0.0
    %2110 = vadd.xlane.f32.xlu0 %v2109
    %v2111 = vpop.xlane.xlu0 %2110
    %v2112 = vsel %vm277, %v2104, 0.0
    %2113 = vadd.xlane.f32.xlu0 %v2112
    %v2114 = vpop.xlane.xlu0 %2113
    %v2115 = vsel %vm277, %v2105, 0.0
    %2116 = vadd.xlane.f32.xlu0 %v2115
    %v2117 = vpop.xlane.xlu0 %2116
    %v2118 = vmul.f32 %v2108, %v290
    %v2119 = vmul.f32 %v2111, %v290
    %v2120 = vmul.f32 %v2114, %v290
    %v2121 = vmul.f32 %v2117, %v290
    %v2122 = vadd.f32 %v2118, 1e-05
    %v2123 = vadd.f32 %v2119, 1e-05
    %v2124 = vadd.f32 %v2120, 1e-05
    %v2125 = vadd.f32 %v2121, 1e-05
    %v2126 = vrsqrt.pop %v2122
    %v2127 = vrsqrt.pop %v2123
    %v2128 = vrsqrt.pop %v2124
    %v2129 = vrsqrt.pop %v2125
    %v2130 = vmul.f32 %v2098, %v2126
    %v2131 = vmul.f32 %v2099, %v2127
    %v2132 = vmul.f32 %v2100, %v2128
    %v2133 = vmul.f32 %v2101, %v2129
    %v2135 = vlaneseq
    %v2136 = vshrl.u32 %v2135, 7
    %v2137 = vsub.s32 0, %v2136
    %v2138 = vrot.slane %v2080, %v2137
    %v2140 = vmul.f32 %v2130, %v2138
    %v2141 = vmul.f32 %v2131, %v2138
    %v2142 = vmul.f32 %v2132, %v2138
    %v2143 = vmul.f32 %v2133, %v2138
    %v2145 = vlaneseq
    %v2146 = vshrl.u32 %v2145, 7
    %v2147 = vsub.s32 0, %v2146
    %v2148 = vrot.slane %v2081, %v2147
    %v2150 = vadd.f32 %v2140, %v2148
    %v2151 = vadd.f32 %v2141, %v2148
    %v2152 = vadd.f32 %v2142, %v2148
    %v2153 = vadd.f32 %v2143, %v2148
    %v2154 = vpack.c.bf16 %v2151, %v2150
    %v2155 = vpack.c.bf16 %v2153, %v2152
    %v2156 = vld [vmem:[%s10] sm:$0xf]
    %v2157 = vld [vmem:[%s10 + $0x4] sm:$0xf]
    %v2158 = vld [vmem:[%s10 + $0x8] sm:$0xf]
    %v2159 = vld [vmem:[%s10 + $0xc] sm:$0xf]
    %v2160 = vld [vmem:[%s11] sm:$0x1]
    %v2162 = vlaneseq
    %v2163 = vshrl.u32 %v2162, 7
    %v2164 = vsub.s32 0, %v2163
    %v2165 = vrot.slane %v2160, %v2164
    %v2171 = vunpack.c.l.b16 %v2156
    %v2172 = vunpack.c.l.b16 %v2157
    %v2173 = vunpack.c.l.b16 %v2158
    %v2174 = vunpack.c.l.b16 %v2159
    %v2175 = vpack.c.b16 %v2172, %v2171
    %v2176 = vpack.c.b16 %v2174, %v2173
    %v2180 = vsel %vm277, %v2154, 0
    %v2183 = vsel %vm277, %v2155, 0
    %2185 = vmatprep.subr.bf16.mxu0 0
    %2186 = vmatpush1.bf16.msra.mxu0 %v2175
    %2187 = vmatprep.subr.bf16.mxu0 0
    %2188 = vmatpush1.bf16.msra.mxu0 %v2176
    %2189 = vmatprep.subr.bf16.mxu0 0
    %2190 = vmatpush1.bf16.msra.mxu0 0
    %2191 = vmatprep.subr.bf16.mxu0 0
    %2192 = vmatpush1.bf16.msra.mxu0 0
    %2193 = vmatprep.subr.bf16.mxu0 0
    %2194 = vmatpush1.bf16.msra.mxu0 0
    %2195 = vmatprep.subr.bf16.mxu0 0
    %2196 = vmatpush1.bf16.msra.mxu0 0
    %2197 = vmatprep.subr.bf16.mxu0 0
    %2198 = vmatpush1.bf16.msra.mxu0 0
    %2199 = vmatprep.subr.bf16.mxu0 0
    %2200 = vmatpush1.bf16.msra.mxu0 0
    %2201 = vmatprep.subr.bf16.mxu0 0
    %2202 = vmatpush1.bf16.msra.mxu0 0
    %2203 = vmatprep.subr.bf16.mxu0 0
    %2204 = vmatpush1.bf16.msra.mxu0 0
    %2205 = vmatprep.subr.bf16.mxu0 0
    %2206 = vmatpush1.bf16.msra.mxu0 0
    %2207 = vmatprep.subr.bf16.mxu0 0
    %2208 = vmatpush1.bf16.msra.mxu0 0
    %2209 = vmatprep.subr.bf16.mxu0 0
    %2210 = vmatpush1.bf16.msra.mxu0 0
    %2211 = vmatprep.subr.bf16.mxu0 0
    %2212 = vmatpush1.bf16.msra.mxu0 0
    %2213 = vmatprep.subr.bf16.mxu0 0
    %2214 = vmatpush1.bf16.msra.mxu0 0
    %2215 = vmatprep.subr.bf16.mxu0 0
    %2216 = vmatpush1.bf16.msra.mxu0 0
    %2217 = vmatprep.mubr.bf16.mxu0 0
    %2218 = vmatmul.mubr.bf16.gmra.mrb[0].mxu0 %v2180
    %v2219 = vpop.f32.mrb[0].mxu0
    %v2220 = vadd.f32 %v2165, %v2219
    %v2221 = vpop.f32.mrb[0].mxu0
    %v2222 = vpop.f32.mrb[0].mxu0
    %v2223 = vadd.f32 %v2165, %v2222
    %v2224 = vpop.f32.mrb[0].mxu0
    %2225 = vmatprep.mubr.bf16.mxu0 0
    %2226 = vmatmul.mubr.bf16.gmra.mrb[0].mxu0 %v2183
    %v2227 = vpop.f32.mrb[0].mxu0
    %v2228 = vadd.f32 %v2165, %v2227
    %v2229 = vpop.f32.mrb[0].mxu0
    %v2230 = vpop.f32.mrb[0].mxu0
    %v2231 = vadd.f32 %v2165, %v2230
    %v2232 = vpop.f32.mrb[0].mxu0
    %2233 = vdwg.mxu0
    %v2234 = vmax.f32 %v2220, 0.0
    %v2235 = vmax.f32 %v2223, 0.0
    %v2236 = vmax.f32 %v2228, 0.0
    %v2237 = vmax.f32 %v2231, 0.0
    %v2238 = vpack.c.bf16 %v2235, %v2234
    %v2239 = vpack.c.bf16 %v2237, %v2236
    %v2240 = vld [vmem:[%s12] sm:$0xf]
    %v2241 = vld [vmem:[%s12 + $0x4] sm:$0xf]
    %v2242 = vld [vmem:[%s12 + $0x8] sm:$0xf]
    %v2243 = vld [vmem:[%s12 + $0xc] sm:$0xf]
    %v2244 = vld [vmem:[%s12 + $0x10] sm:$0xf]
    %v2245 = vld [vmem:[%s12 + $0x14] sm:$0xf]
    %v2246 = vld [vmem:[%s12 + $0x18] sm:$0xf]
    %v2247 = vld [vmem:[%s12 + $0x1c] sm:$0xf]
    %v2248 = vld [vmem:[%s12 + $0x20] sm:$0xf]
    %v2249 = vld [vmem:[%s12 + $0x24] sm:$0xf]
    %v2250 = vld [vmem:[%s12 + $0x28] sm:$0xf]
    %v2251 = vld [vmem:[%s12 + $0x2c] sm:$0xf]
    %v2252 = vld [vmem:[%s12 + $0x30] sm:$0xf]
    %v2253 = vld [vmem:[%s12 + $0x34] sm:$0xf]
    %v2254 = vld [vmem:[%s12 + $0x38] sm:$0xf]
    %v2255 = vld [vmem:[%s12 + $0x3c] sm:$0xf]
    %v2256 = vld [vmem:[%s13] sm:$0x1]
    %v2258 = vlaneseq
    %v2259 = vshrl.u32 %v2258, 7
    %v2260 = vsub.s32 0, %v2259
    %v2261 = vrot.slane %v2256, %v2260
    %v2279 = vunpack.c.l.b16 %v2240
    %v2280 = vunpack.c.l.b16 %v2241
    %v2281 = vunpack.c.l.b16 %v2242
    %v2282 = vunpack.c.l.b16 %v2243
    %v2283 = vunpack.c.l.b16 %v2244
    %v2284 = vunpack.c.l.b16 %v2245
    %v2285 = vunpack.c.l.b16 %v2246
    %v2286 = vunpack.c.l.b16 %v2247
    %v2287 = vunpack.c.l.b16 %v2248
    %v2288 = vunpack.c.l.b16 %v2249
    %v2289 = vunpack.c.l.b16 %v2250
    %v2290 = vunpack.c.l.b16 %v2251
    %v2291 = vunpack.c.l.b16 %v2252
    %v2292 = vunpack.c.l.b16 %v2253
    %v2293 = vunpack.c.l.b16 %v2254
    %v2294 = vunpack.c.l.b16 %v2255
    %v2295 = vpack.c.b16 %v2280, %v2279
    %v2296 = vpack.c.b16 %v2282, %v2281
    %v2297 = vpack.c.b16 %v2284, %v2283
    %v2298 = vpack.c.b16 %v2286, %v2285
    %v2299 = vpack.c.b16 %v2288, %v2287
    %v2300 = vpack.c.b16 %v2290, %v2289
    %v2301 = vpack.c.b16 %v2292, %v2291
    %v2302 = vpack.c.b16 %v2294, %v2293
    %2311 = vmatprep.subr.bf16.mxu0 0
    %2312 = vmatpush1.bf16.msra.mxu0 %v2295
    %2313 = vmatprep.subr.bf16.mxu0 0
    %2314 = vmatpush1.bf16.msra.mxu0 %v2296
    %2315 = vmatprep.subr.bf16.mxu0 0
    %2316 = vmatpush1.bf16.msra.mxu0 %v2297
    %2317 = vmatprep.subr.bf16.mxu0 0
    %2318 = vmatpush1.bf16.msra.mxu0 %v2298
    %2319 = vmatprep.subr.bf16.mxu0 0
    %2320 = vmatpush1.bf16.msra.mxu0 %v2299
    %2321 = vmatprep.subr.bf16.mxu0 0
    %2322 = vmatpush1.bf16.msra.mxu0 %v2300
    %2323 = vmatprep.subr.bf16.mxu0 0
    %2324 = vmatpush1.bf16.msra.mxu0 %v2301
    %2325 = vmatprep.subr.bf16.mxu0 0
    %2326 = vmatpush1.bf16.msra.mxu0 %v2302
    %2327 = vmatprep.subr.bf16.mxu0 0
    %2328 = vmatpush1.bf16.msra.mxu0 0
    %2329 = vmatprep.subr.bf16.mxu0 0
    %2330 = vmatpush1.bf16.msra.mxu0 0
    %2331 = vmatprep.subr.bf16.mxu0 0
    %2332 = vmatpush1.bf16.msra.mxu0 0
    %2333 = vmatprep.subr.bf16.mxu0 0
    %2334 = vmatpush1.bf16.msra.mxu0 0
    %2335 = vmatprep.subr.bf16.mxu0 0
    %2336 = vmatpush1.bf16.msra.mxu0 0
    %2337 = vmatprep.subr.bf16.mxu0 0
    %2338 = vmatpush1.bf16.msra.mxu0 0
    %2339 = vmatprep.subr.bf16.mxu0 0
    %2340 = vmatpush1.bf16.msra.mxu0 0
    %2341 = vmatprep.subr.bf16.mxu0 0
    %2342 = vmatpush1.bf16.msra.mxu0 0
    %2343 = vmatprep.mubr.bf16.mxu0 0
    %2344 = vmatmul.mubr.bf16.gmra.mrb[0].mxu0 %v2238
    %v2345 = vpop.f32.mrb[0].mxu0
    %v2346 = vadd.f32 %v2261, %v2345
    %v2347 = vpop.f32.mrb[0].mxu0
    %v2348 = vpop.f32.mrb[0].mxu0
    %v2349 = vadd.f32 %v2261, %v2348
    %v2350 = vpop.f32.mrb[0].mxu0
    %2351 = vmatprep.mubr.bf16.mxu0 0
    %2352 = vmatmul.mubr.bf16.gmra.mrb[0].mxu0 %v2239
    %v2353 = vpop.f32.mrb[0].mxu0
    %v2354 = vadd.f32 %v2261, %v2353
    %v2355 = vpop.f32.mrb[0].mxu0
    %v2356 = vpop.f32.mrb[0].mxu0
    %v2357 = vadd.f32 %v2261, %v2356
    %v2358 = vpop.f32.mrb[0].mxu0
    %2359 = vdwg.mxu0
    %v2360 = vadd.f32 %v2076, %v2346
    %v2361 = vadd.f32 %v2077, %v2349
    %v2362 = vadd.f32 %v2078, %v2354
    %v2363 = vadd.f32 %v2079, %v2357
    %s2364 = scalar_lea.vmem %s3, 1
    %v2365 = vld [vmem:[%s2364] sm:$0x1]
    %s2366 = scalar_lea.vmem %s4, 1
    %v2367 = vld [vmem:[%s2366] sm:$0x1]
    %v2368 = vsel %vm277, %v2360, 0.0
    %2369 = vadd.xlane.f32.xlu0 %v2368
    %v2370 = vpop.xlane.xlu0 %2369
    %v2371 = vsel %vm277, %v2361, 0.0
    %2372 = vadd.xlane.f32.xlu0 %v2371
    %v2373 = vpop.xlane.xlu0 %2372
    %v2374 = vsel %vm277, %v2362, 0.0
    %2375 = vadd.xlane.f32.xlu0 %v2374
    %v2376 = vpop.xlane.xlu0 %2375
    %v2377 = vsel %vm277, %v2363, 0.0
    %2378 = vadd.xlane.f32.xlu0 %v2377
    %v2379 = vpop.xlane.xlu0 %2378
    %v2380 = vmul.f32 %v2370, %v290
    %v2381 = vmul.f32 %v2373, %v290
    %v2382 = vmul.f32 %v2376, %v290
    %v2383 = vmul.f32 %v2379, %v290
    %v2384 = vsub.f32 %v2360, %v2380
    %v2385 = vsub.f32 %v2361, %v2381
    %v2386 = vsub.f32 %v2362, %v2382
    %v2387 = vsub.f32 %v2363, %v2383
    %v2388 = vmul.f32 %v2384, %v2384
    %v2389 = vmul.f32 %v2385, %v2385
    %v2390 = vmul.f32 %v2386, %v2386
    %v2391 = vmul.f32 %v2387, %v2387
    %v2392 = vsel %vm277, %v2388, 0.0
    %2393 = vadd.xlane.f32.xlu0 %v2392
    %v2394 = vpop.xlane.xlu0 %2393
    %v2395 = vsel %vm277, %v2389, 0.0
    %2396 = vadd.xlane.f32.xlu0 %v2395
    %v2397 = vpop.xlane.xlu0 %2396
    %v2398 = vsel %vm277, %v2390, 0.0
    %2399 = vadd.xlane.f32.xlu0 %v2398
    %v2400 = vpop.xlane.xlu0 %2399
    %v2401 = vsel %vm277, %v2391, 0.0
    %2402 = vadd.xlane.f32.xlu0 %v2401
    %v2403 = vpop.xlane.xlu0 %2402
    %v2404 = vmul.f32 %v2394, %v290
    %v2405 = vmul.f32 %v2397, %v290
    %v2406 = vmul.f32 %v2400, %v290
    %v2407 = vmul.f32 %v2403, %v290
    %v2408 = vadd.f32 %v2404, 1e-05
    %v2409 = vadd.f32 %v2405, 1e-05
    %v2410 = vadd.f32 %v2406, 1e-05
    %v2411 = vadd.f32 %v2407, 1e-05
    %v2412 = vrsqrt.pop %v2408
    %v2413 = vrsqrt.pop %v2409
    %v2414 = vrsqrt.pop %v2410
    %v2415 = vrsqrt.pop %v2411
    %v2416 = vmul.f32 %v2384, %v2412
    %v2417 = vmul.f32 %v2385, %v2413
    %v2418 = vmul.f32 %v2386, %v2414
    %v2419 = vmul.f32 %v2387, %v2415
    %v2421 = vlaneseq
    %v2422 = vshrl.u32 %v2421, 7
    %v2423 = vsub.s32 0, %v2422
    %v2424 = vrot.slane %v2365, %v2423
    %v2426 = vmul.f32 %v2416, %v2424
    %v2427 = vmul.f32 %v2417, %v2424
    %v2428 = vmul.f32 %v2418, %v2424
    %v2429 = vmul.f32 %v2419, %v2424
    %v2431 = vlaneseq
    %v2432 = vshrl.u32 %v2431, 7
    %v2433 = vsub.s32 0, %v2432
    %v2434 = vrot.slane %v2367, %v2433
    %v2436 = vadd.f32 %v2426, %v2434
    %v2437 = vadd.f32 %v2427, %v2434
    %v2438 = vadd.f32 %v2428, %v2434
    %v2439 = vadd.f32 %v2429, %v2434
    %v2440 = vpack.c.bf16 %v2437, %v2436
    %v2441 = vpack.c.bf16 %v2439, %v2438
    %s2442 = scalar_lea.vmem %s5, 16
    %v2443 = vld [vmem:[%s2442] sm:$0xf]
    %v2444 = vld [vmem:[%s2442 + $0x4] sm:$0xf]
    %v2445 = vld [vmem:[%s2442 + $0x8] sm:$0xf]
    %v2446 = vld [vmem:[%s2442 + $0xc] sm:$0xf]
    %v2451 = vunpack.c.l.b16 %v2443
    %v2452 = vunpack.c.l.b16 %v2444
    %v2453 = vunpack.c.l.b16 %v2445
    %v2454 = vunpack.c.l.b16 %v2446
    %v2455 = vpack.c.b16 %v2452, %v2451
    %v2456 = vpack.c.b16 %v2454, %v2453
    %v2460 = vsel %vm277, %v2440, 0
    %v2463 = vsel %vm277, %v2441, 0
    %2465 = vmatprep.subr.bf16.mxu0 0
    %2466 = vmatpush1.bf16.msra.mxu0 %v2455
    %2467 = vmatprep.subr.bf16.mxu0 0
    %2468 = vmatpush1.bf16.msra.mxu0 %v2456
    %2469 = vmatprep.subr.bf16.mxu0 0
    %2470 = vmatpush1.bf16.msra.mxu0 0
    %2471 = vmatprep.subr.bf16.mxu0 0
    %2472 = vmatpush1.bf16.msra.mxu0 0
    %2473 = vmatprep.subr.bf16.mxu0 0
    %2474 = vmatpush1.bf16.msra.mxu0 0
    %2475 = vmatprep.subr.bf16.mxu0 0
    %2476 = vmatpush1.bf16.msra.mxu0 0
    %2477 = vmatprep.subr.bf16.mxu0 0
    %2478 = vmatpush1.bf16.msra.mxu0 0
    %2479 = vmatprep.subr.bf16.mxu0 0
    %2480 = vmatpush1.bf16.msra.mxu0 0
    %2481 = vmatprep.subr.bf16.mxu0 0
    %2482 = vmatpush1.bf16.msra.mxu0 0
    %2483 = vmatprep.subr.bf16.mxu0 0
    %2484 = vmatpush1.bf16.msra.mxu0 0
    %2485 = vmatprep.subr.bf16.mxu0 0
    %2486 = vmatpush1.bf16.msra.mxu0 0
    %2487 = vmatprep.subr.bf16.mxu0 0
    %2488 = vmatpush1.bf16.msra.mxu0 0
    %2489 = vmatprep.subr.bf16.mxu0 0
    %2490 = vmatpush1.bf16.msra.mxu0 0
    %2491 = vmatprep.subr.bf16.mxu0 0
    %2492 = vmatpush1.bf16.msra.mxu0 0
    %2493 = vmatprep.subr.bf16.mxu0 0
    %2494 = vmatpush1.bf16.msra.mxu0 0
    %2495 = vmatprep.subr.bf16.mxu0 0
    %2496 = vmatpush1.bf16.msra.mxu0 0
    %2497 = vmatprep.mubr.bf16.mxu0 0
    %2498 = vmatmul.mubr.bf16.gmra.mrb[0].mxu0 %v2460
    %v2499 = vpop.f32.mrb[0].mxu0
    %v2500 = vadd.f32 0.0, %v2499
    %v2501 = vpop.f32.mrb[0].mxu0
    %v2502 = vpop.f32.mrb[0].mxu0
    %v2503 = vadd.f32 0.0, %v2502
    %v2504 = vpop.f32.mrb[0].mxu0
    %2505 = vmatprep.mubr.bf16.mxu0 0
    %2506 = vmatmul.mubr.bf16.gmra.mrb[0].mxu0 %v2463
    %v2507 = vpop.f32.mrb[0].mxu0
    %v2508 = vadd.f32 0.0, %v2507
    %v2509 = vpop.f32.mrb[0].mxu0
    %v2510 = vpop.f32.mrb[0].mxu0
    %v2511 = vadd.f32 0.0, %v2510
    %v2512 = vpop.f32.mrb[0].mxu0
    %2513 = vdwg.mxu0
    %v2514 = vmul.f32 %v2500, 0.17677669
    %v2515 = vmul.f32 %v2503, 0.17677669
    %v2516 = vmul.f32 %v2508, 0.17677669
    %v2517 = vmul.f32 %v2511, 0.17677669
    %v2518 = vpack.c.bf16 %v2515, %v2514
    %v2519 = vpack.c.bf16 %v2517, %v2516
    %v2520 = vpack.c.bf16 %v2503, %v2500
    %v2521 = vpack.c.bf16 %v2511, %v2508
    %2524 = vrot.lane.b32.xlu0 %v2520, 96
    %v2525 = vpop.permute.xlu0 %2524
    %2526 = vrot.lane.b32.xlu0 %v2521, 96
    %v2527 = vpop.permute.xlu0 %2526
    %v2529 = vsel %vm438, %v2518, 0
    %v2532 = vsel %vm438, %v2519, 0
    %v2535 = vsel %vm438, %v2525, 0
    %v2538 = vsel %vm438, %v2527, 0
    %2540 = vmatprep.subr.bf16.mxu0 0
    %2541 = vmatpush1.bf16.xpose.msra.mxu0 %v2535
    %2542 = vmatprep.subr.bf16.mxu0 0
    %2543 = vmatpush1.bf16.xpose.msra.mxu0 %v2538
    %2544 = vmatprep.subr.bf16.mxu0 0
    %2545 = vmatpush1.bf16.xpose.msra.mxu0 0
    %2546 = vmatprep.subr.bf16.mxu0 0
    %2547 = vmatpush1.bf16.xpose.msra.mxu0 0
    %2548 = vmatprep.subr.bf16.mxu0 0
    %2549 = vmatpush1.bf16.xpose.msra.mxu0 0
    %2550 = vmatprep.subr.bf16.mxu0 0
    %2551 = vmatpush1.bf16.xpose.msra.mxu0 0
    %2552 = vmatprep.subr.bf16.mxu0 0
    %2553 = vmatpush1.bf16.xpose.msra.mxu0 0
    %2554 = vmatprep.subr.bf16.mxu0 0
    %2555 = vmatpush1.bf16.xpose.msra.mxu0 0
    %2556 = vmatprep.subr.bf16.mxu0 0
    %2557 = vmatpush1.bf16.xpose.msra.mxu0 0
    %2558 = vmatprep.subr.bf16.mxu0 0
    %2559 = vmatpush1.bf16.xpose.msra.mxu0 0
    %2560 = vmatprep.subr.bf16.mxu0 0
    %2561 = vmatpush1.bf16.xpose.msra.mxu0 0
    %2562 = vmatprep.subr.bf16.mxu0 0
    %2563 = vmatpush1.bf16.xpose.msra.mxu0 0
    %2564 = vmatprep.subr.bf16.mxu0 0
    %2565 = vmatpush1.bf16.xpose.msra.mxu0 0
    %2566 = vmatprep.subr.bf16.mxu0 0
    %2567 = vmatpush1.bf16.xpose.msra.mxu0 0
    %2568 = vmatprep.subr.bf16.mxu0 0
    %2569 = vmatpush1.bf16.xpose.msra.mxu0 0
    %2570 = vmatprep.subr.bf16.mxu0 0
    %2571 = vmatpush1.bf16.xpose.msra.mxu0 0
    %2572 = vmatprep.mubr.bf16.mxu0 0
    %2573 = vmatmul.mubr.bf16.gmra.mrb[0].mxu0 %v2529
    %v2574 = vpop.f32.mrb[0].mxu0
    %v2575 = vadd.f32 %v271, %v2574
    %v2576 = vpop.f32.mrb[0].mxu0
    %v2577 = vpop.f32.mrb[0].mxu0
    %v2578 = vadd.f32 %v272, %v2577
    %v2579 = vpop.f32.mrb[0].mxu0
    %2580 = vmatprep.mubr.bf16.mxu0 0
    %2581 = vmatmul.mubr.bf16.gmra.mrb[0].mxu0 %v2532
    %v2582 = vpop.f32.mrb[0].mxu0
    %v2583 = vadd.f32 %v273, %v2582
    %v2584 = vpop.f32.mrb[0].mxu0
    %v2585 = vpop.f32.mrb[0].mxu0
    %v2586 = vadd.f32 %v274, %v2585
    %v2587 = vpop.f32.mrb[0].mxu0
    %2588 = vdwg.mxu0
    %v2589 = vsel %vm277, %v2575, -inf
    %2590 = vmax.xlane.f32.xlu0 %v2589
    %v2591 = vpop.xlane.xlu0 %2590
    %v2592 = vsel %vm277, %v2578, -inf
    %2593 = vmax.xlane.f32.xlu0 %v2592
    %v2594 = vpop.xlane.xlu0 %2593
    %v2595 = vsel %vm277, %v2583, -inf
    %2596 = vmax.xlane.f32.xlu0 %v2595
    %v2597 = vpop.xlane.xlu0 %2596
    %v2598 = vsel %vm277, %v2586, -inf
    %2599 = vmax.xlane.f32.xlu0 %v2598
    %v2600 = vpop.xlane.xlu0 %2599
    %v2601 = vsub.f32 %v2575, %v2591
    %v2602 = vsub.f32 %v2578, %v2594
    %v2603 = vsub.f32 %v2583, %v2597
    %v2604 = vsub.f32 %v2586, %v2600
    %v2605 = vmul.f32 %v2601, 1.442695
    %v2606 = vpow.pop %v2605
    %v2607 = vmul.f32 %v2602, 1.442695
    %v2608 = vpow.pop %v2607
    %v2609 = vmul.f32 %v2603, 1.442695
    %v2610 = vpow.pop %v2609
    %v2611 = vmul.f32 %v2604, 1.442695
    %v2612 = vpow.pop %v2611
    %v2613 = vsel %vm277, %v2606, 0.0
    %2614 = vadd.xlane.f32.xlu0 %v2613
    %v2615 = vpop.xlane.xlu0 %2614
    %v2616 = vsel %vm277, %v2608, 0.0
    %2617 = vadd.xlane.f32.xlu0 %v2616
    %v2618 = vpop.xlane.xlu0 %2617
    %v2619 = vsel %vm277, %v2610, 0.0
    %2620 = vadd.xlane.f32.xlu0 %v2619
    %v2621 = vpop.xlane.xlu0 %2620
    %v2622 = vsel %vm277, %v2612, 0.0
    %2623 = vadd.xlane.f32.xlu0 %v2622
    %v2624 = vpop.xlane.xlu0 %2623
    %v2625 = vrcp.pop %v2615
    %v2626 = vrcp.pop %v2618
    %v2627 = vrcp.pop %v2621
    %v2628 = vrcp.pop %v2624
    %v2629 = vmul.f32 %v2606, %v2625
    %v2630 = vmul.f32 %v2608, %v2626
    %v2631 = vmul.f32 %v2610, %v2627
    %v2632 = vmul.f32 %v2612, %v2628
    %v2633 = vpack.c.bf16 %v2630, %v2629
    %v2634 = vpack.c.bf16 %v2632, %v2631
    %2635 = vrot.lane.b32.xlu0 %v2520, 64
    %v2636 = vpop.permute.xlu0 %2635
    %2637 = vrot.lane.b32.xlu0 %v2521, 64
    %v2638 = vpop.permute.xlu0 %2637
    %v2642 = vsel %vm277, %v2633, 0
    %v2645 = vsel %vm277, %v2634, 0
    %2647 = vmatprep.subr.bf16.mxu0 0
    %2648 = vmatpush1.bf16.msra.mxu0 %v2636
    %2649 = vmatprep.subr.bf16.mxu0 0
    %2650 = vmatpush1.bf16.msra.mxu0 %v2638
    %2651 = vmatprep.subr.bf16.mxu0 0
    %2652 = vmatpush1.bf16.msra.mxu0 0
    %2653 = vmatprep.subr.bf16.mxu0 0
    %2654 = vmatpush1.bf16.msra.mxu0 0
    %2655 = vmatprep.subr.bf16.mxu0 0
    %2656 = vmatpush1.bf16.msra.mxu0 0
    %2657 = vmatprep.subr.bf16.mxu0 0
    %2658 = vmatpush1.bf16.msra.mxu0 0
    %2659 = vmatprep.subr.bf16.mxu0 0
    %2660 = vmatpush1.bf16.msra.mxu0 0
    %2661 = vmatprep.subr.bf16.mxu0 0
    %2662 = vmatpush1.bf16.msra.mxu0 0
    %2663 = vmatprep.subr.bf16.mxu0 0
    %2664 = vmatpush1.bf16.msra.mxu0 0
    %2665 = vmatprep.subr.bf16.mxu0 0
    %2666 = vmatpush1.bf16.msra.mxu0 0
    %2667 = vmatprep.subr.bf16.mxu0 0
    %2668 = vmatpush1.bf16.msra.mxu0 0
    %2669 = vmatprep.subr.bf16.mxu0 0
    %2670 = vmatpush1.bf16.msra.mxu0 0
    %2671 = vmatprep.subr.bf16.mxu0 0
    %2672 = vmatpush1.bf16.msra.mxu0 0
    %2673 = vmatprep.subr.bf16.mxu0 0
    %2674 = vmatpush1.bf16.msra.mxu0 0
    %2675 = vmatprep.subr.bf16.mxu0 0
    %2676 = vmatpush1.bf16.msra.mxu0 0
    %2677 = vmatprep.subr.bf16.mxu0 0
    %2678 = vmatpush1.bf16.msra.mxu0 0
    %2679 = vmatprep.mubr.bf16.mxu0 0
    %2680 = vmatmul.mubr.bf16.gmra.mrb[0].mxu0 %v2642
    %v2681 = vpop.f32.mrb[0].mxu0
    %v2682 = vadd.f32 0.0, %v2681
    %v2683 = vpop.f32.mrb[0].mxu0
    %v2684 = vpop.f32.mrb[0].mxu0
    %v2685 = vadd.f32 0.0, %v2684
    %v2686 = vpop.f32.mrb[0].mxu0
    %2687 = vmatprep.mubr.bf16.mxu0 0
    %2688 = vmatmul.mubr.bf16.gmra.mrb[0].mxu0 %v2645
    %v2689 = vpop.f32.mrb[0].mxu0
    %v2690 = vadd.f32 0.0, %v2689
    %v2691 = vpop.f32.mrb[0].mxu0
    %v2692 = vpop.f32.mrb[0].mxu0
    %v2693 = vadd.f32 0.0, %v2692
    %v2694 = vpop.f32.mrb[0].mxu0
    %2695 = vdwg.mxu0
    %2696 = vst.msk [vmem:[#allocation2] sm:$0xff] %vm438, %v2682
    %2697 = vst.msk [vmem:[#allocation2 + $0x8] sm:$0xff] %vm438, %v2685
    %2698 = vst.msk [vmem:[#allocation2 + $0x10] sm:$0xff] %vm438, %v2690
    %2699 = vst.msk [vmem:[#allocation2 + $0x18] sm:$0xff] %vm438, %v2693
    %2702 = vrot.lane.b32.xlu0 %v2518, 124
    %v2703 = vpop.permute.xlu0 %2702
    %2704 = vrot.lane.b32.xlu0 %v2519, 124
    %v2705 = vpop.permute.xlu0 %2704
    %2706 = vrot.lane.b32.xlu0 %v2520, 92
    %v2707 = vpop.permute.xlu0 %2706
    %2708 = vrot.lane.b32.xlu0 %v2521, 92
    %v2709 = vpop.permute.xlu0 %2708
    %v2711 = vsel %vm438, %v2703, 0
    %v2714 = vsel %vm438, %v2705, 0
    %v2717 = vsel %vm438, %v2707, 0
    %v2720 = vsel %vm438, %v2709, 0
    %2722 = vmatprep.subr.bf16.mxu0 0
    %2723 = vmatpush1.bf16.xpose.msra.mxu0 %v2717
    %2724 = vmatprep.subr.bf16.mxu0 0
    %2725 = vmatpush1.bf16.xpose.msra.mxu0 %v2720
    %2726 = vmatprep.subr.bf16.mxu0 0
    %2727 = vmatpush1.bf16.xpose.msra.mxu0 0
    %2728 = vmatprep.subr.bf16.mxu0 0
    %2729 = vmatpush1.bf16.xpose.msra.mxu0 0
    %2730 = vmatprep.subr.bf16.mxu0 0
    %2731 = vmatpush1.bf16.xpose.msra.mxu0 0
    %2732 = vmatprep.subr.bf16.mxu0 0
    %2733 = vmatpush1.bf16.xpose.msra.mxu0 0
    %2734 = vmatprep.subr.bf16.mxu0 0
    %2735 = vmatpush1.bf16.xpose.msra.mxu0 0
    %2736 = vmatprep.subr.bf16.mxu0 0
    %2737 = vmatpush1.bf16.xpose.msra.mxu0 0
    %2738 = vmatprep.subr.bf16.mxu0 0
    %2739 = vmatpush1.bf16.xpose.msra.mxu0 0
    %2740 = vmatprep.subr.bf16.mxu0 0
    %2741 = vmatpush1.bf16.xpose.msra.mxu0 0
    %2742 = vmatprep.subr.bf16.mxu0 0
    %2743 = vmatpush1.bf16.xpose.msra.mxu0 0
    %2744 = vmatprep.subr.bf16.mxu0 0
    %2745 = vmatpush1.bf16.xpose.msra.mxu0 0
    %2746 = vmatprep.subr.bf16.mxu0 0
    %2747 = vmatpush1.bf16.xpose.msra.mxu0 0
    %2748 = vmatprep.subr.bf16.mxu0 0
    %2749 = vmatpush1.bf16.xpose.msra.mxu0 0
    %2750 = vmatprep.subr.bf16.mxu0 0
    %2751 = vmatpush1.bf16.xpose.msra.mxu0 0
    %2752 = vmatprep.subr.bf16.mxu0 0
    %2753 = vmatpush1.bf16.xpose.msra.mxu0 0
    %2754 = vmatprep.mubr.bf16.mxu0 0
    %2755 = vmatmul.mubr.bf16.gmra.mrb[0].mxu0 %v2711
    %v2756 = vpop.f32.mrb[0].mxu0
    %v2757 = vadd.f32 %v271, %v2756
    %v2758 = vpop.f32.mrb[0].mxu0
    %v2759 = vpop.f32.mrb[0].mxu0
    %v2760 = vadd.f32 %v272, %v2759
    %v2761 = vpop.f32.mrb[0].mxu0
    %2762 = vmatprep.mubr.bf16.mxu0 0
    %2763 = vmatmul.mubr.bf16.gmra.mrb[0].mxu0 %v2714
    %v2764 = vpop.f32.mrb[0].mxu0
    %v2765 = vadd.f32 %v273, %v2764
    %v2766 = vpop.f32.mrb[0].mxu0
    %v2767 = vpop.f32.mrb[0].mxu0
    %v2768 = vadd.f32 %v274, %v2767
    %v2769 = vpop.f32.mrb[0].mxu0
    %2770 = vdwg.mxu0
    %v2771 = vsel %vm277, %v2757, -inf
    %2772 = vmax.xlane.f32.xlu0 %v2771
    %v2773 = vpop.xlane.xlu0 %2772
    %v2774 = vsel %vm277, %v2760, -inf
    %2775 = vmax.xlane.f32.xlu0 %v2774
    %v2776 = vpop.xlane.xlu0 %2775
    %v2777 = vsel %vm277, %v2765, -inf
    %2778 = vmax.xlane.f32.xlu0 %v2777
    %v2779 = vpop.xlane.xlu0 %2778
    %v2780 = vsel %vm277, %v2768, -inf
    %2781 = vmax.xlane.f32.xlu0 %v2780
    %v2782 = vpop.xlane.xlu0 %2781
    %v2783 = vsub.f32 %v2757, %v2773
    %v2784 = vsub.f32 %v2760, %v2776
    %v2785 = vsub.f32 %v2765, %v2779
    %v2786 = vsub.f32 %v2768, %v2782
    %v2787 = vmul.f32 %v2783, 1.442695
    %v2788 = vpow.pop %v2787
    %v2789 = vmul.f32 %v2784, 1.442695
    %v2790 = vpow.pop %v2789
    %v2791 = vmul.f32 %v2785, 1.442695
    %v2792 = vpow.pop %v2791
    %v2793 = vmul.f32 %v2786, 1.442695
    %v2794 = vpow.pop %v2793
    %v2795 = vsel %vm277, %v2788, 0.0
    %2796 = vadd.xlane.f32.xlu0 %v2795
    %v2797 = vpop.xlane.xlu0 %2796
    %v2798 = vsel %vm277, %v2790, 0.0
    %2799 = vadd.xlane.f32.xlu0 %v2798
    %v2800 = vpop.xlane.xlu0 %2799
    %v2801 = vsel %vm277, %v2792, 0.0
    %2802 = vadd.xlane.f32.xlu0 %v2801
    %v2803 = vpop.xlane.xlu0 %2802
    %v2804 = vsel %vm277, %v2794, 0.0
    %2805 = vadd.xlane.f32.xlu0 %v2804
    %v2806 = vpop.xlane.xlu0 %2805
    %v2807 = vrcp.pop %v2797
    %v2808 = vrcp.pop %v2800
    %v2809 = vrcp.pop %v2803
    %v2810 = vrcp.pop %v2806
    %v2811 = vmul.f32 %v2788, %v2807
    %v2812 = vmul.f32 %v2790, %v2808
    %v2813 = vmul.f32 %v2792, %v2809
    %v2814 = vmul.f32 %v2794, %v2810
    %v2815 = vpack.c.bf16 %v2812, %v2811
    %v2816 = vpack.c.bf16 %v2814, %v2813
    %2817 = vrot.lane.b32.xlu0 %v2520, 60
    %v2818 = vpop.permute.xlu0 %2817
    %2819 = vrot.lane.b32.xlu0 %v2521, 60
    %v2820 = vpop.permute.xlu0 %2819
    %v2824 = vsel %vm277, %v2815, 0
    %v2827 = vsel %vm277, %v2816, 0
    %2829 = vmatprep.subr.bf16.mxu0 0
    %2830 = vmatpush1.bf16.msra.mxu0 %v2818
    %2831 = vmatprep.subr.bf16.mxu0 0
    %2832 = vmatpush1.bf16.msra.mxu0 %v2820
    %2833 = vmatprep.subr.bf16.mxu0 0
    %2834 = vmatpush1.bf16.msra.mxu0 0
    %2835 = vmatprep.subr.bf16.mxu0 0
    %2836 = vmatpush1.bf16.msra.mxu0 0
    %2837 = vmatprep.subr.bf16.mxu0 0
    %2838 = vmatpush1.bf16.msra.mxu0 0
    %2839 = vmatprep.subr.bf16.mxu0 0
    %2840 = vmatpush1.bf16.msra.mxu0 0
    %2841 = vmatprep.subr.bf16.mxu0 0
    %2842 = vmatpush1.bf16.msra.mxu0 0
    %2843 = vmatprep.subr.bf16.mxu0 0
    %2844 = vmatpush1.bf16.msra.mxu0 0
    %2845 = vmatprep.subr.bf16.mxu0 0
    %2846 = vmatpush1.bf16.msra.mxu0 0
    %2847 = vmatprep.subr.bf16.mxu0 0
    %2848 = vmatpush1.bf16.msra.mxu0 0
    %2849 = vmatprep.subr.bf16.mxu0 0
    %2850 = vmatpush1.bf16.msra.mxu0 0
    %2851 = vmatprep.subr.bf16.mxu0 0
    %2852 = vmatpush1.bf16.msra.mxu0 0
    %2853 = vmatprep.subr.bf16.mxu0 0
    %2854 = vmatpush1.bf16.msra.mxu0 0
    %2855 = vmatprep.subr.bf16.mxu0 0
    %2856 = vmatpush1.bf16.msra.mxu0 0
    %2857 = vmatprep.subr.bf16.mxu0 0
    %2858 = vmatpush1.bf16.msra.mxu0 0
    %2859 = vmatprep.subr.bf16.mxu0 0
    %2860 = vmatpush1.bf16.msra.mxu0 0
    %2861 = vmatprep.mubr.bf16.mxu0 0
    %2862 = vmatmul.mubr.bf16.gmra.mrb[0].mxu0 %v2824
    %v2863 = vpop.f32.mrb[0].mxu0
    %v2864 = vadd.f32 0.0, %v2863
    %v2865 = vpop.f32.mrb[0].mxu0
    %v2866 = vpop.f32.mrb[0].mxu0
    %v2867 = vadd.f32 0.0, %v2866
    %v2868 = vpop.f32.mrb[0].mxu0
    %2869 = vmatprep.mubr.bf16.mxu0 0
    %2870 = vmatmul.mubr.bf16.gmra.mrb[0].mxu0 %v2827
    %v2871 = vpop.f32.mrb[0].mxu0
    %v2872 = vadd.f32 0.0, %v2871
    %v2873 = vpop.f32.mrb[0].mxu0
    %v2874 = vpop.f32.mrb[0].mxu0
    %v2875 = vadd.f32 0.0, %v2874
    %v2876 = vpop.f32.mrb[0].mxu0
    %2877 = vdwg.mxu0
    %2882 = vrot.lane.b32.xlu0 %v2864, 4
    %v2883 = vpop.permute.xlu0 %2882
    %2884 = vrot.lane.b32.xlu0 %v2867, 4
    %v2885 = vpop.permute.xlu0 %2884
    %2886 = vrot.lane.b32.xlu0 %v2872, 4
    %v2887 = vpop.permute.xlu0 %2886
    %2888 = vrot.lane.b32.xlu0 %v2875, 4
    %v2889 = vpop.permute.xlu0 %2888
    %2894 = vst.msk [vmem:[#allocation2] sm:$0xff] %vm805, %v2883
    %2895 = vst.msk [vmem:[#allocation2 + $0x8] sm:$0xff] %vm805, %v2885
    %2896 = vst.msk [vmem:[#allocation2 + $0x10] sm:$0xff] %vm805, %v2887
    %2897 = vst.msk [vmem:[#allocation2 + $0x18] sm:$0xff] %vm805, %v2889
    %2898 = vrot.lane.b32.xlu0 %v2518, 120
    %v2899 = vpop.permute.xlu0 %2898
    %2900 = vrot.lane.b32.xlu0 %v2519, 120
    %v2901 = vpop.permute.xlu0 %2900
    %2902 = vrot.lane.b32.xlu0 %v2520, 88
    %v2903 = vpop.permute.xlu0 %2902
    %2904 = vrot.lane.b32.xlu0 %v2521, 88
    %v2905 = vpop.permute.xlu0 %2904
    %v2907 = vsel %vm438, %v2899, 0
    %v2910 = vsel %vm438, %v2901, 0
    %v2913 = vsel %vm438, %v2903, 0
    %v2916 = vsel %vm438, %v2905, 0
    %2918 = vmatprep.subr.bf16.mxu0 0
    %2919 = vmatpush1.bf16.xpose.msra.mxu0 %v2913
    %2920 = vmatprep.subr.bf16.mxu0 0
    %2921 = vmatpush1.bf16.xpose.msra.mxu0 %v2916
    %2922 = vmatprep.subr.bf16.mxu0 0
    %2923 = vmatpush1.bf16.xpose.msra.mxu0 0
    %2924 = vmatprep.subr.bf16.mxu0 0
    %2925 = vmatpush1.bf16.xpose.msra.mxu0 0
    %2926 = vmatprep.subr.bf16.mxu0 0
    %2927 = vmatpush1.bf16.xpose.msra.mxu0 0
    %2928 = vmatprep.subr.bf16.mxu0 0
    %2929 = vmatpush1.bf16.xpose.msra.mxu0 0
    %2930 = vmatprep.subr.bf16.mxu0 0
    %2931 = vmatpush1.bf16.xpose.msra.mxu0 0
    %2932 = vmatprep.subr.bf16.mxu0 0
    %2933 = vmatpush1.bf16.xpose.msra.mxu0 0
    %2934 = vmatprep.subr.bf16.mxu0 0
    %2935 = vmatpush1.bf16.xpose.msra.mxu0 0
    %2936 = vmatprep.subr.bf16.mxu0 0
    %2937 = vmatpush1.bf16.xpose.msra.mxu0 0
    %2938 = vmatprep.subr.bf16.mxu0 0
    %2939 = vmatpush1.bf16.xpose.msra.mxu0 0
    %2940 = vmatprep.subr.bf16.mxu0 0
    %2941 = vmatpush1.bf16.xpose.msra.mxu0 0
    %2942 = vmatprep.subr.bf16.mxu0 0
    %2943 = vmatpush1.bf16.xpose.msra.mxu0 0
    %2944 = vmatprep.subr.bf16.mxu0 0
    %2945 = vmatpush1.bf16.xpose.msra.mxu0 0
    %2946 = vmatprep.subr.bf16.mxu0 0
    %2947 = vmatpush1.bf16.xpose.msra.mxu0 0
    %2948 = vmatprep.subr.bf16.mxu0 0
    %2949 = vmatpush1.bf16.xpose.msra.mxu0 0
    %2950 = vmatprep.mubr.bf16.mxu0 0
    %2951 = vmatmul.mubr.bf16.gmra.mrb[0].mxu0 %v2907
    %v2952 = vpop.f32.mrb[0].mxu0
    %v2953 = vadd.f32 %v271, %v2952
    %v2954 = vpop.f32.mrb[0].mxu0
    %v2955 = vpop.f32.mrb[0].mxu0
    %v2956 = vadd.f32 %v272, %v2955
    %v2957 = vpop.f32.mrb[0].mxu0
    %2958 = vmatprep.mubr.bf16.mxu0 0
    %2959 = vmatmul.mubr.bf16.gmra.mrb[0].mxu0 %v2910
    %v2960 = vpop.f32.mrb[0].mxu0
    %v2961 = vadd.f32 %v273, %v2960
    %v2962 = vpop.f32.mrb[0].mxu0
    %v2963 = vpop.f32.mrb[0].mxu0
    %v2964 = vadd.f32 %v274, %v2963
    %v2965 = vpop.f32.mrb[0].mxu0
    %2966 = vdwg.mxu0
    %v2967 = vsel %vm277, %v2953, -inf
    %2968 = vmax.xlane.f32.xlu0 %v2967
    %v2969 = vpop.xlane.xlu0 %2968
    %v2970 = vsel %vm277, %v2956, -inf
    %2971 = vmax.xlane.f32.xlu0 %v2970
    %v2972 = vpop.xlane.xlu0 %2971
    %v2973 = vsel %vm277, %v2961, -inf
    %2974 = vmax.xlane.f32.xlu0 %v2973
    %v2975 = vpop.xlane.xlu0 %2974
    %v2976 = vsel %vm277, %v2964, -inf
    %2977 = vmax.xlane.f32.xlu0 %v2976
    %v2978 = vpop.xlane.xlu0 %2977
    %v2979 = vsub.f32 %v2953, %v2969
    %v2980 = vsub.f32 %v2956, %v2972
    %v2981 = vsub.f32 %v2961, %v2975
    %v2982 = vsub.f32 %v2964, %v2978
    %v2983 = vmul.f32 %v2979, 1.442695
    %v2984 = vpow.pop %v2983
    %v2985 = vmul.f32 %v2980, 1.442695
    %v2986 = vpow.pop %v2985
    %v2987 = vmul.f32 %v2981, 1.442695
    %v2988 = vpow.pop %v2987
    %v2989 = vmul.f32 %v2982, 1.442695
    %v2990 = vpow.pop %v2989
    %v2991 = vsel %vm277, %v2984, 0.0
    %2992 = vadd.xlane.f32.xlu0 %v2991
    %v2993 = vpop.xlane.xlu0 %2992
    %v2994 = vsel %vm277, %v2986, 0.0
    %2995 = vadd.xlane.f32.xlu0 %v2994
    %v2996 = vpop.xlane.xlu0 %2995
    %v2997 = vsel %vm277, %v2988, 0.0
    %2998 = vadd.xlane.f32.xlu0 %v2997
    %v2999 = vpop.xlane.xlu0 %2998
    %v3000 = vsel %vm277, %v2990, 0.0
    %3001 = vadd.xlane.f32.xlu0 %v3000
    %v3002 = vpop.xlane.xlu0 %3001
    %v3003 = vrcp.pop %v2993
    %v3004 = vrcp.pop %v2996
    %v3005 = vrcp.pop %v2999
    %v3006 = vrcp.pop %v3002
    %v3007 = vmul.f32 %v2984, %v3003
    %v3008 = vmul.f32 %v2986, %v3004
    %v3009 = vmul.f32 %v2988, %v3005
    %v3010 = vmul.f32 %v2990, %v3006
    %v3011 = vpack.c.bf16 %v3008, %v3007
    %v3012 = vpack.c.bf16 %v3010, %v3009
    %3013 = vrot.lane.b32.xlu0 %v2520, 56
    %v3014 = vpop.permute.xlu0 %3013
    %3015 = vrot.lane.b32.xlu0 %v2521, 56
    %v3016 = vpop.permute.xlu0 %3015
    %v3020 = vsel %vm277, %v3011, 0
    %v3023 = vsel %vm277, %v3012, 0
    %3025 = vmatprep.subr.bf16.mxu0 0
    %3026 = vmatpush1.bf16.msra.mxu0 %v3014
    %3027 = vmatprep.subr.bf16.mxu0 0
    %3028 = vmatpush1.bf16.msra.mxu0 %v3016
    %3029 = vmatprep.subr.bf16.mxu0 0
    %3030 = vmatpush1.bf16.msra.mxu0 0
    %3031 = vmatprep.subr.bf16.mxu0 0
    %3032 = vmatpush1.bf16.msra.mxu0 0
    %3033 = vmatprep.subr.bf16.mxu0 0
    %3034 = vmatpush1.bf16.msra.mxu0 0
    %3035 = vmatprep.subr.bf16.mxu0 0
    %3036 = vmatpush1.bf16.msra.mxu0 0
    %3037 = vmatprep.subr.bf16.mxu0 0
    %3038 = vmatpush1.bf16.msra.mxu0 0
    %3039 = vmatprep.subr.bf16.mxu0 0
    %3040 = vmatpush1.bf16.msra.mxu0 0
    %3041 = vmatprep.subr.bf16.mxu0 0
    %3042 = vmatpush1.bf16.msra.mxu0 0
    %3043 = vmatprep.subr.bf16.mxu0 0
    %3044 = vmatpush1.bf16.msra.mxu0 0
    %3045 = vmatprep.subr.bf16.mxu0 0
    %3046 = vmatpush1.bf16.msra.mxu0 0
    %3047 = vmatprep.subr.bf16.mxu0 0
    %3048 = vmatpush1.bf16.msra.mxu0 0
    %3049 = vmatprep.subr.bf16.mxu0 0
    %3050 = vmatpush1.bf16.msra.mxu0 0
    %3051 = vmatprep.subr.bf16.mxu0 0
    %3052 = vmatpush1.bf16.msra.mxu0 0
    %3053 = vmatprep.subr.bf16.mxu0 0
    %3054 = vmatpush1.bf16.msra.mxu0 0
    %3055 = vmatprep.subr.bf16.mxu0 0
    %3056 = vmatpush1.bf16.msra.mxu0 0
    %3057 = vmatprep.mubr.bf16.mxu0 0
    %3058 = vmatmul.mubr.bf16.gmra.mrb[0].mxu0 %v3020
    %v3059 = vpop.f32.mrb[0].mxu0
    %v3060 = vadd.f32 0.0, %v3059
    %v3061 = vpop.f32.mrb[0].mxu0
    %v3062 = vpop.f32.mrb[0].mxu0
    %v3063 = vadd.f32 0.0, %v3062
    %v3064 = vpop.f32.mrb[0].mxu0
    %3065 = vmatprep.mubr.bf16.mxu0 0
    %3066 = vmatmul.mubr.bf16.gmra.mrb[0].mxu0 %v3023
    %v3067 = vpop.f32.mrb[0].mxu0
    %v3068 = vadd.f32 0.0, %v3067
    %v3069 = vpop.f32.mrb[0].mxu0
    %v3070 = vpop.f32.mrb[0].mxu0
    %v3071 = vadd.f32 0.0, %v3070
    %v3072 = vpop.f32.mrb[0].mxu0
    %3073 = vdwg.mxu0
    %3078 = vrot.lane.b32.xlu0 %v3060, 8
    %v3079 = vpop.permute.xlu0 %3078
    %3080 = vrot.lane.b32.xlu0 %v3063, 8
    %v3081 = vpop.permute.xlu0 %3080
    %3082 = vrot.lane.b32.xlu0 %v3068, 8
    %v3083 = vpop.permute.xlu0 %3082
    %3084 = vrot.lane.b32.xlu0 %v3071, 8
    %v3085 = vpop.permute.xlu0 %3084
    %3090 = vst.msk [vmem:[#allocation2] sm:$0xff] %vm1002, %v3079
    %3091 = vst.msk [vmem:[#allocation2 + $0x8] sm:$0xff] %vm1002, %v3081
    %3092 = vst.msk [vmem:[#allocation2 + $0x10] sm:$0xff] %vm1002, %v3083
    %3093 = vst.msk [vmem:[#allocation2 + $0x18] sm:$0xff] %vm1002, %v3085
    %3094 = vrot.lane.b32.xlu0 %v2518, 116
    %v3095 = vpop.permute.xlu0 %3094
    %3096 = vrot.lane.b32.xlu0 %v2519, 116
    %v3097 = vpop.permute.xlu0 %3096
    %3098 = vrot.lane.b32.xlu0 %v2520, 84
    %v3099 = vpop.permute.xlu0 %3098
    %3100 = vrot.lane.b32.xlu0 %v2521, 84
    %v3101 = vpop.permute.xlu0 %3100
    %v3103 = vsel %vm438, %v3095, 0
    %v3106 = vsel %vm438, %v3097, 0
    %v3109 = vsel %vm438, %v3099, 0
    %v3112 = vsel %vm438, %v3101, 0
    %3114 = vmatprep.subr.bf16.mxu0 0
    %3115 = vmatpush1.bf16.xpose.msra.mxu0 %v3109
    %3116 = vmatprep.subr.bf16.mxu0 0
    %3117 = vmatpush1.bf16.xpose.msra.mxu0 %v3112
    %3118 = vmatprep.subr.bf16.mxu0 0
    %3119 = vmatpush1.bf16.xpose.msra.mxu0 0
    %3120 = vmatprep.subr.bf16.mxu0 0
    %3121 = vmatpush1.bf16.xpose.msra.mxu0 0
    %3122 = vmatprep.subr.bf16.mxu0 0
    %3123 = vmatpush1.bf16.xpose.msra.mxu0 0
    %3124 = vmatprep.subr.bf16.mxu0 0
    %3125 = vmatpush1.bf16.xpose.msra.mxu0 0
    %3126 = vmatprep.subr.bf16.mxu0 0
    %3127 = vmatpush1.bf16.xpose.msra.mxu0 0
    %3128 = vmatprep.subr.bf16.mxu0 0
    %3129 = vmatpush1.bf16.xpose.msra.mxu0 0
    %3130 = vmatprep.subr.bf16.mxu0 0
    %3131 = vmatpush1.bf16.xpose.msra.mxu0 0
    %3132 = vmatprep.subr.bf16.mxu0 0
    %3133 = vmatpush1.bf16.xpose.msra.mxu0 0
    %3134 = vmatprep.subr.bf16.mxu0 0
    %3135 = vmatpush1.bf16.xpose.msra.mxu0 0
    %3136 = vmatprep.subr.bf16.mxu0 0
    %3137 = vmatpush1.bf16.xpose.msra.mxu0 0
    %3138 = vmatprep.subr.bf16.mxu0 0
    %3139 = vmatpush1.bf16.xpose.msra.mxu0 0
    %3140 = vmatprep.subr.bf16.mxu0 0
    %3141 = vmatpush1.bf16.xpose.msra.mxu0 0
    %3142 = vmatprep.subr.bf16.mxu0 0
    %3143 = vmatpush1.bf16.xpose.msra.mxu0 0
    %3144 = vmatprep.subr.bf16.mxu0 0
    %3145 = vmatpush1.bf16.xpose.msra.mxu0 0
    %3146 = vmatprep.mubr.bf16.mxu0 0
    %3147 = vmatmul.mubr.bf16.gmra.mrb[0].mxu0 %v3103
    %v3148 = vpop.f32.mrb[0].mxu0
    %v3149 = vadd.f32 %v271, %v3148
    %v3150 = vpop.f32.mrb[0].mxu0
    %v3151 = vpop.f32.mrb[0].mxu0
    %v3152 = vadd.f32 %v272, %v3151
    %v3153 = vpop.f32.mrb[0].mxu0
    %3154 = vmatprep.mubr.bf16.mxu0 0
    %3155 = vmatmul.mubr.bf16.gmra.mrb[0].mxu0 %v3106
    %v3156 = vpop.f32.mrb[0].mxu0
    %v3157 = vadd.f32 %v273, %v3156
    %v3158 = vpop.f32.mrb[0].mxu0
    %v3159 = vpop.f32.mrb[0].mxu0
    %v3160 = vadd.f32 %v274, %v3159
    %v3161 = vpop.f32.mrb[0].mxu0
    %3162 = vdwg.mxu0
    %v3163 = vsel %vm277, %v3149, -inf
    %3164 = vmax.xlane.f32.xlu0 %v3163
    %v3165 = vpop.xlane.xlu0 %3164
    %v3166 = vsel %vm277, %v3152, -inf
    %3167 = vmax.xlane.f32.xlu0 %v3166
    %v3168 = vpop.xlane.xlu0 %3167
    %v3169 = vsel %vm277, %v3157, -inf
    %3170 = vmax.xlane.f32.xlu0 %v3169
    %v3171 = vpop.xlane.xlu0 %3170
    %v3172 = vsel %vm277, %v3160, -inf
    %3173 = vmax.xlane.f32.xlu0 %v3172
    %v3174 = vpop.xlane.xlu0 %3173
    %v3175 = vsub.f32 %v3149, %v3165
    %v3176 = vsub.f32 %v3152, %v3168
    %v3177 = vsub.f32 %v3157, %v3171
    %v3178 = vsub.f32 %v3160, %v3174
    %v3179 = vmul.f32 %v3175, 1.442695
    %v3180 = vpow.pop %v3179
    %v3181 = vmul.f32 %v3176, 1.442695
    %v3182 = vpow.pop %v3181
    %v3183 = vmul.f32 %v3177, 1.442695
    %v3184 = vpow.pop %v3183
    %v3185 = vmul.f32 %v3178, 1.442695
    %v3186 = vpow.pop %v3185
    %v3187 = vsel %vm277, %v3180, 0.0
    %3188 = vadd.xlane.f32.xlu0 %v3187
    %v3189 = vpop.xlane.xlu0 %3188
    %v3190 = vsel %vm277, %v3182, 0.0
    %3191 = vadd.xlane.f32.xlu0 %v3190
    %v3192 = vpop.xlane.xlu0 %3191
    %v3193 = vsel %vm277, %v3184, 0.0
    %3194 = vadd.xlane.f32.xlu0 %v3193
    %v3195 = vpop.xlane.xlu0 %3194
    %v3196 = vsel %vm277, %v3186, 0.0
    %3197 = vadd.xlane.f32.xlu0 %v3196
    %v3198 = vpop.xlane.xlu0 %3197
    %v3199 = vrcp.pop %v3189
    %v3200 = vrcp.pop %v3192
    %v3201 = vrcp.pop %v3195
    %v3202 = vrcp.pop %v3198
    %v3203 = vmul.f32 %v3180, %v3199
    %v3204 = vmul.f32 %v3182, %v3200
    %v3205 = vmul.f32 %v3184, %v3201
    %v3206 = vmul.f32 %v3186, %v3202
    %v3207 = vpack.c.bf16 %v3204, %v3203
    %v3208 = vpack.c.bf16 %v3206, %v3205
    %3209 = vrot.lane.b32.xlu0 %v2520, 52
    %v3210 = vpop.permute.xlu0 %3209
    %3211 = vrot.lane.b32.xlu0 %v2521, 52
    %v3212 = vpop.permute.xlu0 %3211
    %v3216 = vsel %vm277, %v3207, 0
    %v3219 = vsel %vm277, %v3208, 0
    %3221 = vmatprep.subr.bf16.mxu0 0
    %3222 = vmatpush1.bf16.msra.mxu0 %v3210
    %3223 = vmatprep.subr.bf16.mxu0 0
    %3224 = vmatpush1.bf16.msra.mxu0 %v3212
    %3225 = vmatprep.subr.bf16.mxu0 0
    %3226 = vmatpush1.bf16.msra.mxu0 0
    %3227 = vmatprep.subr.bf16.mxu0 0
    %3228 = vmatpush1.bf16.msra.mxu0 0
    %3229 = vmatprep.subr.bf16.mxu0 0
    %3230 = vmatpush1.bf16.msra.mxu0 0
    %3231 = vmatprep.subr.bf16.mxu0 0
    %3232 = vmatpush1.bf16.msra.mxu0 0
    %3233 = vmatprep.subr.bf16.mxu0 0
    %3234 = vmatpush1.bf16.msra.mxu0 0
    %3235 = vmatprep.subr.bf16.mxu0 0
    %3236 = vmatpush1.bf16.msra.mxu0 0
    %3237 = vmatprep.subr.bf16.mxu0 0
    %3238 = vmatpush1.bf16.msra.mxu0 0
    %3239 = vmatprep.subr.bf16.mxu0 0
    %3240 = vmatpush1.bf16.msra.mxu0 0
    %3241 = vmatprep.subr.bf16.mxu0 0
    %3242 = vmatpush1.bf16.msra.mxu0 0
    %3243 = vmatprep.subr.bf16.mxu0 0
    %3244 = vmatpush1.bf16.msra.mxu0 0
    %3245 = vmatprep.subr.bf16.mxu0 0
    %3246 = vmatpush1.bf16.msra.mxu0 0
    %3247 = vmatprep.subr.bf16.mxu0 0
    %3248 = vmatpush1.bf16.msra.mxu0 0
    %3249 = vmatprep.subr.bf16.mxu0 0
    %3250 = vmatpush1.bf16.msra.mxu0 0
    %3251 = vmatprep.subr.bf16.mxu0 0
    %3252 = vmatpush1.bf16.msra.mxu0 0
    %3253 = vmatprep.mubr.bf16.mxu0 0
    %3254 = vmatmul.mubr.bf16.gmra.mrb[0].mxu0 %v3216
    %v3255 = vpop.f32.mrb[0].mxu0
    %v3256 = vadd.f32 0.0, %v3255
    %v3257 = vpop.f32.mrb[0].mxu0
    %v3258 = vpop.f32.mrb[0].mxu0
    %v3259 = vadd.f32 0.0, %v3258
    %v3260 = vpop.f32.mrb[0].mxu0
    %3261 = vmatprep.mubr.bf16.mxu0 0
    %3262 = vmatmul.mubr.bf16.gmra.mrb[0].mxu0 %v3219
    %v3263 = vpop.f32.mrb[0].mxu0
    %v3264 = vadd.f32 0.0, %v3263
    %v3265 = vpop.f32.mrb[0].mxu0
    %v3266 = vpop.f32.mrb[0].mxu0
    %v3267 = vadd.f32 0.0, %v3266
    %v3268 = vpop.f32.mrb[0].mxu0
    %3269 = vdwg.mxu0
    %3274 = vrot.lane.b32.xlu0 %v3256, 12
    %v3275 = vpop.permute.xlu0 %3274
    %3276 = vrot.lane.b32.xlu0 %v3259, 12
    %v3277 = vpop.permute.xlu0 %3276
    %3278 = vrot.lane.b32.xlu0 %v3264, 12
    %v3279 = vpop.permute.xlu0 %3278
    %3280 = vrot.lane.b32.xlu0 %v3267, 12
    %v3281 = vpop.permute.xlu0 %3280
    %3286 = vst.msk [vmem:[#allocation2] sm:$0xff] %vm1199, %v3275
    %3287 = vst.msk [vmem:[#allocation2 + $0x8] sm:$0xff] %vm1199, %v3277
    %3288 = vst.msk [vmem:[#allocation2 + $0x10] sm:$0xff] %vm1199, %v3279
    %3289 = vst.msk [vmem:[#allocation2 + $0x18] sm:$0xff] %vm1199, %v3281
    %3290 = vrot.lane.b32.xlu0 %v2518, 112
    %v3291 = vpop.permute.xlu0 %3290
    %3292 = vrot.lane.b32.xlu0 %v2519, 112
    %v3293 = vpop.permute.xlu0 %3292
    %3294 = vrot.lane.b32.xlu0 %v2520, 80
    %v3295 = vpop.permute.xlu0 %3294
    %3296 = vrot.lane.b32.xlu0 %v2521, 80
    %v3297 = vpop.permute.xlu0 %3296
    %v3299 = vsel %vm438, %v3291, 0
    %v3302 = vsel %vm438, %v3293, 0
    %v3305 = vsel %vm438, %v3295, 0
    %v3308 = vsel %vm438, %v3297, 0
    %3310 = vmatprep.subr.bf16.mxu0 0
    %3311 = vmatpush1.bf16.xpose.msra.mxu0 %v3305
    %3312 = vmatprep.subr.bf16.mxu0 0
    %3313 = vmatpush1.bf16.xpose.msra.mxu0 %v3308
    %3314 = vmatprep.subr.bf16.mxu0 0
    %3315 = vmatpush1.bf16.xpose.msra.mxu0 0
    %3316 = vmatprep.subr.bf16.mxu0 0
    %3317 = vmatpush1.bf16.xpose.msra.mxu0 0
    %3318 = vmatprep.subr.bf16.mxu0 0
    %3319 = vmatpush1.bf16.xpose.msra.mxu0 0
    %3320 = vmatprep.subr.bf16.mxu0 0
    %3321 = vmatpush1.bf16.xpose.msra.mxu0 0
    %3322 = vmatprep.subr.bf16.mxu0 0
    %3323 = vmatpush1.bf16.xpose.msra.mxu0 0
    %3324 = vmatprep.subr.bf16.mxu0 0
    %3325 = vmatpush1.bf16.xpose.msra.mxu0 0
    %3326 = vmatprep.subr.bf16.mxu0 0
    %3327 = vmatpush1.bf16.xpose.msra.mxu0 0
    %3328 = vmatprep.subr.bf16.mxu0 0
    %3329 = vmatpush1.bf16.xpose.msra.mxu0 0
    %3330 = vmatprep.subr.bf16.mxu0 0
    %3331 = vmatpush1.bf16.xpose.msra.mxu0 0
    %3332 = vmatprep.subr.bf16.mxu0 0
    %3333 = vmatpush1.bf16.xpose.msra.mxu0 0
    %3334 = vmatprep.subr.bf16.mxu0 0
    %3335 = vmatpush1.bf16.xpose.msra.mxu0 0
    %3336 = vmatprep.subr.bf16.mxu0 0
    %3337 = vmatpush1.bf16.xpose.msra.mxu0 0
    %3338 = vmatprep.subr.bf16.mxu0 0
    %3339 = vmatpush1.bf16.xpose.msra.mxu0 0
    %3340 = vmatprep.subr.bf16.mxu0 0
    %3341 = vmatpush1.bf16.xpose.msra.mxu0 0
    %3342 = vmatprep.mubr.bf16.mxu0 0
    %3343 = vmatmul.mubr.bf16.gmra.mrb[0].mxu0 %v3299
    %v3344 = vpop.f32.mrb[0].mxu0
    %v3345 = vadd.f32 %v271, %v3344
    %v3346 = vpop.f32.mrb[0].mxu0
    %v3347 = vpop.f32.mrb[0].mxu0
    %v3348 = vadd.f32 %v272, %v3347
    %v3349 = vpop.f32.mrb[0].mxu0
    %3350 = vmatprep.mubr.bf16.mxu0 0
    %3351 = vmatmul.mubr.bf16.gmra.mrb[0].mxu0 %v3302
    %v3352 = vpop.f32.mrb[0].mxu0
    %v3353 = vadd.f32 %v273, %v3352
    %v3354 = vpop.f32.mrb[0].mxu0
    %v3355 = vpop.f32.mrb[0].mxu0
    %v3356 = vadd.f32 %v274, %v3355
    %v3357 = vpop.f32.mrb[0].mxu0
    %3358 = vdwg.mxu0
    %v3359 = vsel %vm277, %v3345, -inf
    %3360 = vmax.xlane.f32.xlu0 %v3359
    %v3361 = vpop.xlane.xlu0 %3360
    %v3362 = vsel %vm277, %v3348, -inf
    %3363 = vmax.xlane.f32.xlu0 %v3362
    %v3364 = vpop.xlane.xlu0 %3363
    %v3365 = vsel %vm277, %v3353, -inf
    %3366 = vmax.xlane.f32.xlu0 %v3365
    %v3367 = vpop.xlane.xlu0 %3366
    %v3368 = vsel %vm277, %v3356, -inf
    %3369 = vmax.xlane.f32.xlu0 %v3368
    %v3370 = vpop.xlane.xlu0 %3369
    %v3371 = vsub.f32 %v3345, %v3361
    %v3372 = vsub.f32 %v3348, %v3364
    %v3373 = vsub.f32 %v3353, %v3367
    %v3374 = vsub.f32 %v3356, %v3370
    %v3375 = vmul.f32 %v3371, 1.442695
    %v3376 = vpow.pop %v3375
    %v3377 = vmul.f32 %v3372, 1.442695
    %v3378 = vpow.pop %v3377
    %v3379 = vmul.f32 %v3373, 1.442695
    %v3380 = vpow.pop %v3379
    %v3381 = vmul.f32 %v3374, 1.442695
    %v3382 = vpow.pop %v3381
    %v3383 = vsel %vm277, %v3376, 0.0
    %3384 = vadd.xlane.f32.xlu0 %v3383
    %v3385 = vpop.xlane.xlu0 %3384
    %v3386 = vsel %vm277, %v3378, 0.0
    %3387 = vadd.xlane.f32.xlu0 %v3386
    %v3388 = vpop.xlane.xlu0 %3387
    %v3389 = vsel %vm277, %v3380, 0.0
    %3390 = vadd.xlane.f32.xlu0 %v3389
    %v3391 = vpop.xlane.xlu0 %3390
    %v3392 = vsel %vm277, %v3382, 0.0
    %3393 = vadd.xlane.f32.xlu0 %v3392
    %v3394 = vpop.xlane.xlu0 %3393
    %v3395 = vrcp.pop %v3385
    %v3396 = vrcp.pop %v3388
    %v3397 = vrcp.pop %v3391
    %v3398 = vrcp.pop %v3394
    %v3399 = vmul.f32 %v3376, %v3395
    %v3400 = vmul.f32 %v3378, %v3396
    %v3401 = vmul.f32 %v3380, %v3397
    %v3402 = vmul.f32 %v3382, %v3398
    %v3403 = vpack.c.bf16 %v3400, %v3399
    %v3404 = vpack.c.bf16 %v3402, %v3401
    %3405 = vrot.lane.b32.xlu0 %v2520, 48
    %v3406 = vpop.permute.xlu0 %3405
    %3407 = vrot.lane.b32.xlu0 %v2521, 48
    %v3408 = vpop.permute.xlu0 %3407
    %v3412 = vsel %vm277, %v3403, 0
    %v3415 = vsel %vm277, %v3404, 0
    %3417 = vmatprep.subr.bf16.mxu0 0
    %3418 = vmatpush1.bf16.msra.mxu0 %v3406
    %3419 = vmatprep.subr.bf16.mxu0 0
    %3420 = vmatpush1.bf16.msra.mxu0 %v3408
    %3421 = vmatprep.subr.bf16.mxu0 0
    %3422 = vmatpush1.bf16.msra.mxu0 0
    %3423 = vmatprep.subr.bf16.mxu0 0
    %3424 = vmatpush1.bf16.msra.mxu0 0
    %3425 = vmatprep.subr.bf16.mxu0 0
    %3426 = vmatpush1.bf16.msra.mxu0 0
    %3427 = vmatprep.subr.bf16.mxu0 0
    %3428 = vmatpush1.bf16.msra.mxu0 0
    %3429 = vmatprep.subr.bf16.mxu0 0
    %3430 = vmatpush1.bf16.msra.mxu0 0
    %3431 = vmatprep.subr.bf16.mxu0 0
    %3432 = vmatpush1.bf16.msra.mxu0 0
    %3433 = vmatprep.subr.bf16.mxu0 0
    %3434 = vmatpush1.bf16.msra.mxu0 0
    %3435 = vmatprep.subr.bf16.mxu0 0
    %3436 = vmatpush1.bf16.msra.mxu0 0
    %3437 = vmatprep.subr.bf16.mxu0 0
    %3438 = vmatpush1.bf16.msra.mxu0 0
    %3439 = vmatprep.subr.bf16.mxu0 0
    %3440 = vmatpush1.bf16.msra.mxu0 0
    %3441 = vmatprep.subr.bf16.mxu0 0
    %3442 = vmatpush1.bf16.msra.mxu0 0
    %3443 = vmatprep.subr.bf16.mxu0 0
    %3444 = vmatpush1.bf16.msra.mxu0 0
    %3445 = vmatprep.subr.bf16.mxu0 0
    %3446 = vmatpush1.bf16.msra.mxu0 0
    %3447 = vmatprep.subr.bf16.mxu0 0
    %3448 = vmatpush1.bf16.msra.mxu0 0
    %3449 = vmatprep.mubr.bf16.mxu0 0
    %3450 = vmatmul.mubr.bf16.gmra.mrb[0].mxu0 %v3412
    %v3451 = vpop.f32.mrb[0].mxu0
    %v3452 = vadd.f32 0.0, %v3451
    %v3453 = vpop.f32.mrb[0].mxu0
    %v3454 = vpop.f32.mrb[0].mxu0
    %v3455 = vadd.f32 0.0, %v3454
    %v3456 = vpop.f32.mrb[0].mxu0
    %3457 = vmatprep.mubr.bf16.mxu0 0
    %3458 = vmatmul.mubr.bf16.gmra.mrb[0].mxu0 %v3415
    %v3459 = vpop.f32.mrb[0].mxu0
    %v3460 = vadd.f32 0.0, %v3459
    %v3461 = vpop.f32.mrb[0].mxu0
    %v3462 = vpop.f32.mrb[0].mxu0
    %v3463 = vadd.f32 0.0, %v3462
    %v3464 = vpop.f32.mrb[0].mxu0
    %3465 = vdwg.mxu0
    %3470 = vrot.lane.b32.xlu0 %v3452, 16
    %v3471 = vpop.permute.xlu0 %3470
    %3472 = vrot.lane.b32.xlu0 %v3455, 16
    %v3473 = vpop.permute.xlu0 %3472
    %3474 = vrot.lane.b32.xlu0 %v3460, 16
    %v3475 = vpop.permute.xlu0 %3474
    %3476 = vrot.lane.b32.xlu0 %v3463, 16
    %v3477 = vpop.permute.xlu0 %3476
    %3482 = vst.msk [vmem:[#allocation2] sm:$0xff] %vm1396, %v3471
    %3483 = vst.msk [vmem:[#allocation2 + $0x8] sm:$0xff] %vm1396, %v3473
    %3484 = vst.msk [vmem:[#allocation2 + $0x10] sm:$0xff] %vm1396, %v3475
    %3485 = vst.msk [vmem:[#allocation2 + $0x18] sm:$0xff] %vm1396, %v3477
    %3486 = vrot.lane.b32.xlu0 %v2518, 108
    %v3487 = vpop.permute.xlu0 %3486
    %3488 = vrot.lane.b32.xlu0 %v2519, 108
    %v3489 = vpop.permute.xlu0 %3488
    %3490 = vrot.lane.b32.xlu0 %v2520, 76
    %v3491 = vpop.permute.xlu0 %3490
    %3492 = vrot.lane.b32.xlu0 %v2521, 76
    %v3493 = vpop.permute.xlu0 %3492
    %v3495 = vsel %vm438, %v3487, 0
    %v3498 = vsel %vm438, %v3489, 0
    %v3501 = vsel %vm438, %v3491, 0
    %v3504 = vsel %vm438, %v3493, 0
    %3506 = vmatprep.subr.bf16.mxu0 0
    %3507 = vmatpush1.bf16.xpose.msra.mxu0 %v3501
    %3508 = vmatprep.subr.bf16.mxu0 0
    %3509 = vmatpush1.bf16.xpose.msra.mxu0 %v3504
    %3510 = vmatprep.subr.bf16.mxu0 0
    %3511 = vmatpush1.bf16.xpose.msra.mxu0 0
    %3512 = vmatprep.subr.bf16.mxu0 0
    %3513 = vmatpush1.bf16.xpose.msra.mxu0 0
    %3514 = vmatprep.subr.bf16.mxu0 0
    %3515 = vmatpush1.bf16.xpose.msra.mxu0 0
    %3516 = vmatprep.subr.bf16.mxu0 0
    %3517 = vmatpush1.bf16.xpose.msra.mxu0 0
    %3518 = vmatprep.subr.bf16.mxu0 0
    %3519 = vmatpush1.bf16.xpose.msra.mxu0 0
    %3520 = vmatprep.subr.bf16.mxu0 0
    %3521 = vmatpush1.bf16.xpose.msra.mxu0 0
    %3522 = vmatprep.subr.bf16.mxu0 0
    %3523 = vmatpush1.bf16.xpose.msra.mxu0 0
    %3524 = vmatprep.subr.bf16.mxu0 0
    %3525 = vmatpush1.bf16.xpose.msra.mxu0 0
    %3526 = vmatprep.subr.bf16.mxu0 0
    %3527 = vmatpush1.bf16.xpose.msra.mxu0 0
    %3528 = vmatprep.subr.bf16.mxu0 0
    %3529 = vmatpush1.bf16.xpose.msra.mxu0 0
    %3530 = vmatprep.subr.bf16.mxu0 0
    %3531 = vmatpush1.bf16.xpose.msra.mxu0 0
    %3532 = vmatprep.subr.bf16.mxu0 0
    %3533 = vmatpush1.bf16.xpose.msra.mxu0 0
    %3534 = vmatprep.subr.bf16.mxu0 0
    %3535 = vmatpush1.bf16.xpose.msra.mxu0 0
    %3536 = vmatprep.subr.bf16.mxu0 0
    %3537 = vmatpush1.bf16.xpose.msra.mxu0 0
    %3538 = vmatprep.mubr.bf16.mxu0 0
    %3539 = vmatmul.mubr.bf16.gmra.mrb[0].mxu0 %v3495
    %v3540 = vpop.f32.mrb[0].mxu0
    %v3541 = vadd.f32 %v271, %v3540
    %v3542 = vpop.f32.mrb[0].mxu0
    %v3543 = vpop.f32.mrb[0].mxu0
    %v3544 = vadd.f32 %v272, %v3543
    %v3545 = vpop.f32.mrb[0].mxu0
    %3546 = vmatprep.mubr.bf16.mxu0 0
    %3547 = vmatmul.mubr.bf16.gmra.mrb[0].mxu0 %v3498
    %v3548 = vpop.f32.mrb[0].mxu0
    %v3549 = vadd.f32 %v273, %v3548
    %v3550 = vpop.f32.mrb[0].mxu0
    %v3551 = vpop.f32.mrb[0].mxu0
    %v3552 = vadd.f32 %v274, %v3551
    %v3553 = vpop.f32.mrb[0].mxu0
    %3554 = vdwg.mxu0
    %v3555 = vsel %vm277, %v3541, -inf
    %3556 = vmax.xlane.f32.xlu0 %v3555
    %v3557 = vpop.xlane.xlu0 %3556
    %v3558 = vsel %vm277, %v3544, -inf
    %3559 = vmax.xlane.f32.xlu0 %v3558
    %v3560 = vpop.xlane.xlu0 %3559
    %v3561 = vsel %vm277, %v3549, -inf
    %3562 = vmax.xlane.f32.xlu0 %v3561
    %v3563 = vpop.xlane.xlu0 %3562
    %v3564 = vsel %vm277, %v3552, -inf
    %3565 = vmax.xlane.f32.xlu0 %v3564
    %v3566 = vpop.xlane.xlu0 %3565
    %v3567 = vsub.f32 %v3541, %v3557
    %v3568 = vsub.f32 %v3544, %v3560
    %v3569 = vsub.f32 %v3549, %v3563
    %v3570 = vsub.f32 %v3552, %v3566
    %v3571 = vmul.f32 %v3567, 1.442695
    %v3572 = vpow.pop %v3571
    %v3573 = vmul.f32 %v3568, 1.442695
    %v3574 = vpow.pop %v3573
    %v3575 = vmul.f32 %v3569, 1.442695
    %v3576 = vpow.pop %v3575
    %v3577 = vmul.f32 %v3570, 1.442695
    %v3578 = vpow.pop %v3577
    %v3579 = vsel %vm277, %v3572, 0.0
    %3580 = vadd.xlane.f32.xlu0 %v3579
    %v3581 = vpop.xlane.xlu0 %3580
    %v3582 = vsel %vm277, %v3574, 0.0
    %3583 = vadd.xlane.f32.xlu0 %v3582
    %v3584 = vpop.xlane.xlu0 %3583
    %v3585 = vsel %vm277, %v3576, 0.0
    %3586 = vadd.xlane.f32.xlu0 %v3585
    %v3587 = vpop.xlane.xlu0 %3586
    %v3588 = vsel %vm277, %v3578, 0.0
    %3589 = vadd.xlane.f32.xlu0 %v3588
    %v3590 = vpop.xlane.xlu0 %3589
    %v3591 = vrcp.pop %v3581
    %v3592 = vrcp.pop %v3584
    %v3593 = vrcp.pop %v3587
    %v3594 = vrcp.pop %v3590
    %v3595 = vmul.f32 %v3572, %v3591
    %v3596 = vmul.f32 %v3574, %v3592
    %v3597 = vmul.f32 %v3576, %v3593
    %v3598 = vmul.f32 %v3578, %v3594
    %v3599 = vpack.c.bf16 %v3596, %v3595
    %v3600 = vpack.c.bf16 %v3598, %v3597
    %3601 = vrot.lane.b32.xlu0 %v2520, 44
    %v3602 = vpop.permute.xlu0 %3601
    %3603 = vrot.lane.b32.xlu0 %v2521, 44
    %v3604 = vpop.permute.xlu0 %3603
    %v3608 = vsel %vm277, %v3599, 0
    %v3611 = vsel %vm277, %v3600, 0
    %3613 = vmatprep.subr.bf16.mxu0 0
    %3614 = vmatpush1.bf16.msra.mxu0 %v3602
    %3615 = vmatprep.subr.bf16.mxu0 0
    %3616 = vmatpush1.bf16.msra.mxu0 %v3604
    %3617 = vmatprep.subr.bf16.mxu0 0
    %3618 = vmatpush1.bf16.msra.mxu0 0
    %3619 = vmatprep.subr.bf16.mxu0 0
    %3620 = vmatpush1.bf16.msra.mxu0 0
    %3621 = vmatprep.subr.bf16.mxu0 0
    %3622 = vmatpush1.bf16.msra.mxu0 0
    %3623 = vmatprep.subr.bf16.mxu0 0
    %3624 = vmatpush1.bf16.msra.mxu0 0
    %3625 = vmatprep.subr.bf16.mxu0 0
    %3626 = vmatpush1.bf16.msra.mxu0 0
    %3627 = vmatprep.subr.bf16.mxu0 0
    %3628 = vmatpush1.bf16.msra.mxu0 0
    %3629 = vmatprep.subr.bf16.mxu0 0
    %3630 = vmatpush1.bf16.msra.mxu0 0
    %3631 = vmatprep.subr.bf16.mxu0 0
    %3632 = vmatpush1.bf16.msra.mxu0 0
    %3633 = vmatprep.subr.bf16.mxu0 0
    %3634 = vmatpush1.bf16.msra.mxu0 0
    %3635 = vmatprep.subr.bf16.mxu0 0
    %3636 = vmatpush1.bf16.msra.mxu0 0
    %3637 = vmatprep.subr.bf16.mxu0 0
    %3638 = vmatpush1.bf16.msra.mxu0 0
    %3639 = vmatprep.subr.bf16.mxu0 0
    %3640 = vmatpush1.bf16.msra.mxu0 0
    %3641 = vmatprep.subr.bf16.mxu0 0
    %3642 = vmatpush1.bf16.msra.mxu0 0
    %3643 = vmatprep.subr.bf16.mxu0 0
    %3644 = vmatpush1.bf16.msra.mxu0 0
    %3645 = vmatprep.mubr.bf16.mxu0 0
    %3646 = vmatmul.mubr.bf16.gmra.mrb[0].mxu0 %v3608
    %v3647 = vpop.f32.mrb[0].mxu0
    %v3648 = vadd.f32 0.0, %v3647
    %v3649 = vpop.f32.mrb[0].mxu0
    %v3650 = vpop.f32.mrb[0].mxu0
    %v3651 = vadd.f32 0.0, %v3650
    %v3652 = vpop.f32.mrb[0].mxu0
    %3653 = vmatprep.mubr.bf16.mxu0 0
    %3654 = vmatmul.mubr.bf16.gmra.mrb[0].mxu0 %v3611
    %v3655 = vpop.f32.mrb[0].mxu0
    %v3656 = vadd.f32 0.0, %v3655
    %v3657 = vpop.f32.mrb[0].mxu0
    %v3658 = vpop.f32.mrb[0].mxu0
    %v3659 = vadd.f32 0.0, %v3658
    %v3660 = vpop.f32.mrb[0].mxu0
    %3661 = vdwg.mxu0
    %3666 = vrot.lane.b32.xlu0 %v3648, 20
    %v3667 = vpop.permute.xlu0 %3666
    %3668 = vrot.lane.b32.xlu0 %v3651, 20
    %v3669 = vpop.permute.xlu0 %3668
    %3670 = vrot.lane.b32.xlu0 %v3656, 20
    %v3671 = vpop.permute.xlu0 %3670
    %3672 = vrot.lane.b32.xlu0 %v3659, 20
    %v3673 = vpop.permute.xlu0 %3672
    %3678 = vst.msk [vmem:[#allocation2] sm:$0xff] %vm1593, %v3667
    %3679 = vst.msk [vmem:[#allocation2 + $0x8] sm:$0xff] %vm1593, %v3669
    %3680 = vst.msk [vmem:[#allocation2 + $0x10] sm:$0xff] %vm1593, %v3671
    %3681 = vst.msk [vmem:[#allocation2 + $0x18] sm:$0xff] %vm1593, %v3673
    %3682 = vrot.lane.b32.xlu0 %v2518, 104
    %v3683 = vpop.permute.xlu0 %3682
    %3684 = vrot.lane.b32.xlu0 %v2519, 104
    %v3685 = vpop.permute.xlu0 %3684
    %3686 = vrot.lane.b32.xlu0 %v2520, 72
    %v3687 = vpop.permute.xlu0 %3686
    %3688 = vrot.lane.b32.xlu0 %v2521, 72
    %v3689 = vpop.permute.xlu0 %3688
    %v3691 = vsel %vm438, %v3683, 0
    %v3694 = vsel %vm438, %v3685, 0
    %v3697 = vsel %vm438, %v3687, 0
    %v3700 = vsel %vm438, %v3689, 0
    %3702 = vmatprep.subr.bf16.mxu0 0
    %3703 = vmatpush1.bf16.xpose.msra.mxu0 %v3697
    %3704 = vmatprep.subr.bf16.mxu0 0
    %3705 = vmatpush1.bf16.xpose.msra.mxu0 %v3700
    %3706 = vmatprep.subr.bf16.mxu0 0
    %3707 = vmatpush1.bf16.xpose.msra.mxu0 0
    %3708 = vmatprep.subr.bf16.mxu0 0
    %3709 = vmatpush1.bf16.xpose.msra.mxu0 0
    %3710 = vmatprep.subr.bf16.mxu0 0
    %3711 = vmatpush1.bf16.xpose.msra.mxu0 0
    %3712 = vmatprep.subr.bf16.mxu0 0
    %3713 = vmatpush1.bf16.xpose.msra.mxu0 0
    %3714 = vmatprep.subr.bf16.mxu0 0
    %3715 = vmatpush1.bf16.xpose.msra.mxu0 0
    %3716 = vmatprep.subr.bf16.mxu0 0
    %3717 = vmatpush1.bf16.xpose.msra.mxu0 0
    %3718 = vmatprep.subr.bf16.mxu0 0
    %3719 = vmatpush1.bf16.xpose.msra.mxu0 0
    %3720 = vmatprep.subr.bf16.mxu0 0
    %3721 = vmatpush1.bf16.xpose.msra.mxu0 0
    %3722 = vmatprep.subr.bf16.mxu0 0
    %3723 = vmatpush1.bf16.xpose.msra.mxu0 0
    %3724 = vmatprep.subr.bf16.mxu0 0
    %3725 = vmatpush1.bf16.xpose.msra.mxu0 0
    %3726 = vmatprep.subr.bf16.mxu0 0
    %3727 = vmatpush1.bf16.xpose.msra.mxu0 0
    %3728 = vmatprep.subr.bf16.mxu0 0
    %3729 = vmatpush1.bf16.xpose.msra.mxu0 0
    %3730 = vmatprep.subr.bf16.mxu0 0
    %3731 = vmatpush1.bf16.xpose.msra.mxu0 0
    %3732 = vmatprep.subr.bf16.mxu0 0
    %3733 = vmatpush1.bf16.xpose.msra.mxu0 0
    %3734 = vmatprep.mubr.bf16.mxu0 0
    %3735 = vmatmul.mubr.bf16.gmra.mrb[0].mxu0 %v3691
    %v3736 = vpop.f32.mrb[0].mxu0
    %v3737 = vadd.f32 %v271, %v3736
    %v3738 = vpop.f32.mrb[0].mxu0
    %v3739 = vpop.f32.mrb[0].mxu0
    %v3740 = vadd.f32 %v272, %v3739
    %v3741 = vpop.f32.mrb[0].mxu0
    %3742 = vmatprep.mubr.bf16.mxu0 0
    %3743 = vmatmul.mubr.bf16.gmra.mrb[0].mxu0 %v3694
    %v3744 = vpop.f32.mrb[0].mxu0
    %v3745 = vadd.f32 %v273, %v3744
    %v3746 = vpop.f32.mrb[0].mxu0
    %v3747 = vpop.f32.mrb[0].mxu0
    %v3748 = vadd.f32 %v274, %v3747
    %v3749 = vpop.f32.mrb[0].mxu0
    %3750 = vdwg.mxu0
    %v3751 = vsel %vm277, %v3737, -inf
    %3752 = vmax.xlane.f32.xlu0 %v3751
    %v3753 = vpop.xlane.xlu0 %3752
    %v3754 = vsel %vm277, %v3740, -inf
    %3755 = vmax.xlane.f32.xlu0 %v3754
    %v3756 = vpop.xlane.xlu0 %3755
    %v3757 = vsel %vm277, %v3745, -inf
    %3758 = vmax.xlane.f32.xlu0 %v3757
    %v3759 = vpop.xlane.xlu0 %3758
    %v3760 = vsel %vm277, %v3748, -inf
    %3761 = vmax.xlane.f32.xlu0 %v3760
    %v3762 = vpop.xlane.xlu0 %3761
    %v3763 = vsub.f32 %v3737, %v3753
    %v3764 = vsub.f32 %v3740, %v3756
    %v3765 = vsub.f32 %v3745, %v3759
    %v3766 = vsub.f32 %v3748, %v3762
    %v3767 = vmul.f32 %v3763, 1.442695
    %v3768 = vpow.pop %v3767
    %v3769 = vmul.f32 %v3764, 1.442695
    %v3770 = vpow.pop %v3769
    %v3771 = vmul.f32 %v3765, 1.442695
    %v3772 = vpow.pop %v3771
    %v3773 = vmul.f32 %v3766, 1.442695
    %v3774 = vpow.pop %v3773
    %v3775 = vsel %vm277, %v3768, 0.0
    %3776 = vadd.xlane.f32.xlu0 %v3775
    %v3777 = vpop.xlane.xlu0 %3776
    %v3778 = vsel %vm277, %v3770, 0.0
    %3779 = vadd.xlane.f32.xlu0 %v3778
    %v3780 = vpop.xlane.xlu0 %3779
    %v3781 = vsel %vm277, %v3772, 0.0
    %3782 = vadd.xlane.f32.xlu0 %v3781
    %v3783 = vpop.xlane.xlu0 %3782
    %v3784 = vsel %vm277, %v3774, 0.0
    %3785 = vadd.xlane.f32.xlu0 %v3784
    %v3786 = vpop.xlane.xlu0 %3785
    %v3787 = vrcp.pop %v3777
    %v3788 = vrcp.pop %v3780
    %v3789 = vrcp.pop %v3783
    %v3790 = vrcp.pop %v3786
    %v3791 = vmul.f32 %v3768, %v3787
    %v3792 = vmul.f32 %v3770, %v3788
    %v3793 = vmul.f32 %v3772, %v3789
    %v3794 = vmul.f32 %v3774, %v3790
    %v3795 = vpack.c.bf16 %v3792, %v3791
    %v3796 = vpack.c.bf16 %v3794, %v3793
    %3797 = vrot.lane.b32.xlu0 %v2520, 40
    %v3798 = vpop.permute.xlu0 %3797
    %3799 = vrot.lane.b32.xlu0 %v2521, 40
    %v3800 = vpop.permute.xlu0 %3799
    %v3804 = vsel %vm277, %v3795, 0
    %v3807 = vsel %vm277, %v3796, 0
    %3809 = vmatprep.subr.bf16.mxu0 0
    %3810 = vmatpush1.bf16.msra.mxu0 %v3798
    %3811 = vmatprep.subr.bf16.mxu0 0
    %3812 = vmatpush1.bf16.msra.mxu0 %v3800
    %3813 = vmatprep.subr.bf16.mxu0 0
    %3814 = vmatpush1.bf16.msra.mxu0 0
    %3815 = vmatprep.subr.bf16.mxu0 0
    %3816 = vmatpush1.bf16.msra.mxu0 0
    %3817 = vmatprep.subr.bf16.mxu0 0
    %3818 = vmatpush1.bf16.msra.mxu0 0
    %3819 = vmatprep.subr.bf16.mxu0 0
    %3820 = vmatpush1.bf16.msra.mxu0 0
    %3821 = vmatprep.subr.bf16.mxu0 0
    %3822 = vmatpush1.bf16.msra.mxu0 0
    %3823 = vmatprep.subr.bf16.mxu0 0
    %3824 = vmatpush1.bf16.msra.mxu0 0
    %3825 = vmatprep.subr.bf16.mxu0 0
    %3826 = vmatpush1.bf16.msra.mxu0 0
    %3827 = vmatprep.subr.bf16.mxu0 0
    %3828 = vmatpush1.bf16.msra.mxu0 0
    %3829 = vmatprep.subr.bf16.mxu0 0
    %3830 = vmatpush1.bf16.msra.mxu0 0
    %3831 = vmatprep.subr.bf16.mxu0 0
    %3832 = vmatpush1.bf16.msra.mxu0 0
    %3833 = vmatprep.subr.bf16.mxu0 0
    %3834 = vmatpush1.bf16.msra.mxu0 0
    %3835 = vmatprep.subr.bf16.mxu0 0
    %3836 = vmatpush1.bf16.msra.mxu0 0
    %3837 = vmatprep.subr.bf16.mxu0 0
    %3838 = vmatpush1.bf16.msra.mxu0 0
    %3839 = vmatprep.subr.bf16.mxu0 0
    %3840 = vmatpush1.bf16.msra.mxu0 0
    %3841 = vmatprep.mubr.bf16.mxu0 0
    %3842 = vmatmul.mubr.bf16.gmra.mrb[0].mxu0 %v3804
    %v3843 = vpop.f32.mrb[0].mxu0
    %v3844 = vadd.f32 0.0, %v3843
    %v3845 = vpop.f32.mrb[0].mxu0
    %v3846 = vpop.f32.mrb[0].mxu0
    %v3847 = vadd.f32 0.0, %v3846
    %v3848 = vpop.f32.mrb[0].mxu0
    %3849 = vmatprep.mubr.bf16.mxu0 0
    %3850 = vmatmul.mubr.bf16.gmra.mrb[0].mxu0 %v3807
    %v3851 = vpop.f32.mrb[0].mxu0
    %v3852 = vadd.f32 0.0, %v3851
    %v3853 = vpop.f32.mrb[0].mxu0
    %v3854 = vpop.f32.mrb[0].mxu0
    %v3855 = vadd.f32 0.0, %v3854
    %v3856 = vpop.f32.mrb[0].mxu0
    %3857 = vdwg.mxu0
    %3862 = vrot.lane.b32.xlu0 %v3844, 24
    %v3863 = vpop.permute.xlu0 %3862
    %3864 = vrot.lane.b32.xlu0 %v3847, 24
    %v3865 = vpop.permute.xlu0 %3864
    %3866 = vrot.lane.b32.xlu0 %v3852, 24
    %v3867 = vpop.permute.xlu0 %3866
    %3868 = vrot.lane.b32.xlu0 %v3855, 24
    %v3869 = vpop.permute.xlu0 %3868
    %3874 = vst.msk [vmem:[#allocation2] sm:$0xff] %vm1790, %v3863
    %3875 = vst.msk [vmem:[#allocation2 + $0x8] sm:$0xff] %vm1790, %v3865
    %3876 = vst.msk [vmem:[#allocation2 + $0x10] sm:$0xff] %vm1790, %v3867
    %3877 = vst.msk [vmem:[#allocation2 + $0x18] sm:$0xff] %vm1790, %v3869
    %3878 = vrot.lane.b32.xlu0 %v2518, 100
    %v3879 = vpop.permute.xlu0 %3878
    %3880 = vrot.lane.b32.xlu0 %v2519, 100
    %v3881 = vpop.permute.xlu0 %3880
    %3882 = vrot.lane.b32.xlu0 %v2520, 68
    %v3883 = vpop.permute.xlu0 %3882
    %3884 = vrot.lane.b32.xlu0 %v2521, 68
    %v3885 = vpop.permute.xlu0 %3884
    %v3887 = vsel %vm438, %v3879, 0
    %v3890 = vsel %vm438, %v3881, 0
    %v3893 = vsel %vm438, %v3883, 0
    %v3896 = vsel %vm438, %v3885, 0
    %3898 = vmatprep.subr.bf16.mxu0 0
    %3899 = vmatpush1.bf16.xpose.msra.mxu0 %v3893
    %3900 = vmatprep.subr.bf16.mxu0 0
    %3901 = vmatpush1.bf16.xpose.msra.mxu0 %v3896
    %3902 = vmatprep.subr.bf16.mxu0 0
    %3903 = vmatpush1.bf16.xpose.msra.mxu0 0
    %3904 = vmatprep.subr.bf16.mxu0 0
    %3905 = vmatpush1.bf16.xpose.msra.mxu0 0
    %3906 = vmatprep.subr.bf16.mxu0 0
    %3907 = vmatpush1.bf16.xpose.msra.mxu0 0
    %3908 = vmatprep.subr.bf16.mxu0 0
    %3909 = vmatpush1.bf16.xpose.msra.mxu0 0
    %3910 = vmatprep.subr.bf16.mxu0 0
    %3911 = vmatpush1.bf16.xpose.msra.mxu0 0
    %3912 = vmatprep.subr.bf16.mxu0 0
    %3913 = vmatpush1.bf16.xpose.msra.mxu0 0
    %3914 = vmatprep.subr.bf16.mxu0 0
    %3915 = vmatpush1.bf16.xpose.msra.mxu0 0
    %3916 = vmatprep.subr.bf16.mxu0 0
    %3917 = vmatpush1.bf16.xpose.msra.mxu0 0
    %3918 = vmatprep.subr.bf16.mxu0 0
    %3919 = vmatpush1.bf16.xpose.msra.mxu0 0
    %3920 = vmatprep.subr.bf16.mxu0 0
    %3921 = vmatpush1.bf16.xpose.msra.mxu0 0
    %3922 = vmatprep.subr.bf16.mxu0 0
    %3923 = vmatpush1.bf16.xpose.msra.mxu0 0
    %3924 = vmatprep.subr.bf16.mxu0 0
    %3925 = vmatpush1.bf16.xpose.msra.mxu0 0
    %3926 = vmatprep.subr.bf16.mxu0 0
    %3927 = vmatpush1.bf16.xpose.msra.mxu0 0
    %3928 = vmatprep.subr.bf16.mxu0 0
    %3929 = vmatpush1.bf16.xpose.msra.mxu0 0
    %3930 = vmatprep.mubr.bf16.mxu0 0
    %3931 = vmatmul.mubr.bf16.gmra.mrb[0].mxu0 %v3887
    %v3932 = vpop.f32.mrb[0].mxu0
    %v3933 = vadd.f32 %v271, %v3932
    %v3934 = vpop.f32.mrb[0].mxu0
    %v3935 = vpop.f32.mrb[0].mxu0
    %v3936 = vadd.f32 %v272, %v3935
    %v3937 = vpop.f32.mrb[0].mxu0
    %3938 = vmatprep.mubr.bf16.mxu0 0
    %3939 = vmatmul.mubr.bf16.gmra.mrb[0].mxu0 %v3890
    %v3940 = vpop.f32.mrb[0].mxu0
    %v3941 = vadd.f32 %v273, %v3940
    %v3942 = vpop.f32.mrb[0].mxu0
    %v3943 = vpop.f32.mrb[0].mxu0
    %v3944 = vadd.f32 %v274, %v3943
    %v3945 = vpop.f32.mrb[0].mxu0
    %3946 = vdwg.mxu0
    %v3947 = vsel %vm277, %v3933, -inf
    %3948 = vmax.xlane.f32.xlu0 %v3947
    %v3949 = vpop.xlane.xlu0 %3948
    %v3950 = vsel %vm277, %v3936, -inf
    %3951 = vmax.xlane.f32.xlu0 %v3950
    %v3952 = vpop.xlane.xlu0 %3951
    %v3953 = vsel %vm277, %v3941, -inf
    %3954 = vmax.xlane.f32.xlu0 %v3953
    %v3955 = vpop.xlane.xlu0 %3954
    %v3956 = vsel %vm277, %v3944, -inf
    %3957 = vmax.xlane.f32.xlu0 %v3956
    %v3958 = vpop.xlane.xlu0 %3957
    %v3959 = vsub.f32 %v3933, %v3949
    %v3960 = vsub.f32 %v3936, %v3952
    %v3961 = vsub.f32 %v3941, %v3955
    %v3962 = vsub.f32 %v3944, %v3958
    %v3963 = vmul.f32 %v3959, 1.442695
    %v3964 = vpow.pop %v3963
    %v3965 = vmul.f32 %v3960, 1.442695
    %v3966 = vpow.pop %v3965
    %v3967 = vmul.f32 %v3961, 1.442695
    %v3968 = vpow.pop %v3967
    %v3969 = vmul.f32 %v3962, 1.442695
    %v3970 = vpow.pop %v3969
    %v3971 = vsel %vm277, %v3964, 0.0
    %3972 = vadd.xlane.f32.xlu0 %v3971
    %v3973 = vpop.xlane.xlu0 %3972
    %v3974 = vsel %vm277, %v3966, 0.0
    %3975 = vadd.xlane.f32.xlu0 %v3974
    %v3976 = vpop.xlane.xlu0 %3975
    %v3977 = vsel %vm277, %v3968, 0.0
    %3978 = vadd.xlane.f32.xlu0 %v3977
    %v3979 = vpop.xlane.xlu0 %3978
    %v3980 = vsel %vm277, %v3970, 0.0
    %3981 = vadd.xlane.f32.xlu0 %v3980
    %v3982 = vpop.xlane.xlu0 %3981
    %v3983 = vrcp.pop %v3973
    %v3984 = vrcp.pop %v3976
    %v3985 = vrcp.pop %v3979
    %v3986 = vrcp.pop %v3982
    %v3987 = vmul.f32 %v3964, %v3983
    %v3988 = vmul.f32 %v3966, %v3984
    %v3989 = vmul.f32 %v3968, %v3985
    %v3990 = vmul.f32 %v3970, %v3986
    %v3991 = vpack.c.bf16 %v3988, %v3987
    %v3992 = vpack.c.bf16 %v3990, %v3989
    %3993 = vrot.lane.b32.xlu0 %v2520, 36
    %v3994 = vpop.permute.xlu0 %3993
    %3995 = vrot.lane.b32.xlu0 %v2521, 36
    %v3996 = vpop.permute.xlu0 %3995
    %v4000 = vsel %vm277, %v3991, 0
    %v4003 = vsel %vm277, %v3992, 0
    %4005 = vmatprep.subr.bf16.mxu0 0
    %4006 = vmatpush1.bf16.msra.mxu0 %v3994
    %4007 = vmatprep.subr.bf16.mxu0 0
    %4008 = vmatpush1.bf16.msra.mxu0 %v3996
    %4009 = vmatprep.subr.bf16.mxu0 0
    %4010 = vmatpush1.bf16.msra.mxu0 0
    %4011 = vmatprep.subr.bf16.mxu0 0
    %4012 = vmatpush1.bf16.msra.mxu0 0
    %4013 = vmatprep.subr.bf16.mxu0 0
    %4014 = vmatpush1.bf16.msra.mxu0 0
    %4015 = vmatprep.subr.bf16.mxu0 0
    %4016 = vmatpush1.bf16.msra.mxu0 0
    %4017 = vmatprep.subr.bf16.mxu0 0
    %4018 = vmatpush1.bf16.msra.mxu0 0
    %4019 = vmatprep.subr.bf16.mxu0 0
    %4020 = vmatpush1.bf16.msra.mxu0 0
    %4021 = vmatprep.subr.bf16.mxu0 0
    %4022 = vmatpush1.bf16.msra.mxu0 0
    %4023 = vmatprep.subr.bf16.mxu0 0
    %4024 = vmatpush1.bf16.msra.mxu0 0
    %4025 = vmatprep.subr.bf16.mxu0 0
    %4026 = vmatpush1.bf16.msra.mxu0 0
    %4027 = vmatprep.subr.bf16.mxu0 0
    %4028 = vmatpush1.bf16.msra.mxu0 0
    %4029 = vmatprep.subr.bf16.mxu0 0
    %4030 = vmatpush1.bf16.msra.mxu0 0
    %4031 = vmatprep.subr.bf16.mxu0 0
    %4032 = vmatpush1.bf16.msra.mxu0 0
    %4033 = vmatprep.subr.bf16.mxu0 0
    %4034 = vmatpush1.bf16.msra.mxu0 0
    %4035 = vmatprep.subr.bf16.mxu0 0
    %4036 = vmatpush1.bf16.msra.mxu0 0
    %4037 = vmatprep.mubr.bf16.mxu0 0
    %4038 = vmatmul.mubr.bf16.gmra.mrb[0].mxu0 %v4000
    %v4039 = vpop.f32.mrb[0].mxu0
    %v4040 = vadd.f32 0.0, %v4039
    %v4041 = vpop.f32.mrb[0].mxu0
    %v4042 = vpop.f32.mrb[0].mxu0
    %v4043 = vadd.f32 0.0, %v4042
    %v4044 = vpop.f32.mrb[0].mxu0
    %4045 = vmatprep.mubr.bf16.mxu0 0
    %4046 = vmatmul.mubr.bf16.gmra.mrb[0].mxu0 %v4003
    %v4047 = vpop.f32.mrb[0].mxu0
    %v4048 = vadd.f32 0.0, %v4047
    %v4049 = vpop.f32.mrb[0].mxu0
    %v4050 = vpop.f32.mrb[0].mxu0
    %v4051 = vadd.f32 0.0, %v4050
    %v4052 = vpop.f32.mrb[0].mxu0
    %4053 = vdwg.mxu0
    %4058 = vrot.lane.b32.xlu0 %v4040, 28
    %v4059 = vpop.permute.xlu0 %4058
    %4060 = vrot.lane.b32.xlu0 %v4043, 28
    %v4061 = vpop.permute.xlu0 %4060
    %4062 = vrot.lane.b32.xlu0 %v4048, 28
    %v4063 = vpop.permute.xlu0 %4062
    %4064 = vrot.lane.b32.xlu0 %v4051, 28
    %v4065 = vpop.permute.xlu0 %4064
    %4070 = vst.msk [vmem:[#allocation2] sm:$0xff] %vm1987, %v4059
    %4071 = vst.msk [vmem:[#allocation2 + $0x8] sm:$0xff] %vm1987, %v4061
    %4072 = vst.msk [vmem:[#allocation2 + $0x10] sm:$0xff] %vm1987, %v4063
    %4073 = vst.msk [vmem:[#allocation2 + $0x18] sm:$0xff] %vm1987, %v4065
    %v4074 = vld [vmem:[#allocation2] sm:$0xff]
    %v4075 = vld [vmem:[#allocation2 + $0x8] sm:$0xff]
    %v4076 = vld [vmem:[#allocation2 + $0x10] sm:$0xff]
    %v4077 = vld [vmem:[#allocation2 + $0x18] sm:$0xff]
    %v4078 = vpack.c.bf16 %v4075, %v4074
    %v4079 = vpack.c.bf16 %v4077, %v4076
    %s4080 = scalar_lea.vmem %s6, 16
    %v4081 = vld [vmem:[%s4080] sm:$0xf]
    %v4082 = vld [vmem:[%s4080 + $0x4] sm:$0xf]
    %v4083 = vld [vmem:[%s4080 + $0x8] sm:$0xf]
    %v4084 = vld [vmem:[%s4080 + $0xc] sm:$0xf]
    %s4085 = scalar_lea.vmem %s7, 1
    %v4086 = vld [vmem:[%s4085] sm:$0x1]
    %v4088 = vlaneseq
    %v4089 = vshrl.u32 %v4088, 7
    %v4090 = vsub.s32 0, %v4089
    %v4091 = vrot.slane %v4086, %v4090
    %v4097 = vunpack.c.l.b16 %v4081
    %v4098 = vunpack.c.l.b16 %v4082
    %v4099 = vunpack.c.l.b16 %v4083
    %v4100 = vunpack.c.l.b16 %v4084
    %v4101 = vpack.c.b16 %v4098, %v4097
    %v4102 = vpack.c.b16 %v4100, %v4099
    %v4106 = vsel %vm277, %v4078, 0
    %v4109 = vsel %vm277, %v4079, 0
    %4111 = vmatprep.subr.bf16.mxu0 0
    %4112 = vmatpush1.bf16.msra.mxu0 %v4101
    %4113 = vmatprep.subr.bf16.mxu0 0
    %4114 = vmatpush1.bf16.msra.mxu0 %v4102
    %4115 = vmatprep.subr.bf16.mxu0 0
    %4116 = vmatpush1.bf16.msra.mxu0 0
    %4117 = vmatprep.subr.bf16.mxu0 0
    %4118 = vmatpush1.bf16.msra.mxu0 0
    %4119 = vmatprep.subr.bf16.mxu0 0
    %4120 = vmatpush1.bf16.msra.mxu0 0
    %4121 = vmatprep.subr.bf16.mxu0 0
    %4122 = vmatpush1.bf16.msra.mxu0 0
    %4123 = vmatprep.subr.bf16.mxu0 0
    %4124 = vmatpush1.bf16.msra.mxu0 0
    %4125 = vmatprep.subr.bf16.mxu0 0
    %4126 = vmatpush1.bf16.msra.mxu0 0
    %4127 = vmatprep.subr.bf16.mxu0 0
    %4128 = vmatpush1.bf16.msra.mxu0 0
    %4129 = vmatprep.subr.bf16.mxu0 0
    %4130 = vmatpush1.bf16.msra.mxu0 0
    %4131 = vmatprep.subr.bf16.mxu0 0
    %4132 = vmatpush1.bf16.msra.mxu0 0
    %4133 = vmatprep.subr.bf16.mxu0 0
    %4134 = vmatpush1.bf16.msra.mxu0 0
    %4135 = vmatprep.subr.bf16.mxu0 0
    %4136 = vmatpush1.bf16.msra.mxu0 0
    %4137 = vmatprep.subr.bf16.mxu0 0
    %4138 = vmatpush1.bf16.msra.mxu0 0
    %4139 = vmatprep.subr.bf16.mxu0 0
    %4140 = vmatpush1.bf16.msra.mxu0 0
    %4141 = vmatprep.subr.bf16.mxu0 0
    %4142 = vmatpush1.bf16.msra.mxu0 0
    %4143 = vmatprep.mubr.bf16.mxu0 0
    %4144 = vmatmul.mubr.bf16.gmra.mrb[0].mxu0 %v4106
    %v4145 = vpop.f32.mrb[0].mxu0
    %v4146 = vadd.f32 %v4091, %v4145
    %v4147 = vpop.f32.mrb[0].mxu0
    %v4148 = vpop.f32.mrb[0].mxu0
    %v4149 = vadd.f32 %v4091, %v4148
    %v4150 = vpop.f32.mrb[0].mxu0
    %4151 = vmatprep.mubr.bf16.mxu0 0
    %4152 = vmatmul.mubr.bf16.gmra.mrb[0].mxu0 %v4109
    %v4153 = vpop.f32.mrb[0].mxu0
    %v4154 = vadd.f32 %v4091, %v4153
    %v4155 = vpop.f32.mrb[0].mxu0
    %v4156 = vpop.f32.mrb[0].mxu0
    %v4157 = vadd.f32 %v4091, %v4156
    %v4158 = vpop.f32.mrb[0].mxu0
    %4159 = vdwg.mxu0
    %v4160 = vadd.f32 %v2360, %v4146
    %v4161 = vadd.f32 %v2361, %v4149
    %v4162 = vadd.f32 %v2362, %v4154
    %v4163 = vadd.f32 %v2363, %v4157
    %s4164 = scalar_lea.vmem %s8, 1
    %v4165 = vld [vmem:[%s4164] sm:$0x1]
    %s4166 = scalar_lea.vmem %s9, 1
    %v4167 = vld [vmem:[%s4166] sm:$0x1]
    %v4168 = vsel %vm277, %v4160, 0.0
    %4169 = vadd.xlane.f32.xlu0 %v4168
    %v4170 = vpop.xlane.xlu0 %4169
    %v4171 = vsel %vm277, %v4161, 0.0
    %4172 = vadd.xlane.f32.xlu0 %v4171
    %v4173 = vpop.xlane.xlu0 %4172
    %v4174 = vsel %vm277, %v4162, 0.0
    %4175 = vadd.xlane.f32.xlu0 %v4174
    %v4176 = vpop.xlane.xlu0 %4175
    %v4177 = vsel %vm277, %v4163, 0.0
    %4178 = vadd.xlane.f32.xlu0 %v4177
    %v4179 = vpop.xlane.xlu0 %4178
    %v4180 = vmul.f32 %v4170, %v290
    %v4181 = vmul.f32 %v4173, %v290
    %v4182 = vmul.f32 %v4176, %v290
    %v4183 = vmul.f32 %v4179, %v290
    %v4184 = vsub.f32 %v4160, %v4180
    %v4185 = vsub.f32 %v4161, %v4181
    %v4186 = vsub.f32 %v4162, %v4182
    %v4187 = vsub.f32 %v4163, %v4183
    %v4188 = vmul.f32 %v4184, %v4184
    %v4189 = vmul.f32 %v4185, %v4185
    %v4190 = vmul.f32 %v4186, %v4186
    %v4191 = vmul.f32 %v4187, %v4187
    %v4192 = vsel %vm277, %v4188, 0.0
    %4193 = vadd.xlane.f32.xlu0 %v4192
    %v4194 = vpop.xlane.xlu0 %4193
    %v4195 = vsel %vm277, %v4189, 0.0
    %4196 = vadd.xlane.f32.xlu0 %v4195
    %v4197 = vpop.xlane.xlu0 %4196
    %v4198 = vsel %vm277, %v4190, 0.0
    %4199 = vadd.xlane.f32.xlu0 %v4198
    %v4200 = vpop.xlane.xlu0 %4199
    %v4201 = vsel %vm277, %v4191, 0.0
    %4202 = vadd.xlane.f32.xlu0 %v4201
    %v4203 = vpop.xlane.xlu0 %4202
    %v4204 = vmul.f32 %v4194, %v290
    %v4205 = vmul.f32 %v4197, %v290
    %v4206 = vmul.f32 %v4200, %v290
    %v4207 = vmul.f32 %v4203, %v290
    %v4208 = vadd.f32 %v4204, 1e-05
    %v4209 = vadd.f32 %v4205, 1e-05
    %v4210 = vadd.f32 %v4206, 1e-05
    %v4211 = vadd.f32 %v4207, 1e-05
    %v4212 = vrsqrt.pop %v4208
    %v4213 = vrsqrt.pop %v4209
    %v4214 = vrsqrt.pop %v4210
    %v4215 = vrsqrt.pop %v4211
    %v4216 = vmul.f32 %v4184, %v4212
    %v4217 = vmul.f32 %v4185, %v4213
    %v4218 = vmul.f32 %v4186, %v4214
    %v4219 = vmul.f32 %v4187, %v4215
    %v4221 = vlaneseq
    %v4222 = vshrl.u32 %v4221, 7
    %v4223 = vsub.s32 0, %v4222
    %v4224 = vrot.slane %v4165, %v4223
    %v4226 = vmul.f32 %v4216, %v4224
    %v4227 = vmul.f32 %v4217, %v4224
    %v4228 = vmul.f32 %v4218, %v4224
    %v4229 = vmul.f32 %v4219, %v4224
    %v4231 = vlaneseq
    %v4232 = vshrl.u32 %v4231, 7
    %v4233 = vsub.s32 0, %v4232
    %v4234 = vrot.slane %v4167, %v4233
    %v4236 = vadd.f32 %v4226, %v4234
    %v4237 = vadd.f32 %v4227, %v4234
    %v4238 = vadd.f32 %v4228, %v4234
    %v4239 = vadd.f32 %v4229, %v4234
    %v4240 = vpack.c.bf16 %v4237, %v4236
    %v4241 = vpack.c.bf16 %v4239, %v4238
    %s4242 = scalar_lea.vmem %s10, 16
    %v4243 = vld [vmem:[%s4242] sm:$0xf]
    %v4244 = vld [vmem:[%s4242 + $0x4] sm:$0xf]
    %v4245 = vld [vmem:[%s4242 + $0x8] sm:$0xf]
    %v4246 = vld [vmem:[%s4242 + $0xc] sm:$0xf]
    %s4247 = scalar_lea.vmem %s11, 1
    %v4248 = vld [vmem:[%s4247] sm:$0x1]
    %v4250 = vlaneseq
    %v4251 = vshrl.u32 %v4250, 7
    %v4252 = vsub.s32 0, %v4251
    %v4253 = vrot.slane %v4248, %v4252
    %v4259 = vunpack.c.l.b16 %v4243
    %v4260 = vunpack.c.l.b16 %v4244
    %v4261 = vunpack.c.l.b16 %v4245
    %v4262 = vunpack.c.l.b16 %v4246
    %v4263 = vpack.c.b16 %v4260, %v4259
    %v4264 = vpack.c.b16 %v4262, %v4261
    %v4268 = vsel %vm277, %v4240, 0
    %v4271 = vsel %vm277, %v4241, 0
    %4273 = vmatprep.subr.bf16.mxu0 0
    %4274 = vmatpush1.bf16.msra.mxu0 %v4263
    %4275 = vmatprep.subr.bf16.mxu0 0
    %4276 = vmatpush1.bf16.msra.mxu0 %v4264
    %4277 = vmatprep.subr.bf16.mxu0 0
    %4278 = vmatpush1.bf16.msra.mxu0 0
    %4279 = vmatprep.subr.bf16.mxu0 0
    %4280 = vmatpush1.bf16.msra.mxu0 0
    %4281 = vmatprep.subr.bf16.mxu0 0
    %4282 = vmatpush1.bf16.msra.mxu0 0
    %4283 = vmatprep.subr.bf16.mxu0 0
    %4284 = vmatpush1.bf16.msra.mxu0 0
    %4285 = vmatprep.subr.bf16.mxu0 0
    %4286 = vmatpush1.bf16.msra.mxu0 0
    %4287 = vmatprep.subr.bf16.mxu0 0
    %4288 = vmatpush1.bf16.msra.mxu0 0
    %4289 = vmatprep.subr.bf16.mxu0 0
    %4290 = vmatpush1.bf16.msra.mxu0 0
    %4291 = vmatprep.subr.bf16.mxu0 0
    %4292 = vmatpush1.bf16.msra.mxu0 0
    %4293 = vmatprep.subr.bf16.mxu0 0
    %4294 = vmatpush1.bf16.msra.mxu0 0
    %4295 = vmatprep.subr.bf16.mxu0 0
    %4296 = vmatpush1.bf16.msra.mxu0 0
    %4297 = vmatprep.subr.bf16.mxu0 0
    %4298 = vmatpush1.bf16.msra.mxu0 0
    %4299 = vmatprep.subr.bf16.mxu0 0
    %4300 = vmatpush1.bf16.msra.mxu0 0
    %4301 = vmatprep.subr.bf16.mxu0 0
    %4302 = vmatpush1.bf16.msra.mxu0 0
    %4303 = vmatprep.subr.bf16.mxu0 0
    %4304 = vmatpush1.bf16.msra.mxu0 0
    %4305 = vmatprep.mubr.bf16.mxu0 0
    %4306 = vmatmul.mubr.bf16.gmra.mrb[0].mxu0 %v4268
    %v4307 = vpop.f32.mrb[0].mxu0
    %v4308 = vadd.f32 %v4253, %v4307
    %v4309 = vpop.f32.mrb[0].mxu0
    %v4310 = vpop.f32.mrb[0].mxu0
    %v4311 = vadd.f32 %v4253, %v4310
    %v4312 = vpop.f32.mrb[0].mxu0
    %4313 = vmatprep.mubr.bf16.mxu0 0
    %4314 = vmatmul.mubr.bf16.gmra.mrb[0].mxu0 %v4271
    %v4315 = vpop.f32.mrb[0].mxu0
    %v4316 = vadd.f32 %v4253, %v4315
    %v4317 = vpop.f32.mrb[0].mxu0
    %v4318 = vpop.f32.mrb[0].mxu0
    %v4319 = vadd.f32 %v4253, %v4318
    %v4320 = vpop.f32.mrb[0].mxu0
    %4321 = vdwg.mxu0
    %v4322 = vmax.f32 %v4308, 0.0
    %v4323 = vmax.f32 %v4311, 0.0
    %v4324 = vmax.f32 %v4316, 0.0
    %v4325 = vmax.f32 %v4319, 0.0
    %v4326 = vpack.c.bf16 %v4323, %v4322
    %v4327 = vpack.c.bf16 %v4325, %v4324
    %s4328 = scalar_lea.vmem %s12, 64
    %v4329 = vld [vmem:[%s4328] sm:$0xf]
    %v4330 = vld [vmem:[%s4328 + $0x4] sm:$0xf]
    %v4331 = vld [vmem:[%s4328 + $0x8] sm:$0xf]
    %v4332 = vld [vmem:[%s4328 + $0xc] sm:$0xf]
    %v4333 = vld [vmem:[%s4328 + $0x10] sm:$0xf]
    %v4334 = vld [vmem:[%s4328 + $0x14] sm:$0xf]
    %v4335 = vld [vmem:[%s4328 + $0x18] sm:$0xf]
    %v4336 = vld [vmem:[%s4328 + $0x1c] sm:$0xf]
    %v4337 = vld [vmem:[%s4328 + $0x20] sm:$0xf]
    %v4338 = vld [vmem:[%s4328 + $0x24] sm:$0xf]
    %v4339 = vld [vmem:[%s4328 + $0x28] sm:$0xf]
    %v4340 = vld [vmem:[%s4328 + $0x2c] sm:$0xf]
    %v4341 = vld [vmem:[%s4328 + $0x30] sm:$0xf]
    %v4342 = vld [vmem:[%s4328 + $0x34] sm:$0xf]
    %v4343 = vld [vmem:[%s4328 + $0x38] sm:$0xf]
    %v4344 = vld [vmem:[%s4328 + $0x3c] sm:$0xf]
    %s4345 = scalar_lea.vmem %s13, 1
    %v4346 = vld [vmem:[%s4345] sm:$0x1]
    %v4348 = vlaneseq
    %v4349 = vshrl.u32 %v4348, 7
    %v4350 = vsub.s32 0, %v4349
    %v4351 = vrot.slane %v4346, %v4350
    %v4369 = vunpack.c.l.b16 %v4329
    %v4370 = vunpack.c.l.b16 %v4330
    %v4371 = vunpack.c.l.b16 %v4331
    %v4372 = vunpack.c.l.b16 %v4332
    %v4373 = vunpack.c.l.b16 %v4333
    %v4374 = vunpack.c.l.b16 %v4334
    %v4375 = vunpack.c.l.b16 %v4335
    %v4376 = vunpack.c.l.b16 %v4336
    %v4377 = vunpack.c.l.b16 %v4337
    %v4378 = vunpack.c.l.b16 %v4338
    %v4379 = vunpack.c.l.b16 %v4339
    %v4380 = vunpack.c.l.b16 %v4340
    %v4381 = vunpack.c.l.b16 %v4341
    %v4382 = vunpack.c.l.b16 %v4342
    %v4383 = vunpack.c.l.b16 %v4343
    %v4384 = vunpack.c.l.b16 %v4344
    %v4385 = vpack.c.b16 %v4370, %v4369
    %v4386 = vpack.c.b16 %v4372, %v4371
    %v4387 = vpack.c.b16 %v4374, %v4373
    %v4388 = vpack.c.b16 %v4376, %v4375
    %v4389 = vpack.c.b16 %v4378, %v4377
    %v4390 = vpack.c.b16 %v4380, %v4379
    %v4391 = vpack.c.b16 %v4382, %v4381
    %v4392 = vpack.c.b16 %v4384, %v4383
    %4401 = vmatprep.subr.bf16.mxu0 0
    %4402 = vmatpush1.bf16.msra.mxu0 %v4385
    %4403 = vmatprep.subr.bf16.mxu0 0
    %4404 = vmatpush1.bf16.msra.mxu0 %v4386
    %4405 = vmatprep.subr.bf16.mxu0 0
    %4406 = vmatpush1.bf16.msra.mxu0 %v4387
    %4407 = vmatprep.subr.bf16.mxu0 0
    %4408 = vmatpush1.bf16.msra.mxu0 %v4388
    %4409 = vmatprep.subr.bf16.mxu0 0
    %4410 = vmatpush1.bf16.msra.mxu0 %v4389
    %4411 = vmatprep.subr.bf16.mxu0 0
    %4412 = vmatpush1.bf16.msra.mxu0 %v4390
    %4413 = vmatprep.subr.bf16.mxu0 0
    %4414 = vmatpush1.bf16.msra.mxu0 %v4391
    %4415 = vmatprep.subr.bf16.mxu0 0
    %4416 = vmatpush1.bf16.msra.mxu0 %v4392
    %4417 = vmatprep.subr.bf16.mxu0 0
    %4418 = vmatpush1.bf16.msra.mxu0 0
    %4419 = vmatprep.subr.bf16.mxu0 0
    %4420 = vmatpush1.bf16.msra.mxu0 0
    %4421 = vmatprep.subr.bf16.mxu0 0
    %4422 = vmatpush1.bf16.msra.mxu0 0
    %4423 = vmatprep.subr.bf16.mxu0 0
    %4424 = vmatpush1.bf16.msra.mxu0 0
    %4425 = vmatprep.subr.bf16.mxu0 0
    %4426 = vmatpush1.bf16.msra.mxu0 0
    %4427 = vmatprep.subr.bf16.mxu0 0
    %4428 = vmatpush1.bf16.msra.mxu0 0
    %4429 = vmatprep.subr.bf16.mxu0 0
    %4430 = vmatpush1.bf16.msra.mxu0 0
    %4431 = vmatprep.subr.bf16.mxu0 0
    %4432 = vmatpush1.bf16.msra.mxu0 0
    %4433 = vmatprep.mubr.bf16.mxu0 0
    %4434 = vmatmul.mubr.bf16.gmra.mrb[0].mxu0 %v4326
    %v4435 = vpop.f32.mrb[0].mxu0
    %v4436 = vadd.f32 %v4351, %v4435
    %v4437 = vpop.f32.mrb[0].mxu0
    %v4438 = vpop.f32.mrb[0].mxu0
    %v4439 = vadd.f32 %v4351, %v4438
    %v4440 = vpop.f32.mrb[0].mxu0
    %4441 = vmatprep.mubr.bf16.mxu0 0
    %4442 = vmatmul.mubr.bf16.gmra.mrb[0].mxu0 %v4327
    %v4443 = vpop.f32.mrb[0].mxu0
    %v4444 = vadd.f32 %v4351, %v4443
    %v4445 = vpop.f32.mrb[0].mxu0
    %v4446 = vpop.f32.mrb[0].mxu0
    %v4447 = vadd.f32 %v4351, %v4446
    %v4448 = vpop.f32.mrb[0].mxu0
    %4449 = vdwg.mxu0
    %v4450 = vadd.f32 %v4160, %v4436
    %v4451 = vadd.f32 %v4161, %v4439
    %v4452 = vadd.f32 %v4162, %v4444
    %v4453 = vadd.f32 %v4163, %v4447
    %v4454 = vld [vmem:[%s14] sm:$0x1]
    %v4455 = vld [vmem:[%s15] sm:$0x1]
    %v4456 = vsel %vm277, %v4450, 0.0
    %4457 = vadd.xlane.f32.xlu0 %v4456
    %v4458 = vpop.xlane.xlu0 %4457
    %v4459 = vsel %vm277, %v4451, 0.0
    %4460 = vadd.xlane.f32.xlu0 %v4459
    %v4461 = vpop.xlane.xlu0 %4460
    %v4462 = vsel %vm277, %v4452, 0.0
    %4463 = vadd.xlane.f32.xlu0 %v4462
    %v4464 = vpop.xlane.xlu0 %4463
    %v4465 = vsel %vm277, %v4453, 0.0
    %4466 = vadd.xlane.f32.xlu0 %v4465
    %v4467 = vpop.xlane.xlu0 %4466
    %v4468 = vmul.f32 %v4458, %v290
    %v4469 = vmul.f32 %v4461, %v290
    %v4470 = vmul.f32 %v4464, %v290
    %v4471 = vmul.f32 %v4467, %v290
    %v4472 = vsub.f32 %v4450, %v4468
    %v4473 = vsub.f32 %v4451, %v4469
    %v4474 = vsub.f32 %v4452, %v4470
    %v4475 = vsub.f32 %v4453, %v4471
    %v4476 = vmul.f32 %v4472, %v4472
    %v4477 = vmul.f32 %v4473, %v4473
    %v4478 = vmul.f32 %v4474, %v4474
    %v4479 = vmul.f32 %v4475, %v4475
    %v4480 = vsel %vm277, %v4476, 0.0
    %4481 = vadd.xlane.f32.xlu0 %v4480
    %v4482 = vpop.xlane.xlu0 %4481
    %v4483 = vsel %vm277, %v4477, 0.0
    %4484 = vadd.xlane.f32.xlu0 %v4483
    %v4485 = vpop.xlane.xlu0 %4484
    %v4486 = vsel %vm277, %v4478, 0.0
    %4487 = vadd.xlane.f32.xlu0 %v4486
    %v4488 = vpop.xlane.xlu0 %4487
    %v4489 = vsel %vm277, %v4479, 0.0
    %4490 = vadd.xlane.f32.xlu0 %v4489
    %v4491 = vpop.xlane.xlu0 %4490
    %v4492 = vmul.f32 %v4482, %v290
    %v4493 = vmul.f32 %v4485, %v290
    %v4494 = vmul.f32 %v4488, %v290
    %v4495 = vmul.f32 %v4491, %v290
    %v4496 = vadd.f32 %v4492, 1e-05
    %v4497 = vadd.f32 %v4493, 1e-05
    %v4498 = vadd.f32 %v4494, 1e-05
    %v4499 = vadd.f32 %v4495, 1e-05
    %v4500 = vrsqrt.pop %v4496
    %v4501 = vrsqrt.pop %v4497
    %v4502 = vrsqrt.pop %v4498
    %v4503 = vrsqrt.pop %v4499
    %v4504 = vmul.f32 %v4472, %v4500
    %v4505 = vmul.f32 %v4473, %v4501
    %v4506 = vmul.f32 %v4474, %v4502
    %v4507 = vmul.f32 %v4475, %v4503
    %v4509 = vlaneseq
    %v4510 = vshrl.u32 %v4509, 7
    %v4511 = vsub.s32 0, %v4510
    %v4512 = vrot.slane %v4454, %v4511
    %v4514 = vmul.f32 %v4504, %v4512
    %v4515 = vmul.f32 %v4505, %v4512
    %v4516 = vmul.f32 %v4506, %v4512
    %v4517 = vmul.f32 %v4507, %v4512
    %v4519 = vlaneseq
    %v4520 = vshrl.u32 %v4519, 7
    %v4521 = vsub.s32 0, %v4520
    %v4522 = vrot.slane %v4455, %v4521
    %v4524 = vadd.f32 %v4514, %v4522
    %v4525 = vadd.f32 %v4515, %v4522
    %v4526 = vadd.f32 %v4516, %v4522
    %v4527 = vadd.f32 %v4517, %v4522
    %v4528 = vpack.c.bf16 %v4525, %v4524
    %v4529 = vpack.c.bf16 %v4527, %v4526
    %v4530 = vld [vmem:[%s16] sm:$0xf]
    %v4531 = vld [vmem:[%s16 + $0x4] sm:$0xf]
    %v4532 = vld [vmem:[%s16 + $0x8] sm:$0xf]
    %v4533 = vld [vmem:[%s16 + $0xc] sm:$0xf]
    %v4534 = vld [vmem:[%s17] sm:$0x1]
    %v4536 = vlaneseq
    %v4537 = vshrl.u32 %v4536, 7
    %v4538 = vsub.s32 0, %v4537
    %v4539 = vrot.slane %v4534, %v4538
    %v4545 = vunpack.c.l.b16 %v4530
    %v4546 = vunpack.c.l.b16 %v4531
    %v4547 = vunpack.c.l.b16 %v4532
    %v4548 = vunpack.c.l.b16 %v4533
    %v4549 = vpack.c.b16 %v4546, %v4545
    %v4550 = vpack.c.b16 %v4548, %v4547
    %v4554 = vsel %vm277, %v4528, 0
    %v4557 = vsel %vm277, %v4529, 0
    %4559 = vmatprep.subr.bf16.mxu0 0
    %4560 = vmatpush1.bf16.msra.mxu0 %v4549
    %4561 = vmatprep.subr.bf16.mxu0 0
    %4562 = vmatpush1.bf16.msra.mxu0 %v4550
    %4563 = vmatprep.subr.bf16.mxu0 0
    %4564 = vmatpush1.bf16.msra.mxu0 0
    %4565 = vmatprep.subr.bf16.mxu0 0
    %4566 = vmatpush1.bf16.msra.mxu0 0
    %4567 = vmatprep.subr.bf16.mxu0 0
    %4568 = vmatpush1.bf16.msra.mxu0 0
    %4569 = vmatprep.subr.bf16.mxu0 0
    %4570 = vmatpush1.bf16.msra.mxu0 0
    %4571 = vmatprep.subr.bf16.mxu0 0
    %4572 = vmatpush1.bf16.msra.mxu0 0
    %4573 = vmatprep.subr.bf16.mxu0 0
    %4574 = vmatpush1.bf16.msra.mxu0 0
    %4575 = vmatprep.subr.bf16.mxu0 0
    %4576 = vmatpush1.bf16.msra.mxu0 0
    %4577 = vmatprep.subr.bf16.mxu0 0
    %4578 = vmatpush1.bf16.msra.mxu0 0
    %4579 = vmatprep.subr.bf16.mxu0 0
    %4580 = vmatpush1.bf16.msra.mxu0 0
    %4581 = vmatprep.subr.bf16.mxu0 0
    %4582 = vmatpush1.bf16.msra.mxu0 0
    %4583 = vmatprep.subr.bf16.mxu0 0
    %4584 = vmatpush1.bf16.msra.mxu0 0
    %4585 = vmatprep.subr.bf16.mxu0 0
    %4586 = vmatpush1.bf16.msra.mxu0 0
    %4587 = vmatprep.subr.bf16.mxu0 0
    %4588 = vmatpush1.bf16.msra.mxu0 0
    %4589 = vmatprep.subr.bf16.mxu0 0
    %4590 = vmatpush1.bf16.msra.mxu0 0
    %4591 = vmatprep.mubr.bf16.mxu0 0
    %4592 = vmatmul.mubr.bf16.gmra.mrb[0].mxu0 %v4554
    %v4593 = vpop.f32.mrb[0].mxu0
    %v4594 = vadd.f32 %v4539, %v4593
    %v4595 = vpop.f32.mrb[0].mxu0
    %v4596 = vpop.f32.mrb[0].mxu0
    %v4597 = vadd.f32 %v4539, %v4596
    %v4598 = vpop.f32.mrb[0].mxu0
    %4599 = vmatprep.mubr.bf16.mxu0 0
    %4600 = vmatmul.mubr.bf16.gmra.mrb[0].mxu0 %v4557
    %v4601 = vpop.f32.mrb[0].mxu0
    %v4602 = vadd.f32 %v4539, %v4601
    %v4603 = vpop.f32.mrb[0].mxu0
    %v4604 = vpop.f32.mrb[0].mxu0
    %v4605 = vadd.f32 %v4539, %v4604
    %v4606 = vpop.f32.mrb[0].mxu0
    %4607 = vdwg.mxu0
    %4608 = vst [vmem:[#allocation3] sm:$0xff] %v4594
    %4609 = vst [vmem:[#allocation3 + $0x8] sm:$0xff] %v4597
    %4610 = vst [vmem:[#allocation3 + $0x10] sm:$0xff] %v4602
    %4611 = vst [vmem:[#allocation3 + $0x18] sm:$0xff] %v4605
    // Predicated region
    $region74: #{gpt_forward.1} parent=1 // pred_check
      _
    $region75: #{gpt_forward.1} parent=1 // pred_check_branch
      %4613 = sbr.rel (0) target = $region77
    $region76: #{gpt_forward.1} parent=1 // pred_region
      %s4615 = ssub.s32 512, 512
      %4616 = vsyncadd [#allocation4], %s4615
      %s4617 = sshll.u32 [#allocation3], 4
      %s4618 = int_to_ptr.vmem [resolvable:$true] %s4617
      %4623 = dma.vmem_to_hbm [thread:$0]  %s4618, 512, %s18, [#allocation4], 128, 128, 8
    $region77: #{gpt_forward.1} parent=1 // pred_fallthru
      _
    // Predicated region
    $region78: #{gpt_forward.1} parent=1 // pred_check
      _
    $region79: #{gpt_forward.1} parent=1 // pred_check_branch
      %4625 = sbr.rel (0) target = $region81
    $region80: #{gpt_forward.1} parent=1 // pred_region
      %4626 = dma.done [#allocation4], 512
    $region81: #{gpt_forward.1} parent=1 // pred_fallthru
      _
    %4627 = vsyncpa [#allocation4], 1

</llo_original>
